<compile_context>
chip_gen: v5e
topology: v5e:2x2
jax: 0.10.0
libtpu: 0.0.40
codegen_flags: <defaults>
</compile_context>

<pallas_src>
import numpy as np
import jax
import jax.numpy as jnp
from jax import lax
from jax.experimental import pallas as pl
from jax.experimental.pallas import tpu as pltpu

_VMEM = pl.BlockSpec(memory_space=pltpu.MemorySpace.VMEM)
_EPS = 1e-5


# ------------------------------ fused kernel --------------------------------

def _bn_crelu(h, w, b, cout):
    # h: (M, 2*Cout) f32 laid out [real Cout | imag Cout]; w: (2,2,1,Cout); b: (2,1,Cout)
    m = h.shape[0]
    xr = h[:, :cout]
    xi = h[:, cout:]
    inv_m = 1.0 / m
    mr = jnp.sum(xr, axis=0, keepdims=True) * inv_m
    mi = jnp.sum(xi, axis=0, keepdims=True) * inv_m
    cr = xr - mr
    ci = xi - mi
    vrr = jnp.sum(cr * cr, axis=0, keepdims=True) * inv_m + _EPS
    vii = jnp.sum(ci * ci, axis=0, keepdims=True) * inv_m + _EPS
    vri = jnp.sum(cr * ci, axis=0, keepdims=True) * inv_m
    # inverse matrix square root of the 2x2 covariance [[vrr, vri], [vri, vii]]
    sqrdet = jnp.sqrt(vrr * vii - vri * vri)
    inv_denom = pl.reciprocal(sqrdet * jnp.sqrt(vrr + 2.0 * sqrdet + vii), approx=True)
    p = (vii + sqrdet) * inv_denom
    q = -vri * inv_denom
    s = (vrr + sqrdet) * inv_denom
    zr = p * cr + q * ci
    zi = q * cr + s * ci
    yr = zr * w[0, 0] + zi * w[0, 1] + b[0]
    yi = zr * w[1, 0] + zi * w[1, 1] + b[1]
    return jnp.concatenate([jnp.maximum(yr, 0.0), jnp.maximum(yi, 0.0)], axis=-1)


def _cplx_down_fused_kernel(x_ref, w1_ref, b1_ref, g1w_ref, g1b_ref,
                            w2_ref, b2_ref, g2w_ref, g2b_ref,
                            o_ref, pad2_ref):
    # x_ref   : (4, N, Ho+2, Wo+2, 2*Cin) f32 -- 2x2 pool taps on the leading axis,
    #           spatial already zero-padded (halo of 1 after pooling)
    # w1_ref  : (9, 2*Cin,  2*Cout) bf16   b1_ref: (1, 2*Cout) f32
    # w2_ref  : (9, 2*Cout, 2*Cout) bf16   b2_ref: (1, 2*Cout) f32
    # g*w_ref : (2, 2, 1, Cout) f32        g*b_ref: (2, 1, Cout) f32
    # o_ref   : (N*Ho, Wo*2*Cout) f32 (lane-dense output slab)
    # pad2_ref: (N, Ho+2, Wo+2, 2*Cout) f32 scratch (padded conv-2 input)
    n, hp, wp, c2out = pad2_ref.shape
    c2in = x_ref.shape[-1]
    ho, wo = hp - 2, wp - 2
    m = n * ho * wo
    cout = c2out // 2

    # ---- 2x2 average pool (input already padded): (N, Ho+2, Wo+2, 2*Cin)
    padv1 = (x_ref[0] + x_ref[1] + x_ref[2] + x_ref[3]) * 0.25

    # ---- conv1: 9 tap-accumulated MXU matmuls (no im2col scratch), bf16 in / f32 acc
    acc = None
    for t in range(9):
        kh, kw = t // 3, t % 3
        tap = padv1[:, kh:kh + ho, kw:kw + wo, :].reshape(m, c2in).astype(jnp.bfloat16)
        d = jnp.dot(tap, w1_ref[t], preferred_element_type=jnp.float32)
        acc = d if acc is None else acc + d

    # ---- bn1 + CReLU (exact batch statistics over all M rows = full (N,H,W))
    h = _bn_crelu(acc + b1_ref[...], g1w_ref[...], g1b_ref[...], cout)

    # ---- conv2 input: zero ONLY the 1-pixel halo strips, then write the interior once
    zrow = jnp.zeros((n, 1, wp, c2out), jnp.float32)
    zcol = jnp.zeros((n, hp, 1, c2out), jnp.float32)
    pad2_ref[:, 0:1, :, :] = zrow
    pad2_ref[:, hp - 1:hp, :, :] = zrow
    pad2_ref[:, :, 0:1, :] = zcol
    pad2_ref[:, :, wp - 1:wp, :] = zcol
    pad2_ref[:, 1:1 + ho, 1:1 + wo, :] = h.reshape(n, ho, wo, c2out)
    padv2 = pad2_ref[...]

    # ---- conv2: 9 tap-accumulated matmuls
    acc2 = None
    for t in range(9):
        kh, kw = t // 3, t % 3
        tap = padv2[:, kh:kh + ho, kw:kw + wo, :].reshape(m, c2out).astype(jnp.bfloat16)
        d = jnp.dot(tap, w2_ref[t], preferred_element_type=jnp.float32)
        acc2 = d if acc2 is None else acc2 + d

    # ---- bn2 + CReLU -> lane-dense output slab (N*Ho, Wo*2*Cout)
    y = _bn_crelu(acc2 + b2_ref[...], g2w_ref[...], g2b_ref[...], cout)
    y3 = y.reshape(n * ho, wo, c2out)
    o_ref[...] = jnp.concatenate([y3[:, j, :] for j in range(wo)], axis=-1)


# ------------------------------ JAX wrapper ----------------------------------

def _pack_cplx_conv_weights(wr, wi):
    # wr, wi: (Cout, Cin, 3, 3) OIHW  ->  (9, 2*Cin, 2*Cout) bf16 per-tap block matrices
    # rows within a tap ordered [xr channels | xi channels]; cols = [yr | yi]
    cout, cin = wr.shape[:2]
    wr_t = jnp.transpose(wr, (2, 3, 1, 0))           # (3,3,Cin,Cout)
    wi_t = jnp.transpose(wi, (2, 3, 1, 0))
    top = jnp.concatenate([wr_t, wi_t], axis=-1)     # xr rows -> [Wr | Wi]
    bot = jnp.concatenate([-wi_t, wr_t], axis=-1)    # xi rows -> [-Wi | Wr]
    w = jnp.concatenate([top, bot], axis=2)          # (3,3,2*Cin,2*Cout)
    return w.reshape(9, 2 * cin, 2 * cout).astype(jnp.bfloat16)


def cplx_down_forward(x_real, x_imag, params):
    # x_real/x_imag: (N, Cin, H, W) NCHW  ->  (N, Cout, H//2, W//2)
    n, cin, h, w = x_real.shape
    ho, wo = h // 2, w // 2
    hp, wp = ho + 2, wo + 2
    cout = params["conv1_wr"].shape[0]
    c2in, c2out = 2 * cin, 2 * cout
    m = n * ho * wo

    # Layout plumbing (single relayout of the input): stack [real; imag] on channel,
    # zero-pad spatially by 2 (= pad 1 after 2x2 pooling), expose the 4 pool taps on a
    # leading axis, channel minor.
    # TODO(synk): at production sizes feed an NHWC slab and gather the pool taps in-kernel
    # (strided pl.ds) so this pre-pass is not a second HBM sweep.
    xc = jnp.concatenate([x_real, x_imag], axis=1)               # (N, 2Cin, H, W)
    xc = jnp.pad(xc, ((0, 0), (0, 0), (2, 2), (2, 2)))           # (N, 2Cin, H+4, W+4)
    xt = xc.reshape(n, c2in, hp, 2, wp, 2)
    xt = jnp.transpose(xt, (3, 5, 0, 2, 4, 1)).reshape(4, n, hp, wp, c2in)

    w1 = _pack_cplx_conv_weights(params["conv1_wr"], params["conv1_wi"])
    b1 = jnp.concatenate([params["conv1_br"], params["conv1_bi"]]).reshape(1, c2out)
    w2 = _pack_cplx_conv_weights(params["conv2_wr"], params["conv2_wi"])
    b2 = jnp.concatenate([params["conv2_br"], params["conv2_bi"]]).reshape(1, c2out)
    g1w = params["bn1_w"].reshape(2, 2, 1, cout)
    g1b = params["bn1_b"].reshape(2, 1, cout)
    g2w = params["bn2_w"].reshape(2, 2, 1, cout)
    g2b = params["bn2_b"].reshape(2, 1, cout)

    out = pl.pallas_call(
        _cplx_down_fused_kernel,
        out_shape=jax.ShapeDtypeStruct((n * ho, wo * c2out), jnp.float32),
        in_specs=[_VMEM] * 9,
        out_specs=_VMEM,
        scratch_shapes=[
            pltpu.VMEM((n, hp, wp, c2out), jnp.float32),  # padded conv-2 activation
        ],
        compiler_params=pltpu.CompilerParams(vmem_limit_bytes=32 * 1024 * 1024),
    )(xt, w1, b1, g1w, g1b, w2, b2, g2w, g2b)

    out = out.reshape(n, ho, wo, c2out)
    yr = jnp.transpose(out[..., :cout], (0, 3, 1, 2))
    yi = jnp.transpose(out[..., cout:], (0, 3, 1, 2))
    return yr, yi


# ------------------------- deterministic parameters -------------------------

def init_params(key, cin, cout):
    ks = jax.random.split(key, 4)

    def conv_init(k, ci, co):
        k1, k2, k3, k4 = jax.random.split(k, 4)
        scale = 1.0 / np.sqrt(ci * 9)
        return (scale * jax.random.normal(k1, (co, ci, 3, 3), jnp.float32),
                scale * jax.random.normal(k2, (co, ci, 3, 3), jnp.float32),
                0.1 * jax.random.normal(k3, (co,), jnp.float32),
                0.1 * jax.random.normal(k4, (co,), jnp.float32))

    def bn_init(k, c):
        k1, k2 = jax.random.split(k, 2)
        eye = jnp.eye(2, dtype=jnp.float32)[:, :, None] * jnp.ones((1, 1, c), jnp.float32)
        w = eye + 0.1 * jax.random.normal(k1, (2, 2, c), jnp.float32)
        b = 0.1 * jax.random.normal(k2, (2, c), jnp.float32)
        return w, b

    c1 = conv_init(ks[0], cin, cout)
    b1 = bn_init(ks[1], cout)
    c2 = conv_init(ks[2], cout, cout)
    b2 = bn_init(ks[3], cout)
    return dict(conv1_wr=c1[0], conv1_wi=c1[1], conv1_br=c1[2], conv1_bi=c1[3],
                bn1_w=b1[0], bn1_b=b1[1],
                conv2_wr=c2[0], conv2_wi=c2[1], conv2_br=c2[2], conv2_bi=c2[3],
                bn2_w=b2[0], bn2_b=b2[1])


# ---------------------------- pure-JAX reference -----------------------------

def _ref_forward(x_real, x_imag, P):
    def pool(a):
        n, c, h, w = a.shape
        return a.reshape(n, c, h // 2, 2, w // 2, 2).mean(axis=(3, 5))

    def conv(a, w):
        return lax.conv_general_dilated(a, w, (1, 1), "SAME",
                                        dimension_numbers=("NCHW", "OIHW", "NCHW"),
                                        precision=lax.Precision.HIGHEST)

    def cconv(ar, ai, wr, wi, br, bi):
        yr = conv(ar, wr) - conv(ai, wi) + br[None, :, None, None]
        yi = conv(ar, wi) + conv(ai, wr) + bi[None, :, None, None]
        return yr, yi

    def bn_crelu(ar, ai, w, b):
        ax = (0, 2, 3)
        mr = ar.mean(ax, keepdims=True); mi = ai.mean(ax, keepdims=True)
        cr = ar - mr; ci = ai - mi
        vrr = (cr * cr).mean(ax, keepdims=True) + _EPS
        vii = (ci * ci).mean(ax, keepdims=True) + _EPS
        vri = (cr * ci).mean(ax, keepdims=True)
        sqrdet = jnp.sqrt(vrr * vii - vri * vri)
        denom = sqrdet * jnp.sqrt(vrr + 2.0 * sqrdet + vii)
        p = (vii + sqrdet) / denom
        q = -vri / denom
        s = (vrr + sqrdet) / denom
        zr = p * cr + q * ci
        zi = q * cr + s * ci
        bc = lambda v: v[None, :, None, None]
        yr = zr * bc(w[0, 0]) + zi * bc(w[0, 1]) + bc(b[0])
        yi = zr * bc(w[1, 0]) + zi * bc(w[1, 1]) + bc(b[1])
        return jnp.maximum(yr, 0.0), jnp.maximum(yi, 0.0)

    ar, ai = pool(x_real), pool(x_imag)
    ar, ai = cconv(ar, ai, P["conv1_wr"], P["conv1_wi"], P["conv1_br"], P["conv1_bi"])
    ar, ai = bn_crelu(ar, ai, P["bn1_w"], P["bn1_b"])
    ar, ai = cconv(ar, ai, P["conv2_wr"], P["conv2_wi"], P["conv2_br"], P["conv2_bi"])
    ar, ai = bn_crelu(ar, ai, P["bn2_w"], P["bn2_b"])
    return ar, ai


# ---------------------------------- main -------------------------------------

if __name__ == "__main__":
    key = jax.random.PRNGKey(0)
    kx1, kx2, kp = jax.random.split(key, 3)
    N, Cin, H, W, Cout = 2, 4, 16, 16, 8

    x_real = jax.random.normal(kx1, (N, Cin, H, W), jnp.float32)
    x_imag = jax.random.normal(kx2, (N, Cin, H, W), jnp.float32)
    params = init_params(kp, Cin, Cout)

    fwd = jax.jit(cplx_down_forward)
    yr, yi = fwd(x_real, x_imag, params)
    jax.block_until_ready((yr, yi))

    # Reference is f32-exact (HIGHEST precision convs); the kernel runs the convs with
    # bf16 MXU operands (f32 accumulation) and an approx BN reciprocal, so allow ~2e-2.
    rr, ri = _ref_forward(x_real, x_imag, params)
    np.testing.assert_allclose(np.asarray(yr), np.asarray(rr), atol=2e-2, rtol=2e-2)
    np.testing.assert_allclose(np.asarray(yi), np.asarray(ri), atol=2e-2, rtol=2e-2)
    assert yr.shape == (N, Cout, H // 2, W // 2) and yi.shape == (N, Cout, H // 2, W // 2)

    print("KERNEL_OK")
</pallas_src>

<mosaic_0001>
module attributes {stable_mosaic.version = 11 : i64} {
  func.func @_cplx_down_fused_kernel(%arg0: memref<4x2x10x10x8xf32, #tpu.memory_space<vmem>>, %arg1: memref<9x8x16xbf16, #tpu.memory_space<vmem>>, %arg2: memref<1x16xf32, #tpu.memory_space<vmem>>, %arg3: memref<2x2x1x8xf32, #tpu.memory_space<vmem>>, %arg4: memref<2x1x8xf32, #tpu.memory_space<vmem>>, %arg5: memref<9x16x16xbf16, #tpu.memory_space<vmem>>, %arg6: memref<1x16xf32, #tpu.memory_space<vmem>>, %arg7: memref<2x2x1x8xf32, #tpu.memory_space<vmem>>, %arg8: memref<2x1x8xf32, #tpu.memory_space<vmem>>, %arg9: memref<16x128xf32, #tpu.memory_space<vmem>>, %arg10: memref<2x10x10x16xf32, #tpu.memory_space<vmem>>) attributes {dimension_semantics = [], scalar_prefetch = 0 : i64, scratch_operands = 1 : i64, tpu.core_type = #tpu.core_type<tc>} {
    %c0 = arith.constant 0 : index
    %c0_0 = arith.constant 0 : index
    %c0_1 = arith.constant 0 : index
    %c0_2 = arith.constant 0 : index
    %c0_3 = arith.constant 0 : index
    %0 = vector.load %arg0[%c0, %c0_0, %c0_1, %c0_2, %c0_3] : memref<4x2x10x10x8xf32, #tpu.memory_space<vmem>>, vector<1x2x10x10x8xf32>
    %1 = vector.shape_cast %0 : vector<1x2x10x10x8xf32> to vector<2x10x10x8xf32>
    %c1 = arith.constant 1 : index
    %c0_4 = arith.constant 0 : index
    %c0_5 = arith.constant 0 : index
    %c0_6 = arith.constant 0 : index
    %c0_7 = arith.constant 0 : index
    %2 = vector.load %arg0[%c1, %c0_4, %c0_5, %c0_6, %c0_7] : memref<4x2x10x10x8xf32, #tpu.memory_space<vmem>>, vector<1x2x10x10x8xf32>
    %3 = vector.shape_cast %2 : vector<1x2x10x10x8xf32> to vector<2x10x10x8xf32>
    %4 = arith.addf %1, %3 : vector<2x10x10x8xf32>
    %c2 = arith.constant 2 : index
    %c0_8 = arith.constant 0 : index
    %c0_9 = arith.constant 0 : index
    %c0_10 = arith.constant 0 : index
    %c0_11 = arith.constant 0 : index
    %5 = vector.load %arg0[%c2, %c0_8, %c0_9, %c0_10, %c0_11] : memref<4x2x10x10x8xf32, #tpu.memory_space<vmem>>, vector<1x2x10x10x8xf32>
    %6 = vector.shape_cast %5 : vector<1x2x10x10x8xf32> to vector<2x10x10x8xf32>
    %7 = arith.addf %4, %6 : vector<2x10x10x8xf32>
    %c3 = arith.constant 3 : index
    %c0_12 = arith.constant 0 : index
    %c0_13 = arith.constant 0 : index
    %c0_14 = arith.constant 0 : index
    %c0_15 = arith.constant 0 : index
    %8 = vector.load %arg0[%c3, %c0_12, %c0_13, %c0_14, %c0_15] : memref<4x2x10x10x8xf32, #tpu.memory_space<vmem>>, vector<1x2x10x10x8xf32>
    %9 = vector.shape_cast %8 : vector<1x2x10x10x8xf32> to vector<2x10x10x8xf32>
    %10 = arith.addf %7, %9 : vector<2x10x10x8xf32>
    %cst = arith.constant 2.500000e-01 : f32
    %11 = vector.broadcast %cst : f32 to vector<2x10x10x8xf32>
    %12 = arith.mulf %10, %11 : vector<2x10x10x8xf32>
    %13 = vector.extract_strided_slice %12 {offsets = [0, 0, 0, 0], sizes = [2, 8, 8, 8], strides = [1, 1, 1, 1]} : vector<2x10x10x8xf32> to vector<2x8x8x8xf32>
    %14 = vector.shape_cast %13 : vector<2x8x8x8xf32> to vector<128x8xf32>
    %15 = arith.truncf %14 : vector<128x8xf32> to vector<128x8xbf16>
    %c0_16 = arith.constant 0 : index
    %c0_17 = arith.constant 0 : index
    %c0_18 = arith.constant 0 : index
    %16 = vector.load %arg1[%c0_16, %c0_17, %c0_18] : memref<9x8x16xbf16, #tpu.memory_space<vmem>>, vector<1x8x16xbf16>
    %17 = vector.shape_cast %16 : vector<1x8x16xbf16> to vector<8x16xbf16>
    %cst_19 = arith.constant dense<0.000000e+00> : vector<128x16xf32>
    %18 = tpu.matmul %15, %17, %cst_19 {dimension_numbers = #tpu.dot_dimension_numbers<[1], [0], [0], [1], [0, 0, 1, 1], [], []>} : vector<128x8xbf16>, vector<8x16xbf16>, vector<128x16xf32> -> vector<128x16xf32>
    %19 = vector.extract_strided_slice %12 {offsets = [0, 0, 1, 0], sizes = [2, 8, 8, 8], strides = [1, 1, 1, 1]} : vector<2x10x10x8xf32> to vector<2x8x8x8xf32>
    %20 = vector.shape_cast %19 : vector<2x8x8x8xf32> to vector<128x8xf32>
    %21 = arith.truncf %20 : vector<128x8xf32> to vector<128x8xbf16>
    %c1_20 = arith.constant 1 : index
    %c0_21 = arith.constant 0 : index
    %c0_22 = arith.constant 0 : index
    %22 = vector.load %arg1[%c1_20, %c0_21, %c0_22] : memref<9x8x16xbf16, #tpu.memory_space<vmem>>, vector<1x8x16xbf16>
    %23 = vector.shape_cast %22 : vector<1x8x16xbf16> to vector<8x16xbf16>
    %cst_23 = arith.constant dense<0.000000e+00> : vector<128x16xf32>
    %24 = tpu.matmul %21, %23, %cst_23 {dimension_numbers = #tpu.dot_dimension_numbers<[1], [0], [0], [1], [0, 0, 1, 1], [], []>} : vector<128x8xbf16>, vector<8x16xbf16>, vector<128x16xf32> -> vector<128x16xf32>
    %25 = arith.addf %18, %24 : vector<128x16xf32>
    %26 = vector.extract_strided_slice %12 {offsets = [0, 0, 2, 0], sizes = [2, 8, 8, 8], strides = [1, 1, 1, 1]} : vector<2x10x10x8xf32> to vector<2x8x8x8xf32>
    %27 = vector.shape_cast %26 : vector<2x8x8x8xf32> to vector<128x8xf32>
    %28 = arith.truncf %27 : vector<128x8xf32> to vector<128x8xbf16>
    %c2_24 = arith.constant 2 : index
    %c0_25 = arith.constant 0 : index
    %c0_26 = arith.constant 0 : index
    %29 = vector.load %arg1[%c2_24, %c0_25, %c0_26] : memref<9x8x16xbf16, #tpu.memory_space<vmem>>, vector<1x8x16xbf16>
    %30 = vector.shape_cast %29 : vector<1x8x16xbf16> to vector<8x16xbf16>
    %cst_27 = arith.constant dense<0.000000e+00> : vector<128x16xf32>
    %31 = tpu.matmul %28, %30, %cst_27 {dimension_numbers = #tpu.dot_dimension_numbers<[1], [0], [0], [1], [0, 0, 1, 1], [], []>} : vector<128x8xbf16>, vector<8x16xbf16>, vector<128x16xf32> -> vector<128x16xf32>
    %32 = arith.addf %25, %31 : vector<128x16xf32>
    %33 = vector.extract_strided_slice %12 {offsets = [0, 1, 0, 0], sizes = [2, 8, 8, 8], strides = [1, 1, 1, 1]} : vector<2x10x10x8xf32> to vector<2x8x8x8xf32>
    %34 = vector.shape_cast %33 : vector<2x8x8x8xf32> to vector<128x8xf32>
    %35 = arith.truncf %34 : vector<128x8xf32> to vector<128x8xbf16>
    %c3_28 = arith.constant 3 : index
    %c0_29 = arith.constant 0 : index
    %c0_30 = arith.constant 0 : index
    %36 = vector.load %arg1[%c3_28, %c0_29, %c0_30] : memref<9x8x16xbf16, #tpu.memory_space<vmem>>, vector<1x8x16xbf16>
    %37 = vector.shape_cast %36 : vector<1x8x16xbf16> to vector<8x16xbf16>
    %cst_31 = arith.constant dense<0.000000e+00> : vector<128x16xf32>
    %38 = tpu.matmul %35, %37, %cst_31 {dimension_numbers = #tpu.dot_dimension_numbers<[1], [0], [0], [1], [0, 0, 1, 1], [], []>} : vector<128x8xbf16>, vector<8x16xbf16>, vector<128x16xf32> -> vector<128x16xf32>
    %39 = arith.addf %32, %38 : vector<128x16xf32>
    %40 = vector.extract_strided_slice %12 {offsets = [0, 1, 1, 0], sizes = [2, 8, 8, 8], strides = [1, 1, 1, 1]} : vector<2x10x10x8xf32> to vector<2x8x8x8xf32>
    %41 = vector.shape_cast %40 : vector<2x8x8x8xf32> to vector<128x8xf32>
    %42 = arith.truncf %41 : vector<128x8xf32> to vector<128x8xbf16>
    %c4 = arith.constant 4 : index
    %c0_32 = arith.constant 0 : index
    %c0_33 = arith.constant 0 : index
    %43 = vector.load %arg1[%c4, %c0_32, %c0_33] : memref<9x8x16xbf16, #tpu.memory_space<vmem>>, vector<1x8x16xbf16>
    %44 = vector.shape_cast %43 : vector<1x8x16xbf16> to vector<8x16xbf16>
    %cst_34 = arith.constant dense<0.000000e+00> : vector<128x16xf32>
    %45 = tpu.matmul %42, %44, %cst_34 {dimension_numbers = #tpu.dot_dimension_numbers<[1], [0], [0], [1], [0, 0, 1, 1], [], []>} : vector<128x8xbf16>, vector<8x16xbf16>, vector<128x16xf32> -> vector<128x16xf32>
    %46 = arith.addf %39, %45 : vector<128x16xf32>
    %47 = vector.extract_strided_slice %12 {offsets = [0, 1, 2, 0], sizes = [2, 8, 8, 8], strides = [1, 1, 1, 1]} : vector<2x10x10x8xf32> to vector<2x8x8x8xf32>
    %48 = vector.shape_cast %47 : vector<2x8x8x8xf32> to vector<128x8xf32>
    %49 = arith.truncf %48 : vector<128x8xf32> to vector<128x8xbf16>
    %c5 = arith.constant 5 : index
    %c0_35 = arith.constant 0 : index
    %c0_36 = arith.constant 0 : index
    %50 = vector.load %arg1[%c5, %c0_35, %c0_36] : memref<9x8x16xbf16, #tpu.memory_space<vmem>>, vector<1x8x16xbf16>
    %51 = vector.shape_cast %50 : vector<1x8x16xbf16> to vector<8x16xbf16>
    %cst_37 = arith.constant dense<0.000000e+00> : vector<128x16xf32>
    %52 = tpu.matmul %49, %51, %cst_37 {dimension_numbers = #tpu.dot_dimension_numbers<[1], [0], [0], [1], [0, 0, 1, 1], [], []>} : vector<128x8xbf16>, vector<8x16xbf16>, vector<128x16xf32> -> vector<128x16xf32>
    %53 = arith.addf %46, %52 : vector<128x16xf32>
    %54 = vector.extract_strided_slice %12 {offsets = [0, 2, 0, 0], sizes = [2, 8, 8, 8], strides = [1, 1, 1, 1]} : vector<2x10x10x8xf32> to vector<2x8x8x8xf32>
    %55 = vector.shape_cast %54 : vector<2x8x8x8xf32> to vector<128x8xf32>
    %56 = arith.truncf %55 : vector<128x8xf32> to vector<128x8xbf16>
    %c6 = arith.constant 6 : index
    %c0_38 = arith.constant 0 : index
    %c0_39 = arith.constant 0 : index
    %57 = vector.load %arg1[%c6, %c0_38, %c0_39] : memref<9x8x16xbf16, #tpu.memory_space<vmem>>, vector<1x8x16xbf16>
    %58 = vector.shape_cast %57 : vector<1x8x16xbf16> to vector<8x16xbf16>
    %cst_40 = arith.constant dense<0.000000e+00> : vector<128x16xf32>
    %59 = tpu.matmul %56, %58, %cst_40 {dimension_numbers = #tpu.dot_dimension_numbers<[1], [0], [0], [1], [0, 0, 1, 1], [], []>} : vector<128x8xbf16>, vector<8x16xbf16>, vector<128x16xf32> -> vector<128x16xf32>
    %60 = arith.addf %53, %59 : vector<128x16xf32>
    %61 = vector.extract_strided_slice %12 {offsets = [0, 2, 1, 0], sizes = [2, 8, 8, 8], strides = [1, 1, 1, 1]} : vector<2x10x10x8xf32> to vector<2x8x8x8xf32>
    %62 = vector.shape_cast %61 : vector<2x8x8x8xf32> to vector<128x8xf32>
    %63 = arith.truncf %62 : vector<128x8xf32> to vector<128x8xbf16>
    %c7 = arith.constant 7 : index
    %c0_41 = arith.constant 0 : index
    %c0_42 = arith.constant 0 : index
    %64 = vector.load %arg1[%c7, %c0_41, %c0_42] : memref<9x8x16xbf16, #tpu.memory_space<vmem>>, vector<1x8x16xbf16>
    %65 = vector.shape_cast %64 : vector<1x8x16xbf16> to vector<8x16xbf16>
    %cst_43 = arith.constant dense<0.000000e+00> : vector<128x16xf32>
    %66 = tpu.matmul %63, %65, %cst_43 {dimension_numbers = #tpu.dot_dimension_numbers<[1], [0], [0], [1], [0, 0, 1, 1], [], []>} : vector<128x8xbf16>, vector<8x16xbf16>, vector<128x16xf32> -> vector<128x16xf32>
    %67 = arith.addf %60, %66 : vector<128x16xf32>
    %68 = vector.extract_strided_slice %12 {offsets = [0, 2, 2, 0], sizes = [2, 8, 8, 8], strides = [1, 1, 1, 1]} : vector<2x10x10x8xf32> to vector<2x8x8x8xf32>
    %69 = vector.shape_cast %68 : vector<2x8x8x8xf32> to vector<128x8xf32>
    %70 = arith.truncf %69 : vector<128x8xf32> to vector<128x8xbf16>
    %c8 = arith.constant 8 : index
    %c0_44 = arith.constant 0 : index
    %c0_45 = arith.constant 0 : index
    %71 = vector.load %arg1[%c8, %c0_44, %c0_45] : memref<9x8x16xbf16, #tpu.memory_space<vmem>>, vector<1x8x16xbf16>
    %72 = vector.shape_cast %71 : vector<1x8x16xbf16> to vector<8x16xbf16>
    %cst_46 = arith.constant dense<0.000000e+00> : vector<128x16xf32>
    %73 = tpu.matmul %70, %72, %cst_46 {dimension_numbers = #tpu.dot_dimension_numbers<[1], [0], [0], [1], [0, 0, 1, 1], [], []>} : vector<128x8xbf16>, vector<8x16xbf16>, vector<128x16xf32> -> vector<128x16xf32>
    %74 = arith.addf %67, %73 : vector<128x16xf32>
    %c0_47 = arith.constant 0 : index
    %c0_48 = arith.constant 0 : index
    %75 = vector.load %arg2[%c0_47, %c0_48] : memref<1x16xf32, #tpu.memory_space<vmem>>, vector<1x16xf32>
    %76 = vector.broadcast %75 : vector<1x16xf32> to vector<128x16xf32>
    %77 = arith.addf %74, %76 : vector<128x16xf32>
    %c0_49 = arith.constant 0 : index
    %c0_50 = arith.constant 0 : index
    %c0_51 = arith.constant 0 : index
    %c0_52 = arith.constant 0 : index
    %78 = vector.load %arg3[%c0_49, %c0_50, %c0_51, %c0_52] : memref<2x2x1x8xf32, #tpu.memory_space<vmem>>, vector<2x2x1x8xf32>
    %c0_53 = arith.constant 0 : index
    %c0_54 = arith.constant 0 : index
    %c0_55 = arith.constant 0 : index
    %79 = vector.load %arg4[%c0_53, %c0_54, %c0_55] : memref<2x1x8xf32, #tpu.memory_space<vmem>>, vector<2x1x8xf32>
    %80 = vector.extract_strided_slice %77 {offsets = [0, 0], sizes = [128, 8], strides = [1, 1]} : vector<128x16xf32> to vector<128x8xf32>
    %81 = vector.extract_strided_slice %77 {offsets = [0, 8], sizes = [128, 8], strides = [1, 1]} : vector<128x16xf32> to vector<128x8xf32>
    %cst_56 = arith.constant dense<0.000000e+00> : vector<8xf32>
    %82 = vector.multi_reduction <add>, %80, %cst_56 [0] : vector<128x8xf32> to vector<8xf32>
    %83 = vector.shape_cast %82 : vector<8xf32> to vector<1x8xf32>
    %cst_57 = arith.constant 7.812500e-03 : f32
    %84 = vector.broadcast %cst_57 : f32 to vector<1x8xf32>
    %85 = arith.mulf %83, %84 : vector<1x8xf32>
    %cst_58 = arith.constant dense<0.000000e+00> : vector<8xf32>
    %86 = vector.multi_reduction <add>, %81, %cst_58 [0] : vector<128x8xf32> to vector<8xf32>
    %87 = vector.shape_cast %86 : vector<8xf32> to vector<1x8xf32>
    %cst_59 = arith.constant 7.812500e-03 : f32
    %88 = vector.broadcast %cst_59 : f32 to vector<1x8xf32>
    %89 = arith.mulf %87, %88 : vector<1x8xf32>
    %90 = vector.broadcast %85 : vector<1x8xf32> to vector<128x8xf32>
    %91 = arith.subf %80, %90 : vector<128x8xf32>
    %92 = vector.broadcast %89 : vector<1x8xf32> to vector<128x8xf32>
    %93 = arith.subf %81, %92 : vector<128x8xf32>
    %94 = arith.mulf %91, %91 : vector<128x8xf32>
    %cst_60 = arith.constant dense<0.000000e+00> : vector<8xf32>
    %95 = vector.multi_reduction <add>, %94, %cst_60 [0] : vector<128x8xf32> to vector<8xf32>
    %96 = vector.shape_cast %95 : vector<8xf32> to vector<1x8xf32>
    %cst_61 = arith.constant 7.812500e-03 : f32
    %97 = vector.broadcast %cst_61 : f32 to vector<1x8xf32>
    %98 = arith.mulf %96, %97 : vector<1x8xf32>
    %cst_62 = arith.constant 9.99999974E-6 : f32
    %99 = vector.broadcast %cst_62 : f32 to vector<1x8xf32>
    %100 = arith.addf %98, %99 : vector<1x8xf32>
    %101 = arith.mulf %93, %93 : vector<128x8xf32>
    %cst_63 = arith.constant dense<0.000000e+00> : vector<8xf32>
    %102 = vector.multi_reduction <add>, %101, %cst_63 [0] : vector<128x8xf32> to vector<8xf32>
    %103 = vector.shape_cast %102 : vector<8xf32> to vector<1x8xf32>
    %cst_64 = arith.constant 7.812500e-03 : f32
    %104 = vector.broadcast %cst_64 : f32 to vector<1x8xf32>
    %105 = arith.mulf %103, %104 : vector<1x8xf32>
    %cst_65 = arith.constant 9.99999974E-6 : f32
    %106 = vector.broadcast %cst_65 : f32 to vector<1x8xf32>
    %107 = arith.addf %105, %106 : vector<1x8xf32>
    %108 = arith.mulf %91, %93 : vector<128x8xf32>
    %cst_66 = arith.constant dense<0.000000e+00> : vector<8xf32>
    %109 = vector.multi_reduction <add>, %108, %cst_66 [0] : vector<128x8xf32> to vector<8xf32>
    %110 = vector.shape_cast %109 : vector<8xf32> to vector<1x8xf32>
    %cst_67 = arith.constant 7.812500e-03 : f32
    %111 = vector.broadcast %cst_67 : f32 to vector<1x8xf32>
    %112 = arith.mulf %110, %111 : vector<1x8xf32>
    %113 = arith.mulf %100, %107 : vector<1x8xf32>
    %114 = arith.mulf %112, %112 : vector<1x8xf32>
    %115 = arith.subf %113, %114 : vector<1x8xf32>
    %116 = math.sqrt %115 : vector<1x8xf32>
    %cst_68 = arith.constant 2.000000e+00 : f32
    %117 = vector.broadcast %cst_68 : f32 to vector<1x8xf32>
    %118 = arith.mulf %117, %116 : vector<1x8xf32>
    %119 = arith.addf %100, %118 : vector<1x8xf32>
    %120 = arith.addf %119, %107 : vector<1x8xf32>
    %121 = math.sqrt %120 : vector<1x8xf32>
    %122 = arith.mulf %116, %121 : vector<1x8xf32>
    %123 = tpu.reciprocal %122 {approx = true} : vector<1x8xf32> -> vector<1x8xf32>
    %124 = arith.addf %107, %116 : vector<1x8xf32>
    %125 = arith.mulf %124, %123 : vector<1x8xf32>
    %cst_69 = arith.constant 0.000000e+00 : f32
    %126 = vector.broadcast %cst_69 : f32 to vector<1x8xf32>
    %127 = arith.subf %126, %112 : vector<1x8xf32>
    %128 = arith.mulf %127, %123 : vector<1x8xf32>
    %129 = arith.addf %100, %116 : vector<1x8xf32>
    %130 = arith.mulf %129, %123 : vector<1x8xf32>
    %131 = vector.broadcast %125 : vector<1x8xf32> to vector<128x8xf32>
    %132 = arith.mulf %131, %91 : vector<128x8xf32>
    %133 = vector.broadcast %128 : vector<1x8xf32> to vector<128x8xf32>
    %134 = arith.mulf %133, %93 : vector<128x8xf32>
    %135 = arith.addf %132, %134 : vector<128x8xf32>
    %136 = vector.broadcast %128 : vector<1x8xf32> to vector<128x8xf32>
    %137 = arith.mulf %136, %91 : vector<128x8xf32>
    %138 = vector.broadcast %130 : vector<1x8xf32> to vector<128x8xf32>
    %139 = arith.mulf %138, %93 : vector<128x8xf32>
    %140 = arith.addf %137, %139 : vector<128x8xf32>
    %141 = vector.extract_strided_slice %78 {offsets = [0, 0, 0, 0], sizes = [1, 1, 1, 8], strides = [1, 1, 1, 1]} : vector<2x2x1x8xf32> to vector<1x1x1x8xf32>
    %142 = vector.shape_cast %141 : vector<1x1x1x8xf32> to vector<1x8xf32>
    %143 = vector.broadcast %142 : vector<1x8xf32> to vector<128x8xf32>
    %144 = arith.mulf %135, %143 : vector<128x8xf32>
    %145 = vector.extract_strided_slice %78 {offsets = [0, 1, 0, 0], sizes = [1, 1, 1, 8], strides = [1, 1, 1, 1]} : vector<2x2x1x8xf32> to vector<1x1x1x8xf32>
    %146 = vector.shape_cast %145 : vector<1x1x1x8xf32> to vector<1x8xf32>
    %147 = vector.broadcast %146 : vector<1x8xf32> to vector<128x8xf32>
    %148 = arith.mulf %140, %147 : vector<128x8xf32>
    %149 = arith.addf %144, %148 : vector<128x8xf32>
    %150 = vector.extract_strided_slice %79 {offsets = [0, 0, 0], sizes = [1, 1, 8], strides = [1, 1, 1]} : vector<2x1x8xf32> to vector<1x1x8xf32>
    %151 = vector.shape_cast %150 : vector<1x1x8xf32> to vector<1x8xf32>
    %152 = vector.broadcast %151 : vector<1x8xf32> to vector<128x8xf32>
    %153 = arith.addf %149, %152 : vector<128x8xf32>
    %154 = vector.extract_strided_slice %78 {offsets = [1, 0, 0, 0], sizes = [1, 1, 1, 8], strides = [1, 1, 1, 1]} : vector<2x2x1x8xf32> to vector<1x1x1x8xf32>
    %155 = vector.shape_cast %154 : vector<1x1x1x8xf32> to vector<1x8xf32>
    %156 = vector.broadcast %155 : vector<1x8xf32> to vector<128x8xf32>
    %157 = arith.mulf %135, %156 : vector<128x8xf32>
    %158 = vector.extract_strided_slice %78 {offsets = [1, 1, 0, 0], sizes = [1, 1, 1, 8], strides = [1, 1, 1, 1]} : vector<2x2x1x8xf32> to vector<1x1x1x8xf32>
    %159 = vector.shape_cast %158 : vector<1x1x1x8xf32> to vector<1x8xf32>
    %160 = vector.broadcast %159 : vector<1x8xf32> to vector<128x8xf32>
    %161 = arith.mulf %140, %160 : vector<128x8xf32>
    %162 = arith.addf %157, %161 : vector<128x8xf32>
    %163 = vector.extract_strided_slice %79 {offsets = [1, 0, 0], sizes = [1, 1, 8], strides = [1, 1, 1]} : vector<2x1x8xf32> to vector<1x1x8xf32>
    %164 = vector.shape_cast %163 : vector<1x1x8xf32> to vector<1x8xf32>
    %165 = vector.broadcast %164 : vector<1x8xf32> to vector<128x8xf32>
    %166 = arith.addf %162, %165 : vector<128x8xf32>
    %cst_70 = arith.constant 0.000000e+00 : f32
    %167 = vector.broadcast %cst_70 : f32 to vector<128x8xf32>
    %168 = arith.maximumf %153, %167 : vector<128x8xf32>
    %cst_71 = arith.constant 0.000000e+00 : f32
    %169 = vector.broadcast %cst_71 : f32 to vector<128x8xf32>
    %170 = arith.maximumf %166, %169 : vector<128x8xf32>
    %171 = tpu.concatenate %168, %170 in 1 : vector<128x8xf32>, vector<128x8xf32> -> vector<128x16xf32>
    %cst_72 = arith.constant 0.000000e+00 : f32
    %172 = vector.broadcast %cst_72 : f32 to vector<2x1x10x16xf32>
    %cst_73 = arith.constant 0.000000e+00 : f32
    %173 = vector.broadcast %cst_73 : f32 to vector<2x10x1x16xf32>
    %c0_74 = arith.constant 0 : index
    %c0_75 = arith.constant 0 : index
    %c0_76 = arith.constant 0 : index
    %c0_77 = arith.constant 0 : index
    %174 = vector.load %arg10[%c0_74, %c0_75, %c0_76, %c0_77] : memref<2x10x10x16xf32, #tpu.memory_space<vmem>>, vector<2x1x10x16xf32>
    tpu.vector_store %arg10[%c0_74, %c0_75, %c0_76, %c0_77], %172 {strides = array<i32>} : memref<2x10x10x16xf32, #tpu.memory_space<vmem>>, vector<2x1x10x16xf32>,
    %c0_78 = arith.constant 0 : index
    %c9 = arith.constant 9 : index
    %c0_79 = arith.constant 0 : index
    %c0_80 = arith.constant 0 : index
    %175 = vector.load %arg10[%c0_78, %c9, %c0_79, %c0_80] : memref<2x10x10x16xf32, #tpu.memory_space<vmem>>, vector<2x1x10x16xf32>
    tpu.vector_store %arg10[%c0_78, %c9, %c0_79, %c0_80], %172 {strides = array<i32>} : memref<2x10x10x16xf32, #tpu.memory_space<vmem>>, vector<2x1x10x16xf32>,
    %c0_81 = arith.constant 0 : index
    %c0_82 = arith.constant 0 : index
    %c0_83 = arith.constant 0 : index
    %c0_84 = arith.constant 0 : index
    %176 = vector.load %arg10[%c0_81, %c0_82, %c0_83, %c0_84] : memref<2x10x10x16xf32, #tpu.memory_space<vmem>>, vector<2x10x1x16xf32>
    tpu.vector_store %arg10[%c0_81, %c0_82, %c0_83, %c0_84], %173 {strides = array<i32>} : memref<2x10x10x16xf32, #tpu.memory_space<vmem>>, vector<2x10x1x16xf32>,
    %c0_85 = arith.constant 0 : index
    %c0_86 = arith.constant 0 : index
    %c9_87 = arith.constant 9 : index
    %c0_88 = arith.constant 0 : index
    %177 = vector.load %arg10[%c0_85, %c0_86, %c9_87, %c0_88] : memref<2x10x10x16xf32, #tpu.memory_space<vmem>>, vector<2x10x1x16xf32>
    tpu.vector_store %arg10[%c0_85, %c0_86, %c9_87, %c0_88], %173 {strides = array<i32>} : memref<2x10x10x16xf32, #tpu.memory_space<vmem>>, vector<2x10x1x16xf32>,
    %178 = vector.shape_cast %171 : vector<128x16xf32> to vector<2x8x8x16xf32>
    %c0_89 = arith.constant 0 : index
    %c1_90 = arith.constant 1 : index
    %c1_91 = arith.constant 1 : index
    %c0_92 = arith.constant 0 : index
    %179 = vector.load %arg10[%c0_89, %c1_90, %c1_91, %c0_92] : memref<2x10x10x16xf32, #tpu.memory_space<vmem>>, vector<2x8x8x16xf32>
    tpu.vector_store %arg10[%c0_89, %c1_90, %c1_91, %c0_92], %178 {strides = array<i32>} : memref<2x10x10x16xf32, #tpu.memory_space<vmem>>, vector<2x8x8x16xf32>,
    %c0_93 = arith.constant 0 : index
    %c0_94 = arith.constant 0 : index
    %c0_95 = arith.constant 0 : index
    %c0_96 = arith.constant 0 : index
    %180 = vector.load %arg10[%c0_93, %c0_94, %c0_95, %c0_96] : memref<2x10x10x16xf32, #tpu.memory_space<vmem>>, vector<2x10x10x16xf32>
    %181 = vector.extract_strided_slice %180 {offsets = [0, 0, 0, 0], sizes = [2, 8, 8, 16], strides = [1, 1, 1, 1]} : vector<2x10x10x16xf32> to vector<2x8x8x16xf32>
    %182 = vector.shape_cast %181 : vector<2x8x8x16xf32> to vector<128x16xf32>
    %183 = arith.truncf %182 : vector<128x16xf32> to vector<128x16xbf16>
    %c0_97 = arith.constant 0 : index
    %c0_98 = arith.constant 0 : index
    %c0_99 = arith.constant 0 : index
    %184 = vector.load %arg5[%c0_97, %c0_98, %c0_99] : memref<9x16x16xbf16, #tpu.memory_space<vmem>>, vector<1x16x16xbf16>
    %185 = vector.shape_cast %184 : vector<1x16x16xbf16> to vector<16x16xbf16>
    %cst_100 = arith.constant dense<0.000000e+00> : vector<128x16xf32>
    %186 = tpu.matmul %183, %185, %cst_100 {dimension_numbers = #tpu.dot_dimension_numbers<[1], [0], [0], [1], [0, 0, 1, 1], [], []>} : vector<128x16xbf16>, vector<16x16xbf16>, vector<128x16xf32> -> vector<128x16xf32>
    %187 = vector.extract_strided_slice %180 {offsets = [0, 0, 1, 0], sizes = [2, 8, 8, 16], strides = [1, 1, 1, 1]} : vector<2x10x10x16xf32> to vector<2x8x8x16xf32>
    %188 = vector.shape_cast %187 : vector<2x8x8x16xf32> to vector<128x16xf32>
    %189 = arith.truncf %188 : vector<128x16xf32> to vector<128x16xbf16>
    %c1_101 = arith.constant 1 : index
    %c0_102 = arith.constant 0 : index
    %c0_103 = arith.constant 0 : index
    %190 = vector.load %arg5[%c1_101, %c0_102, %c0_103] : memref<9x16x16xbf16, #tpu.memory_space<vmem>>, vector<1x16x16xbf16>
    %191 = vector.shape_cast %190 : vector<1x16x16xbf16> to vector<16x16xbf16>
    %cst_104 = arith.constant dense<0.000000e+00> : vector<128x16xf32>
    %192 = tpu.matmul %189, %191, %cst_104 {dimension_numbers = #tpu.dot_dimension_numbers<[1], [0], [0], [1], [0, 0, 1, 1], [], []>} : vector<128x16xbf16>, vector<16x16xbf16>, vector<128x16xf32> -> vector<128x16xf32>
    %193 = arith.addf %186, %192 : vector<128x16xf32>
    %194 = vector.extract_strided_slice %180 {offsets = [0, 0, 2, 0], sizes = [2, 8, 8, 16], strides = [1, 1, 1, 1]} : vector<2x10x10x16xf32> to vector<2x8x8x16xf32>
    %195 = vector.shape_cast %194 : vector<2x8x8x16xf32> to vector<128x16xf32>
    %196 = arith.truncf %195 : vector<128x16xf32> to vector<128x16xbf16>
    %c2_105 = arith.constant 2 : index
    %c0_106 = arith.constant 0 : index
    %c0_107 = arith.constant 0 : index
    %197 = vector.load %arg5[%c2_105, %c0_106, %c0_107] : memref<9x16x16xbf16, #tpu.memory_space<vmem>>, vector<1x16x16xbf16>
    %198 = vector.shape_cast %197 : vector<1x16x16xbf16> to vector<16x16xbf16>
    %cst_108 = arith.constant dense<0.000000e+00> : vector<128x16xf32>
    %199 = tpu.matmul %196, %198, %cst_108 {dimension_numbers = #tpu.dot_dimension_numbers<[1], [0], [0], [1], [0, 0, 1, 1], [], []>} : vector<128x16xbf16>, vector<16x16xbf16>, vector<128x16xf32> -> vector<128x16xf32>
    %200 = arith.addf %193, %199 : vector<128x16xf32>
    %201 = vector.extract_strided_slice %180 {offsets = [0, 1, 0, 0], sizes = [2, 8, 8, 16], strides = [1, 1, 1, 1]} : vector<2x10x10x16xf32> to vector<2x8x8x16xf32>
    %202 = vector.shape_cast %201 : vector<2x8x8x16xf32> to vector<128x16xf32>
    %203 = arith.truncf %202 : vector<128x16xf32> to vector<128x16xbf16>
    %c3_109 = arith.constant 3 : index
    %c0_110 = arith.constant 0 : index
    %c0_111 = arith.constant 0 : index
    %204 = vector.load %arg5[%c3_109, %c0_110, %c0_111] : memref<9x16x16xbf16, #tpu.memory_space<vmem>>, vector<1x16x16xbf16>
    %205 = vector.shape_cast %204 : vector<1x16x16xbf16> to vector<16x16xbf16>
    %cst_112 = arith.constant dense<0.000000e+00> : vector<128x16xf32>
    %206 = tpu.matmul %203, %205, %cst_112 {dimension_numbers = #tpu.dot_dimension_numbers<[1], [0], [0], [1], [0, 0, 1, 1], [], []>} : vector<128x16xbf16>, vector<16x16xbf16>, vector<128x16xf32> -> vector<128x16xf32>
    %207 = arith.addf %200, %206 : vector<128x16xf32>
    %208 = vector.extract_strided_slice %180 {offsets = [0, 1, 1, 0], sizes = [2, 8, 8, 16], strides = [1, 1, 1, 1]} : vector<2x10x10x16xf32> to vector<2x8x8x16xf32>
    %209 = vector.shape_cast %208 : vector<2x8x8x16xf32> to vector<128x16xf32>
    %210 = arith.truncf %209 : vector<128x16xf32> to vector<128x16xbf16>
    %c4_113 = arith.constant 4 : index
    %c0_114 = arith.constant 0 : index
    %c0_115 = arith.constant 0 : index
    %211 = vector.load %arg5[%c4_113, %c0_114, %c0_115] : memref<9x16x16xbf16, #tpu.memory_space<vmem>>, vector<1x16x16xbf16>
    %212 = vector.shape_cast %211 : vector<1x16x16xbf16> to vector<16x16xbf16>
    %cst_116 = arith.constant dense<0.000000e+00> : vector<128x16xf32>
    %213 = tpu.matmul %210, %212, %cst_116 {dimension_numbers = #tpu.dot_dimension_numbers<[1], [0], [0], [1], [0, 0, 1, 1], [], []>} : vector<128x16xbf16>, vector<16x16xbf16>, vector<128x16xf32> -> vector<128x16xf32>
    %214 = arith.addf %207, %213 : vector<128x16xf32>
    %215 = vector.extract_strided_slice %180 {offsets = [0, 1, 2, 0], sizes = [2, 8, 8, 16], strides = [1, 1, 1, 1]} : vector<2x10x10x16xf32> to vector<2x8x8x16xf32>
    %216 = vector.shape_cast %215 : vector<2x8x8x16xf32> to vector<128x16xf32>
    %217 = arith.truncf %216 : vector<128x16xf32> to vector<128x16xbf16>
    %c5_117 = arith.constant 5 : index
    %c0_118 = arith.constant 0 : index
    %c0_119 = arith.constant 0 : index
    %218 = vector.load %arg5[%c5_117, %c0_118, %c0_119] : memref<9x16x16xbf16, #tpu.memory_space<vmem>>, vector<1x16x16xbf16>
    %219 = vector.shape_cast %218 : vector<1x16x16xbf16> to vector<16x16xbf16>
    %cst_120 = arith.constant dense<0.000000e+00> : vector<128x16xf32>
    %220 = tpu.matmul %217, %219, %cst_120 {dimension_numbers = #tpu.dot_dimension_numbers<[1], [0], [0], [1], [0, 0, 1, 1], [], []>} : vector<128x16xbf16>, vector<16x16xbf16>, vector<128x16xf32> -> vector<128x16xf32>
    %221 = arith.addf %214, %220 : vector<128x16xf32>
    %222 = vector.extract_strided_slice %180 {offsets = [0, 2, 0, 0], sizes = [2, 8, 8, 16], strides = [1, 1, 1, 1]} : vector<2x10x10x16xf32> to vector<2x8x8x16xf32>
    %223 = vector.shape_cast %222 : vector<2x8x8x16xf32> to vector<128x16xf32>
    %224 = arith.truncf %223 : vector<128x16xf32> to vector<128x16xbf16>
    %c6_121 = arith.constant 6 : index
    %c0_122 = arith.constant 0 : index
    %c0_123 = arith.constant 0 : index
    %225 = vector.load %arg5[%c6_121, %c0_122, %c0_123] : memref<9x16x16xbf16, #tpu.memory_space<vmem>>, vector<1x16x16xbf16>
    %226 = vector.shape_cast %225 : vector<1x16x16xbf16> to vector<16x16xbf16>
    %cst_124 = arith.constant dense<0.000000e+00> : vector<128x16xf32>
    %227 = tpu.matmul %224, %226, %cst_124 {dimension_numbers = #tpu.dot_dimension_numbers<[1], [0], [0], [1], [0, 0, 1, 1], [], []>} : vector<128x16xbf16>, vector<16x16xbf16>, vector<128x16xf32> -> vector<128x16xf32>
    %228 = arith.addf %221, %227 : vector<128x16xf32>
    %229 = vector.extract_strided_slice %180 {offsets = [0, 2, 1, 0], sizes = [2, 8, 8, 16], strides = [1, 1, 1, 1]} : vector<2x10x10x16xf32> to vector<2x8x8x16xf32>
    %230 = vector.shape_cast %229 : vector<2x8x8x16xf32> to vector<128x16xf32>
    %231 = arith.truncf %230 : vector<128x16xf32> to vector<128x16xbf16>
    %c7_125 = arith.constant 7 : index
    %c0_126 = arith.constant 0 : index
    %c0_127 = arith.constant 0 : index
    %232 = vector.load %arg5[%c7_125, %c0_126, %c0_127] : memref<9x16x16xbf16, #tpu.memory_space<vmem>>, vector<1x16x16xbf16>
    %233 = vector.shape_cast %232 : vector<1x16x16xbf16> to vector<16x16xbf16>
    %cst_128 = arith.constant dense<0.000000e+00> : vector<128x16xf32>
    %234 = tpu.matmul %231, %233, %cst_128 {dimension_numbers = #tpu.dot_dimension_numbers<[1], [0], [0], [1], [0, 0, 1, 1], [], []>} : vector<128x16xbf16>, vector<16x16xbf16>, vector<128x16xf32> -> vector<128x16xf32>
    %235 = arith.addf %228, %234 : vector<128x16xf32>
    %236 = vector.extract_strided_slice %180 {offsets = [0, 2, 2, 0], sizes = [2, 8, 8, 16], strides = [1, 1, 1, 1]} : vector<2x10x10x16xf32> to vector<2x8x8x16xf32>
    %237 = vector.shape_cast %236 : vector<2x8x8x16xf32> to vector<128x16xf32>
    %238 = arith.truncf %237 : vector<128x16xf32> to vector<128x16xbf16>
    %c8_129 = arith.constant 8 : index
    %c0_130 = arith.constant 0 : index
    %c0_131 = arith.constant 0 : index
    %239 = vector.load %arg5[%c8_129, %c0_130, %c0_131] : memref<9x16x16xbf16, #tpu.memory_space<vmem>>, vector<1x16x16xbf16>
    %240 = vector.shape_cast %239 : vector<1x16x16xbf16> to vector<16x16xbf16>
    %cst_132 = arith.constant dense<0.000000e+00> : vector<128x16xf32>
    %241 = tpu.matmul %238, %240, %cst_132 {dimension_numbers = #tpu.dot_dimension_numbers<[1], [0], [0], [1], [0, 0, 1, 1], [], []>} : vector<128x16xbf16>, vector<16x16xbf16>, vector<128x16xf32> -> vector<128x16xf32>
    %242 = arith.addf %235, %241 : vector<128x16xf32>
    %c0_133 = arith.constant 0 : index
    %c0_134 = arith.constant 0 : index
    %243 = vector.load %arg6[%c0_133, %c0_134] : memref<1x16xf32, #tpu.memory_space<vmem>>, vector<1x16xf32>
    %244 = vector.broadcast %243 : vector<1x16xf32> to vector<128x16xf32>
    %245 = arith.addf %242, %244 : vector<128x16xf32>
    %c0_135 = arith.constant 0 : index
    %c0_136 = arith.constant 0 : index
    %c0_137 = arith.constant 0 : index
    %c0_138 = arith.constant 0 : index
    %246 = vector.load %arg7[%c0_135, %c0_136, %c0_137, %c0_138] : memref<2x2x1x8xf32, #tpu.memory_space<vmem>>, vector<2x2x1x8xf32>
    %c0_139 = arith.constant 0 : index
    %c0_140 = arith.constant 0 : index
    %c0_141 = arith.constant 0 : index
    %247 = vector.load %arg8[%c0_139, %c0_140, %c0_141] : memref<2x1x8xf32, #tpu.memory_space<vmem>>, vector<2x1x8xf32>
    %248 = vector.extract_strided_slice %245 {offsets = [0, 0], sizes = [128, 8], strides = [1, 1]} : vector<128x16xf32> to vector<128x8xf32>
    %249 = vector.extract_strided_slice %245 {offsets = [0, 8], sizes = [128, 8], strides = [1, 1]} : vector<128x16xf32> to vector<128x8xf32>
    %cst_142 = arith.constant dense<0.000000e+00> : vector<8xf32>
    %250 = vector.multi_reduction <add>, %248, %cst_142 [0] : vector<128x8xf32> to vector<8xf32>
    %251 = vector.shape_cast %250 : vector<8xf32> to vector<1x8xf32>
    %cst_143 = arith.constant 7.812500e-03 : f32
    %252 = vector.broadcast %cst_143 : f32 to vector<1x8xf32>
    %253 = arith.mulf %251, %252 : vector<1x8xf32>
    %cst_144 = arith.constant dense<0.000000e+00> : vector<8xf32>
    %254 = vector.multi_reduction <add>, %249, %cst_144 [0] : vector<128x8xf32> to vector<8xf32>
    %255 = vector.shape_cast %254 : vector<8xf32> to vector<1x8xf32>
    %cst_145 = arith.constant 7.812500e-03 : f32
    %256 = vector.broadcast %cst_145 : f32 to vector<1x8xf32>
    %257 = arith.mulf %255, %256 : vector<1x8xf32>
    %258 = vector.broadcast %253 : vector<1x8xf32> to vector<128x8xf32>
    %259 = arith.subf %248, %258 : vector<128x8xf32>
    %260 = vector.broadcast %257 : vector<1x8xf32> to vector<128x8xf32>
    %261 = arith.subf %249, %260 : vector<128x8xf32>
    %262 = arith.mulf %259, %259 : vector<128x8xf32>
    %cst_146 = arith.constant dense<0.000000e+00> : vector<8xf32>
    %263 = vector.multi_reduction <add>, %262, %cst_146 [0] : vector<128x8xf32> to vector<8xf32>
    %264 = vector.shape_cast %263 : vector<8xf32> to vector<1x8xf32>
    %cst_147 = arith.constant 7.812500e-03 : f32
    %265 = vector.broadcast %cst_147 : f32 to vector<1x8xf32>
    %266 = arith.mulf %264, %265 : vector<1x8xf32>
    %cst_148 = arith.constant 9.99999974E-6 : f32
    %267 = vector.broadcast %cst_148 : f32 to vector<1x8xf32>
    %268 = arith.addf %266, %267 : vector<1x8xf32>
    %269 = arith.mulf %261, %261 : vector<128x8xf32>
    %cst_149 = arith.constant dense<0.000000e+00> : vector<8xf32>
    %270 = vector.multi_reduction <add>, %269, %cst_149 [0] : vector<128x8xf32> to vector<8xf32>
    %271 = vector.shape_cast %270 : vector<8xf32> to vector<1x8xf32>
    %cst_150 = arith.constant 7.812500e-03 : f32
    %272 = vector.broadcast %cst_150 : f32 to vector<1x8xf32>
    %273 = arith.mulf %271, %272 : vector<1x8xf32>
    %cst_151 = arith.constant 9.99999974E-6 : f32
    %274 = vector.broadcast %cst_151 : f32 to vector<1x8xf32>
    %275 = arith.addf %273, %274 : vector<1x8xf32>
    %276 = arith.mulf %259, %261 : vector<128x8xf32>
    %cst_152 = arith.constant dense<0.000000e+00> : vector<8xf32>
    %277 = vector.multi_reduction <add>, %276, %cst_152 [0] : vector<128x8xf32> to vector<8xf32>
    %278 = vector.shape_cast %277 : vector<8xf32> to vector<1x8xf32>
    %cst_153 = arith.constant 7.812500e-03 : f32
    %279 = vector.broadcast %cst_153 : f32 to vector<1x8xf32>
    %280 = arith.mulf %278, %279 : vector<1x8xf32>
    %281 = arith.mulf %268, %275 : vector<1x8xf32>
    %282 = arith.mulf %280, %280 : vector<1x8xf32>
    %283 = arith.subf %281, %282 : vector<1x8xf32>
    %284 = math.sqrt %283 : vector<1x8xf32>
    %cst_154 = arith.constant 2.000000e+00 : f32
    %285 = vector.broadcast %cst_154 : f32 to vector<1x8xf32>
    %286 = arith.mulf %285, %284 : vector<1x8xf32>
    %287 = arith.addf %268, %286 : vector<1x8xf32>
    %288 = arith.addf %287, %275 : vector<1x8xf32>
    %289 = math.sqrt %288 : vector<1x8xf32>
    %290 = arith.mulf %284, %289 : vector<1x8xf32>
    %291 = tpu.reciprocal %290 {approx = true} : vector<1x8xf32> -> vector<1x8xf32>
    %292 = arith.addf %275, %284 : vector<1x8xf32>
    %293 = arith.mulf %292, %291 : vector<1x8xf32>
    %cst_155 = arith.constant 0.000000e+00 : f32
    %294 = vector.broadcast %cst_155 : f32 to vector<1x8xf32>
    %295 = arith.subf %294, %280 : vector<1x8xf32>
    %296 = arith.mulf %295, %291 : vector<1x8xf32>
    %297 = arith.addf %268, %284 : vector<1x8xf32>
    %298 = arith.mulf %297, %291 : vector<1x8xf32>
    %299 = vector.broadcast %293 : vector<1x8xf32> to vector<128x8xf32>
    %300 = arith.mulf %299, %259 : vector<128x8xf32>
    %301 = vector.broadcast %296 : vector<1x8xf32> to vector<128x8xf32>
    %302 = arith.mulf %301, %261 : vector<128x8xf32>
    %303 = arith.addf %300, %302 : vector<128x8xf32>
    %304 = vector.broadcast %296 : vector<1x8xf32> to vector<128x8xf32>
    %305 = arith.mulf %304, %259 : vector<128x8xf32>
    %306 = vector.broadcast %298 : vector<1x8xf32> to vector<128x8xf32>
    %307 = arith.mulf %306, %261 : vector<128x8xf32>
    %308 = arith.addf %305, %307 : vector<128x8xf32>
    %309 = vector.extract_strided_slice %246 {offsets = [0, 0, 0, 0], sizes = [1, 1, 1, 8], strides = [1, 1, 1, 1]} : vector<2x2x1x8xf32> to vector<1x1x1x8xf32>
    %310 = vector.shape_cast %309 : vector<1x1x1x8xf32> to vector<1x8xf32>
    %311 = vector.broadcast %310 : vector<1x8xf32> to vector<128x8xf32>
    %312 = arith.mulf %303, %311 : vector<128x8xf32>
    %313 = vector.extract_strided_slice %246 {offsets = [0, 1, 0, 0], sizes = [1, 1, 1, 8], strides = [1, 1, 1, 1]} : vector<2x2x1x8xf32> to vector<1x1x1x8xf32>
    %314 = vector.shape_cast %313 : vector<1x1x1x8xf32> to vector<1x8xf32>
    %315 = vector.broadcast %314 : vector<1x8xf32> to vector<128x8xf32>
    %316 = arith.mulf %308, %315 : vector<128x8xf32>
    %317 = arith.addf %312, %316 : vector<128x8xf32>
    %318 = vector.extract_strided_slice %247 {offsets = [0, 0, 0], sizes = [1, 1, 8], strides = [1, 1, 1]} : vector<2x1x8xf32> to vector<1x1x8xf32>
    %319 = vector.shape_cast %318 : vector<1x1x8xf32> to vector<1x8xf32>
    %320 = vector.broadcast %319 : vector<1x8xf32> to vector<128x8xf32>
    %321 = arith.addf %317, %320 : vector<128x8xf32>
    %322 = vector.extract_strided_slice %246 {offsets = [1, 0, 0, 0], sizes = [1, 1, 1, 8], strides = [1, 1, 1, 1]} : vector<2x2x1x8xf32> to vector<1x1x1x8xf32>
    %323 = vector.shape_cast %322 : vector<1x1x1x8xf32> to vector<1x8xf32>
    %324 = vector.broadcast %323 : vector<1x8xf32> to vector<128x8xf32>
    %325 = arith.mulf %303, %324 : vector<128x8xf32>
    %326 = vector.extract_strided_slice %246 {offsets = [1, 1, 0, 0], sizes = [1, 1, 1, 8], strides = [1, 1, 1, 1]} : vector<2x2x1x8xf32> to vector<1x1x1x8xf32>
    %327 = vector.shape_cast %326 : vector<1x1x1x8xf32> to vector<1x8xf32>
    %328 = vector.broadcast %327 : vector<1x8xf32> to vector<128x8xf32>
    %329 = arith.mulf %308, %328 : vector<128x8xf32>
    %330 = arith.addf %325, %329 : vector<128x8xf32>
    %331 = vector.extract_strided_slice %247 {offsets = [1, 0, 0], sizes = [1, 1, 8], strides = [1, 1, 1]} : vector<2x1x8xf32> to vector<1x1x8xf32>
    %332 = vector.shape_cast %331 : vector<1x1x8xf32> to vector<1x8xf32>
    %333 = vector.broadcast %332 : vector<1x8xf32> to vector<128x8xf32>
    %334 = arith.addf %330, %333 : vector<128x8xf32>
    %cst_156 = arith.constant 0.000000e+00 : f32
    %335 = vector.broadcast %cst_156 : f32 to vector<128x8xf32>
    %336 = arith.maximumf %321, %335 : vector<128x8xf32>
    %cst_157 = arith.constant 0.000000e+00 : f32
    %337 = vector.broadcast %cst_157 : f32 to vector<128x8xf32>
    %338 = arith.maximumf %334, %337 : vector<128x8xf32>
    %339 = tpu.concatenate %336, %338 in 1 : vector<128x8xf32>, vector<128x8xf32> -> vector<128x16xf32>
    %340 = vector.shape_cast %339 : vector<128x16xf32> to vector<16x8x16xf32>
    %341 = vector.extract_strided_slice %340 {offsets = [0, 0, 0], sizes = [16, 1, 16], strides = [1, 1, 1]} : vector<16x8x16xf32> to vector<16x1x16xf32>
    %342 = vector.shape_cast %341 : vector<16x1x16xf32> to vector<16x16xf32>
    %343 = vector.extract_strided_slice %340 {offsets = [0, 1, 0], sizes = [16, 1, 16], strides = [1, 1, 1]} : vector<16x8x16xf32> to vector<16x1x16xf32>
    %344 = vector.shape_cast %343 : vector<16x1x16xf32> to vector<16x16xf32>
    %345 = vector.extract_strided_slice %340 {offsets = [0, 2, 0], sizes = [16, 1, 16], strides = [1, 1, 1]} : vector<16x8x16xf32> to vector<16x1x16xf32>
    %346 = vector.shape_cast %345 : vector<16x1x16xf32> to vector<16x16xf32>
    %347 = vector.extract_strided_slice %340 {offsets = [0, 3, 0], sizes = [16, 1, 16], strides = [1, 1, 1]} : vector<16x8x16xf32> to vector<16x1x16xf32>
    %348 = vector.shape_cast %347 : vector<16x1x16xf32> to vector<16x16xf32>
    %349 = vector.extract_strided_slice %340 {offsets = [0, 4, 0], sizes = [16, 1, 16], strides = [1, 1, 1]} : vector<16x8x16xf32> to vector<16x1x16xf32>
    %350 = vector.shape_cast %349 : vector<16x1x16xf32> to vector<16x16xf32>
    %351 = vector.extract_strided_slice %340 {offsets = [0, 5, 0], sizes = [16, 1, 16], strides = [1, 1, 1]} : vector<16x8x16xf32> to vector<16x1x16xf32>
    %352 = vector.shape_cast %351 : vector<16x1x16xf32> to vector<16x16xf32>
    %353 = vector.extract_strided_slice %340 {offsets = [0, 6, 0], sizes = [16, 1, 16], strides = [1, 1, 1]} : vector<16x8x16xf32> to vector<16x1x16xf32>
    %354 = vector.shape_cast %353 : vector<16x1x16xf32> to vector<16x16xf32>
    %355 = vector.extract_strided_slice %340 {offsets = [0, 7, 0], sizes = [16, 1, 16], strides = [1, 1, 1]} : vector<16x8x16xf32> to vector<16x1x16xf32>
    %356 = vector.shape_cast %355 : vector<16x1x16xf32> to vector<16x16xf32>
    %357 = tpu.concatenate %342, %344, %346, %348, %350, %352, %354, %356 in 1 : vector<16x16xf32>, vector<16x16xf32>, vector<16x16xf32>, vector<16x16xf32>, vector<16x16xf32>, vector<16x16xf32>, vector<16x16xf32>, vector<16x16xf32> -> vector<16x128xf32>
    %c0_158 = arith.constant 0 : index
    %c0_159 = arith.constant 0 : index
    %358 = vector.load %arg9[%c0_158, %c0_159] : memref<16x128xf32, #tpu.memory_space<vmem>>, vector<16x128xf32>
    tpu.vector_store %arg9[%c0_158, %c0_159], %357 {strides = array<i32>} : memref<16x128xf32, #tpu.memory_space<vmem>>, vector<16x128xf32>,
    return
  }
}

</mosaic_0001>

<llo_original>
// kernel: cplx_down_forward.1
$region0: #{cplx_down_forward.1}
  #allocation0 [shape = 'u32[]', space=smem, size = 0x4, offset = 0x4, fixed_abs, tag = 'smem constant byte address 0x4 - core index']
  #allocation1 [shape = 'u32[72,128]{1,0:T(1,128)}', space=vmem, size = 0x9000, scoped, tag = 'internal scratch']
  #allocation2 [shape = 'f32[2,10,10,16]{3,2,1,0:T(8,128)}', space=vmem, size = 0x28000, scoped, tag = 'scratch operand']
  %s0 = inlined_call_operand.vmem [shape: f32[4,2,10,10,8], index: 0, kind: input, shape index: {}]
  %s1 = inlined_call_operand.vmem [shape: bf16[9,8,16], index: 1, kind: input, shape index: {}]
  %s2 = inlined_call_operand.vmem [shape: f32[1,16], index: 2, kind: input, shape index: {}]
  %s3 = inlined_call_operand.vmem [shape: f32[2,2,1,8], index: 3, kind: input, shape index: {}]
  %s4 = inlined_call_operand.vmem [shape: f32[2,1,8], index: 4, kind: input, shape index: {}]
  %s5 = inlined_call_operand.vmem [shape: bf16[9,16,16], index: 5, kind: input, shape index: {}]
  %s6 = inlined_call_operand.vmem [shape: f32[1,16], index: 6, kind: input, shape index: {}]
  %s7 = inlined_call_operand.vmem [shape: f32[2,2,1,8], index: 7, kind: input, shape index: {}]
  %s8 = inlined_call_operand.vmem [shape: f32[2,1,8], index: 8, kind: input, shape index: {}]
  %s9 = inlined_call_operand.vmem [shape: f32[16,128], index: 9, kind: output, shape index: {}]
  %s10 = sld [smem:[#allocation0]]
  $region46: #{cplx_down_forward.1} parent=0
    _
  %s12 = ssub.s32 1, %s10
  %s13 = scalar_select 0, %s12, %s10
  // Predicated region
  $region2: #{cplx_down_forward.1} parent=0 // pred_check
    _
  $region3: #{cplx_down_forward.1} parent=0 // pred_check_branch
    %15 = sbr.rel (0) target = $region5
  $region4: #{cplx_down_forward.1} parent=0 // pred_region
    _
  $region5: #{cplx_down_forward.1} parent=0 // pred_fallthru
    _
  // Predicated region
  $region6: #{cplx_down_forward.1} parent=0 // pred_check
    _
  $region7: #{cplx_down_forward.1} parent=0 // pred_check_branch
    %17 = sbr.rel (0) target = $region9
  $region8: #{cplx_down_forward.1} parent=0 // pred_region
    _
  $region9: #{cplx_down_forward.1} parent=0 // pred_fallthru
    _
  // Predicated region
  $region10: #{cplx_down_forward.1} parent=0 // pred_check
    _
  $region11: #{cplx_down_forward.1} parent=0 // pred_check_branch
    %19 = sbr.rel (0) target = $region13
  $region12: #{cplx_down_forward.1} parent=0 // pred_region
    _
  $region13: #{cplx_down_forward.1} parent=0 // pred_fallthru
    _
  // Predicated region
  $region14: #{cplx_down_forward.1} parent=0 // pred_check
    _
  $region15: #{cplx_down_forward.1} parent=0 // pred_check_branch
    %21 = sbr.rel (0) target = $region17
  $region16: #{cplx_down_forward.1} parent=0 // pred_region
    _
  $region17: #{cplx_down_forward.1} parent=0 // pred_fallthru
    _
  // Predicated region
  $region18: #{cplx_down_forward.1} parent=0 // pred_check
    _
  $region19: #{cplx_down_forward.1} parent=0 // pred_check_branch
    %23 = sbr.rel (0) target = $region21
  $region20: #{cplx_down_forward.1} parent=0 // pred_region
    _
  $region21: #{cplx_down_forward.1} parent=0 // pred_fallthru
    _
  // Predicated region
  $region22: #{cplx_down_forward.1} parent=0 // pred_check
    _
  $region23: #{cplx_down_forward.1} parent=0 // pred_check_branch
    %25 = sbr.rel (0) target = $region25
  $region24: #{cplx_down_forward.1} parent=0 // pred_region
    _
  $region25: #{cplx_down_forward.1} parent=0 // pred_fallthru
    _
  // Predicated region
  $region26: #{cplx_down_forward.1} parent=0 // pred_check
    _
  $region27: #{cplx_down_forward.1} parent=0 // pred_check_branch
    %27 = sbr.rel (0) target = $region29
  $region28: #{cplx_down_forward.1} parent=0 // pred_region
    _
  $region29: #{cplx_down_forward.1} parent=0 // pred_fallthru
    _
  // Predicated region
  $region30: #{cplx_down_forward.1} parent=0 // pred_check
    _
  $region31: #{cplx_down_forward.1} parent=0 // pred_check_branch
    %29 = sbr.rel (0) target = $region33
  $region32: #{cplx_down_forward.1} parent=0 // pred_region
    _
  $region33: #{cplx_down_forward.1} parent=0 // pred_fallthru
    _
  // Predicated region
  $region34: #{cplx_down_forward.1} parent=0 // pred_check
    _
  $region35: #{cplx_down_forward.1} parent=0 // pred_check_branch
    %31 = sbr.rel (0) target = $region37
  $region36: #{cplx_down_forward.1} parent=0 // pred_region
    _
  $region37: #{cplx_down_forward.1} parent=0 // pred_fallthru
    _
  %v33 = vld [vmem:[%s0] sm:$0xff]
  %v34 = vld [vmem:[%s0 + $0x8] sm:$0x3]
  %v35 = vld [vmem:[%s0 + $0x10] sm:$0xff]
  %v36 = vld [vmem:[%s0 + $0x18] sm:$0x3]
  %v37 = vld [vmem:[%s0 + $0x20] sm:$0xff]
  %v38 = vld [vmem:[%s0 + $0x28] sm:$0x3]
  %v39 = vld [vmem:[%s0 + $0x30] sm:$0xff]
  %v40 = vld [vmem:[%s0 + $0x38] sm:$0x3]
  %v41 = vld [vmem:[%s0 + $0x40] sm:$0xff]
  %v42 = vld [vmem:[%s0 + $0x48] sm:$0x3]
  %v43 = vld [vmem:[%s0 + $0x50] sm:$0xff]
  %v44 = vld [vmem:[%s0 + $0x58] sm:$0x3]
  %v45 = vld [vmem:[%s0 + $0x60] sm:$0xff]
  %v46 = vld [vmem:[%s0 + $0x68] sm:$0x3]
  %v47 = vld [vmem:[%s0 + $0x70] sm:$0xff]
  %v48 = vld [vmem:[%s0 + $0x78] sm:$0x3]
  %v49 = vld [vmem:[%s0 + $0x80] sm:$0xff]
  %v50 = vld [vmem:[%s0 + $0x88] sm:$0x3]
  %v51 = vld [vmem:[%s0 + $0x90] sm:$0xff]
  %v52 = vld [vmem:[%s0 + $0x98] sm:$0x3]
  %v53 = vld [vmem:[%s0 + $0xa0] sm:$0xff]
  %v54 = vld [vmem:[%s0 + $0xa8] sm:$0x3]
  %v55 = vld [vmem:[%s0 + $0xb0] sm:$0xff]
  %v56 = vld [vmem:[%s0 + $0xb8] sm:$0x3]
  %v57 = vld [vmem:[%s0 + $0xc0] sm:$0xff]
  %v58 = vld [vmem:[%s0 + $0xc8] sm:$0x3]
  %v59 = vld [vmem:[%s0 + $0xd0] sm:$0xff]
  %v60 = vld [vmem:[%s0 + $0xd8] sm:$0x3]
  %v61 = vld [vmem:[%s0 + $0xe0] sm:$0xff]
  %v62 = vld [vmem:[%s0 + $0xe8] sm:$0x3]
  %v63 = vld [vmem:[%s0 + $0xf0] sm:$0xff]
  %v64 = vld [vmem:[%s0 + $0xf8] sm:$0x3]
  %v65 = vld [vmem:[%s0 + $0x100] sm:$0xff]
  %v66 = vld [vmem:[%s0 + $0x108] sm:$0x3]
  %v67 = vld [vmem:[%s0 + $0x110] sm:$0xff]
  %v68 = vld [vmem:[%s0 + $0x118] sm:$0x3]
  %v69 = vld [vmem:[%s0 + $0x120] sm:$0xff]
  %v70 = vld [vmem:[%s0 + $0x128] sm:$0x3]
  %v71 = vld [vmem:[%s0 + $0x130] sm:$0xff]
  %v72 = vld [vmem:[%s0 + $0x138] sm:$0x3]
  %s73 = scalar_lea.vmem %s0, 320
  %v74 = vld [vmem:[%s73] sm:$0xff]
  %v75 = vld [vmem:[%s73 + $0x8] sm:$0x3]
  %v76 = vld [vmem:[%s73 + $0x10] sm:$0xff]
  %v77 = vld [vmem:[%s73 + $0x18] sm:$0x3]
  %v78 = vld [vmem:[%s73 + $0x20] sm:$0xff]
  %v79 = vld [vmem:[%s73 + $0x28] sm:$0x3]
  %v80 = vld [vmem:[%s73 + $0x30] sm:$0xff]
  %v81 = vld [vmem:[%s73 + $0x38] sm:$0x3]
  %v82 = vld [vmem:[%s73 + $0x40] sm:$0xff]
  %v83 = vld [vmem:[%s73 + $0x48] sm:$0x3]
  %v84 = vld [vmem:[%s73 + $0x50] sm:$0xff]
  %v85 = vld [vmem:[%s73 + $0x58] sm:$0x3]
  %v86 = vld [vmem:[%s73 + $0x60] sm:$0xff]
  %v87 = vld [vmem:[%s73 + $0x68] sm:$0x3]
  %v88 = vld [vmem:[%s73 + $0x70] sm:$0xff]
  %v89 = vld [vmem:[%s73 + $0x78] sm:$0x3]
  %v90 = vld [vmem:[%s73 + $0x80] sm:$0xff]
  %v91 = vld [vmem:[%s73 + $0x88] sm:$0x3]
  %v92 = vld [vmem:[%s73 + $0x90] sm:$0xff]
  %v93 = vld [vmem:[%s73 + $0x98] sm:$0x3]
  %v94 = vld [vmem:[%s73 + $0xa0] sm:$0xff]
  %v95 = vld [vmem:[%s73 + $0xa8] sm:$0x3]
  %v96 = vld [vmem:[%s73 + $0xb0] sm:$0xff]
  %v97 = vld [vmem:[%s73 + $0xb8] sm:$0x3]
  %v98 = vld [vmem:[%s73 + $0xc0] sm:$0xff]
  %v99 = vld [vmem:[%s73 + $0xc8] sm:$0x3]
  %v100 = vld [vmem:[%s73 + $0xd0] sm:$0xff]
  %v101 = vld [vmem:[%s73 + $0xd8] sm:$0x3]
  %v102 = vld [vmem:[%s73 + $0xe0] sm:$0xff]
  %v103 = vld [vmem:[%s73 + $0xe8] sm:$0x3]
  %v104 = vld [vmem:[%s73 + $0xf0] sm:$0xff]
  %v105 = vld [vmem:[%s73 + $0xf8] sm:$0x3]
  %v106 = vld [vmem:[%s73 + $0x100] sm:$0xff]
  %v107 = vld [vmem:[%s73 + $0x108] sm:$0x3]
  %v108 = vld [vmem:[%s73 + $0x110] sm:$0xff]
  %v109 = vld [vmem:[%s73 + $0x118] sm:$0x3]
  %v110 = vld [vmem:[%s73 + $0x120] sm:$0xff]
  %v111 = vld [vmem:[%s73 + $0x128] sm:$0x3]
  %v112 = vld [vmem:[%s73 + $0x130] sm:$0xff]
  %v113 = vld [vmem:[%s73 + $0x138] sm:$0x3]
  %v114 = vadd.f32 %v33, %v74
  %v115 = vadd.f32 %v34, %v75
  %v116 = vadd.f32 %v35, %v76
  %v117 = vadd.f32 %v36, %v77
  %v118 = vadd.f32 %v37, %v78
  %v119 = vadd.f32 %v38, %v79
  %v120 = vadd.f32 %v39, %v80
  %v121 = vadd.f32 %v40, %v81
  %v122 = vadd.f32 %v41, %v82
  %v123 = vadd.f32 %v42, %v83
  %v124 = vadd.f32 %v43, %v84
  %v125 = vadd.f32 %v44, %v85
  %v126 = vadd.f32 %v45, %v86
  %v127 = vadd.f32 %v46, %v87
  %v128 = vadd.f32 %v47, %v88
  %v129 = vadd.f32 %v48, %v89
  %v130 = vadd.f32 %v49, %v90
  %v131 = vadd.f32 %v50, %v91
  %v132 = vadd.f32 %v51, %v92
  %v133 = vadd.f32 %v52, %v93
  %v134 = vadd.f32 %v53, %v94
  %v135 = vadd.f32 %v54, %v95
  %v136 = vadd.f32 %v55, %v96
  %v137 = vadd.f32 %v56, %v97
  %v138 = vadd.f32 %v57, %v98
  %v139 = vadd.f32 %v58, %v99
  %v140 = vadd.f32 %v59, %v100
  %v141 = vadd.f32 %v60, %v101
  %v142 = vadd.f32 %v61, %v102
  %v143 = vadd.f32 %v62, %v103
  %v144 = vadd.f32 %v63, %v104
  %v145 = vadd.f32 %v64, %v105
  %v146 = vadd.f32 %v65, %v106
  %v147 = vadd.f32 %v66, %v107
  %v148 = vadd.f32 %v67, %v108
  %v149 = vadd.f32 %v68, %v109
  %v150 = vadd.f32 %v69, %v110
  %v151 = vadd.f32 %v70, %v111
  %v152 = vadd.f32 %v71, %v112
  %v153 = vadd.f32 %v72, %v113
  %s154 = scalar_lea.vmem %s0, 640
  %v155 = vld [vmem:[%s154] sm:$0xff]
  %v156 = vld [vmem:[%s154 + $0x8] sm:$0x3]
  %v157 = vld [vmem:[%s154 + $0x10] sm:$0xff]
  %v158 = vld [vmem:[%s154 + $0x18] sm:$0x3]
  %v159 = vld [vmem:[%s154 + $0x20] sm:$0xff]
  %v160 = vld [vmem:[%s154 + $0x28] sm:$0x3]
  %v161 = vld [vmem:[%s154 + $0x30] sm:$0xff]
  %v162 = vld [vmem:[%s154 + $0x38] sm:$0x3]
  %v163 = vld [vmem:[%s154 + $0x40] sm:$0xff]
  %v164 = vld [vmem:[%s154 + $0x48] sm:$0x3]
  %v165 = vld [vmem:[%s154 + $0x50] sm:$0xff]
  %v166 = vld [vmem:[%s154 + $0x58] sm:$0x3]
  %v167 = vld [vmem:[%s154 + $0x60] sm:$0xff]
  %v168 = vld [vmem:[%s154 + $0x68] sm:$0x3]
  %v169 = vld [vmem:[%s154 + $0x70] sm:$0xff]
  %v170 = vld [vmem:[%s154 + $0x78] sm:$0x3]
  %v171 = vld [vmem:[%s154 + $0x80] sm:$0xff]
  %v172 = vld [vmem:[%s154 + $0x88] sm:$0x3]
  %v173 = vld [vmem:[%s154 + $0x90] sm:$0xff]
  %v174 = vld [vmem:[%s154 + $0x98] sm:$0x3]
  %v175 = vld [vmem:[%s154 + $0xa0] sm:$0xff]
  %v176 = vld [vmem:[%s154 + $0xa8] sm:$0x3]
  %v177 = vld [vmem:[%s154 + $0xb0] sm:$0xff]
  %v178 = vld [vmem:[%s154 + $0xb8] sm:$0x3]
  %v179 = vld [vmem:[%s154 + $0xc0] sm:$0xff]
  %v180 = vld [vmem:[%s154 + $0xc8] sm:$0x3]
  %v181 = vld [vmem:[%s154 + $0xd0] sm:$0xff]
  %v182 = vld [vmem:[%s154 + $0xd8] sm:$0x3]
  %v183 = vld [vmem:[%s154 + $0xe0] sm:$0xff]
  %v184 = vld [vmem:[%s154 + $0xe8] sm:$0x3]
  %v185 = vld [vmem:[%s154 + $0xf0] sm:$0xff]
  %v186 = vld [vmem:[%s154 + $0xf8] sm:$0x3]
  %v187 = vld [vmem:[%s154 + $0x100] sm:$0xff]
  %v188 = vld [vmem:[%s154 + $0x108] sm:$0x3]
  %v189 = vld [vmem:[%s154 + $0x110] sm:$0xff]
  %v190 = vld [vmem:[%s154 + $0x118] sm:$0x3]
  %v191 = vld [vmem:[%s154 + $0x120] sm:$0xff]
  %v192 = vld [vmem:[%s154 + $0x128] sm:$0x3]
  %v193 = vld [vmem:[%s154 + $0x130] sm:$0xff]
  %v194 = vld [vmem:[%s154 + $0x138] sm:$0x3]
  %v195 = vadd.f32 %v114, %v155
  %v196 = vadd.f32 %v115, %v156
  %v197 = vadd.f32 %v116, %v157
  %v198 = vadd.f32 %v117, %v158
  %v199 = vadd.f32 %v118, %v159
  %v200 = vadd.f32 %v119, %v160
  %v201 = vadd.f32 %v120, %v161
  %v202 = vadd.f32 %v121, %v162
  %v203 = vadd.f32 %v122, %v163
  %v204 = vadd.f32 %v123, %v164
  %v205 = vadd.f32 %v124, %v165
  %v206 = vadd.f32 %v125, %v166
  %v207 = vadd.f32 %v126, %v167
  %v208 = vadd.f32 %v127, %v168
  %v209 = vadd.f32 %v128, %v169
  %v210 = vadd.f32 %v129, %v170
  %v211 = vadd.f32 %v130, %v171
  %v212 = vadd.f32 %v131, %v172
  %v213 = vadd.f32 %v132, %v173
  %v214 = vadd.f32 %v133, %v174
  %v215 = vadd.f32 %v134, %v175
  %v216 = vadd.f32 %v135, %v176
  %v217 = vadd.f32 %v136, %v177
  %v218 = vadd.f32 %v137, %v178
  %v219 = vadd.f32 %v138, %v179
  %v220 = vadd.f32 %v139, %v180
  %v221 = vadd.f32 %v140, %v181
  %v222 = vadd.f32 %v141, %v182
  %v223 = vadd.f32 %v142, %v183
  %v224 = vadd.f32 %v143, %v184
  %v225 = vadd.f32 %v144, %v185
  %v226 = vadd.f32 %v145, %v186
  %v227 = vadd.f32 %v146, %v187
  %v228 = vadd.f32 %v147, %v188
  %v229 = vadd.f32 %v148, %v189
  %v230 = vadd.f32 %v149, %v190
  %v231 = vadd.f32 %v150, %v191
  %v232 = vadd.f32 %v151, %v192
  %v233 = vadd.f32 %v152, %v193
  %v234 = vadd.f32 %v153, %v194
  %s235 = scalar_lea.vmem %s0, 960
  %v236 = vld [vmem:[%s235] sm:$0xff]
  %v237 = vld [vmem:[%s235 + $0x8] sm:$0x3]
  %v238 = vld [vmem:[%s235 + $0x10] sm:$0xff]
  %v239 = vld [vmem:[%s235 + $0x18] sm:$0x3]
  %v240 = vld [vmem:[%s235 + $0x20] sm:$0xff]
  %v241 = vld [vmem:[%s235 + $0x28] sm:$0x3]
  %v242 = vld [vmem:[%s235 + $0x30] sm:$0xff]
  %v243 = vld [vmem:[%s235 + $0x38] sm:$0x3]
  %v244 = vld [vmem:[%s235 + $0x40] sm:$0xff]
  %v245 = vld [vmem:[%s235 + $0x48] sm:$0x3]
  %v246 = vld [vmem:[%s235 + $0x50] sm:$0xff]
  %v247 = vld [vmem:[%s235 + $0x58] sm:$0x3]
  %v248 = vld [vmem:[%s235 + $0x60] sm:$0xff]
  %v249 = vld [vmem:[%s235 + $0x68] sm:$0x3]
  %v250 = vld [vmem:[%s235 + $0x70] sm:$0xff]
  %v251 = vld [vmem:[%s235 + $0x78] sm:$0x3]
  %v252 = vld [vmem:[%s235 + $0x80] sm:$0xff]
  %v253 = vld [vmem:[%s235 + $0x88] sm:$0x3]
  %v254 = vld [vmem:[%s235 + $0x90] sm:$0xff]
  %v255 = vld [vmem:[%s235 + $0x98] sm:$0x3]
  %v256 = vld [vmem:[%s235 + $0xa0] sm:$0xff]
  %v257 = vld [vmem:[%s235 + $0xa8] sm:$0x3]
  %v258 = vld [vmem:[%s235 + $0xb0] sm:$0xff]
  %v259 = vld [vmem:[%s235 + $0xb8] sm:$0x3]
  %v260 = vld [vmem:[%s235 + $0xc0] sm:$0xff]
  %v261 = vld [vmem:[%s235 + $0xc8] sm:$0x3]
  %v262 = vld [vmem:[%s235 + $0xd0] sm:$0xff]
  %v263 = vld [vmem:[%s235 + $0xd8] sm:$0x3]
  %v264 = vld [vmem:[%s235 + $0xe0] sm:$0xff]
  %v265 = vld [vmem:[%s235 + $0xe8] sm:$0x3]
  %v266 = vld [vmem:[%s235 + $0xf0] sm:$0xff]
  %v267 = vld [vmem:[%s235 + $0xf8] sm:$0x3]
  %v268 = vld [vmem:[%s235 + $0x100] sm:$0xff]
  %v269 = vld [vmem:[%s235 + $0x108] sm:$0x3]
  %v270 = vld [vmem:[%s235 + $0x110] sm:$0xff]
  %v271 = vld [vmem:[%s235 + $0x118] sm:$0x3]
  %v272 = vld [vmem:[%s235 + $0x120] sm:$0xff]
  %v273 = vld [vmem:[%s235 + $0x128] sm:$0x3]
  %v274 = vld [vmem:[%s235 + $0x130] sm:$0xff]
  %v275 = vld [vmem:[%s235 + $0x138] sm:$0x3]
  %v276 = vadd.f32 %v195, %v236
  %v277 = vadd.f32 %v196, %v237
  %v278 = vadd.f32 %v197, %v238
  %v279 = vadd.f32 %v198, %v239
  %v280 = vadd.f32 %v199, %v240
  %v281 = vadd.f32 %v200, %v241
  %v282 = vadd.f32 %v201, %v242
  %v283 = vadd.f32 %v202, %v243
  %v284 = vadd.f32 %v203, %v244
  %v285 = vadd.f32 %v204, %v245
  %v286 = vadd.f32 %v205, %v246
  %v287 = vadd.f32 %v206, %v247
  %v288 = vadd.f32 %v207, %v248
  %v289 = vadd.f32 %v208, %v249
  %v290 = vadd.f32 %v209, %v250
  %v291 = vadd.f32 %v210, %v251
  %v292 = vadd.f32 %v211, %v252
  %v293 = vadd.f32 %v212, %v253
  %v294 = vadd.f32 %v213, %v254
  %v295 = vadd.f32 %v214, %v255
  %v296 = vadd.f32 %v215, %v256
  %v297 = vadd.f32 %v216, %v257
  %v298 = vadd.f32 %v217, %v258
  %v299 = vadd.f32 %v218, %v259
  %v300 = vadd.f32 %v219, %v260
  %v301 = vadd.f32 %v220, %v261
  %v302 = vadd.f32 %v221, %v262
  %v303 = vadd.f32 %v222, %v263
  %v304 = vadd.f32 %v223, %v264
  %v305 = vadd.f32 %v224, %v265
  %v306 = vadd.f32 %v225, %v266
  %v307 = vadd.f32 %v226, %v267
  %v308 = vadd.f32 %v227, %v268
  %v309 = vadd.f32 %v228, %v269
  %v310 = vadd.f32 %v229, %v270
  %v311 = vadd.f32 %v230, %v271
  %v312 = vadd.f32 %v231, %v272
  %v313 = vadd.f32 %v232, %v273
  %v314 = vadd.f32 %v233, %v274
  %v315 = vadd.f32 %v234, %v275
  %v316 = vmul.f32 %v276, 0.25
  %v317 = vmul.f32 %v277, 0.25
  %v318 = vmul.f32 %v278, 0.25
  %v319 = vmul.f32 %v279, 0.25
  %v320 = vmul.f32 %v280, 0.25
  %v321 = vmul.f32 %v281, 0.25
  %v322 = vmul.f32 %v282, 0.25
  %v323 = vmul.f32 %v283, 0.25
  %v324 = vmul.f32 %v284, 0.25
  %v325 = vmul.f32 %v285, 0.25
  %v326 = vmul.f32 %v286, 0.25
  %v327 = vmul.f32 %v287, 0.25
  %v328 = vmul.f32 %v288, 0.25
  %v329 = vmul.f32 %v289, 0.25
  %v330 = vmul.f32 %v290, 0.25
  %v331 = vmul.f32 %v291, 0.25
  %v332 = vmul.f32 %v292, 0.25
  %v333 = vmul.f32 %v293, 0.25
  %v334 = vmul.f32 %v294, 0.25
  %v335 = vmul.f32 %v295, 0.25
  %v336 = vmul.f32 %v296, 0.25
  %v337 = vmul.f32 %v297, 0.25
  %v338 = vmul.f32 %v298, 0.25
  %v339 = vmul.f32 %v299, 0.25
  %v340 = vmul.f32 %v300, 0.25
  %v341 = vmul.f32 %v301, 0.25
  %v342 = vmul.f32 %v302, 0.25
  %v343 = vmul.f32 %v303, 0.25
  %v344 = vmul.f32 %v304, 0.25
  %v345 = vmul.f32 %v305, 0.25
  %v346 = vmul.f32 %v306, 0.25
  %v347 = vmul.f32 %v307, 0.25
  %v348 = vmul.f32 %v308, 0.25
  %v349 = vmul.f32 %v309, 0.25
  %v350 = vmul.f32 %v310, 0.25
  %v351 = vmul.f32 %v311, 0.25
  %v352 = vmul.f32 %v312, 0.25
  %v353 = vmul.f32 %v313, 0.25
  %v354 = vmul.f32 %v314, 0.25
  %v355 = vmul.f32 %v315, 0.25
  %v356 = vpack.c.bf16 %v318, %v316
  %v357 = vpack.c.bf16 %v322, %v320
  %v358 = vpack.c.bf16 %v326, %v324
  %v359 = vpack.c.bf16 %v330, %v328
  %v360 = vpack.c.bf16 %v338, %v336
  %v361 = vpack.c.bf16 %v342, %v340
  %v362 = vpack.c.bf16 %v346, %v344
  %v363 = vpack.c.bf16 %v350, %v348
  %v364 = vld [vmem:[%s1] sm:$0xf]
  %vm397 = vcmask 1046528
  %v398 = vrot.slane %v316, 1
  %v399 = vrot.slane %v317, 1
  %v400 = vsel %vm397, %v398, %v399
  %v401 = vrot.slane %v318, 1
  %v402 = vrot.slane %v319, 1
  %v403 = vsel %vm397, %v401, %v402
  %v404 = vrot.slane %v320, 1
  %v405 = vrot.slane %v321, 1
  %v406 = vsel %vm397, %v404, %v405
  %v407 = vrot.slane %v322, 1
  %v408 = vrot.slane %v323, 1
  %v409 = vsel %vm397, %v407, %v408
  %v410 = vrot.slane %v324, 1
  %v411 = vrot.slane %v325, 1
  %v412 = vsel %vm397, %v410, %v411
  %v413 = vrot.slane %v326, 1
  %v414 = vrot.slane %v327, 1
  %v415 = vsel %vm397, %v413, %v414
  %v416 = vrot.slane %v328, 1
  %v417 = vrot.slane %v329, 1
  %v418 = vsel %vm397, %v416, %v417
  %v419 = vrot.slane %v330, 1
  %v420 = vrot.slane %v331, 1
  %v421 = vsel %vm397, %v419, %v420
  %v422 = vrot.slane %v336, 1
  %v423 = vrot.slane %v337, 1
  %v424 = vsel %vm397, %v422, %v423
  %v425 = vrot.slane %v338, 1
  %v426 = vrot.slane %v339, 1
  %v427 = vsel %vm397, %v425, %v426
  %v428 = vrot.slane %v340, 1
  %v429 = vrot.slane %v341, 1
  %v430 = vsel %vm397, %v428, %v429
  %v431 = vrot.slane %v342, 1
  %v432 = vrot.slane %v343, 1
  %v433 = vsel %vm397, %v431, %v432
  %v434 = vrot.slane %v344, 1
  %v435 = vrot.slane %v345, 1
  %v436 = vsel %vm397, %v434, %v435
  %v437 = vrot.slane %v346, 1
  %v438 = vrot.slane %v347, 1
  %v439 = vsel %vm397, %v437, %v438
  %v440 = vrot.slane %v348, 1
  %v441 = vrot.slane %v349, 1
  %v442 = vsel %vm397, %v440, %v441
  %v443 = vrot.slane %v350, 1
  %v444 = vrot.slane %v351, 1
  %v445 = vsel %vm397, %v443, %v444
  %v462 = vpack.c.bf16 %v403, %v400
  %v463 = vpack.c.bf16 %v409, %v406
  %v464 = vpack.c.bf16 %v415, %v412
  %v465 = vpack.c.bf16 %v421, %v418
  %v466 = vpack.c.bf16 %v427, %v424
  %v467 = vpack.c.bf16 %v433, %v430
  %v468 = vpack.c.bf16 %v439, %v436
  %v469 = vpack.c.bf16 %v445, %v442
  %s470 = scalar_lea.vmem %s1, 4
  %v471 = vld [vmem:[%s470] sm:$0xf]
  %vm472 = vcmask 64512
  %v474 = vsel %vm472, %v462, 0
  %v477 = vsel %vm472, %v463, 0
  %v480 = vsel %vm472, %v464, 0
  %v483 = vsel %vm472, %v465, 0
  %v486 = vsel %vm472, %v466, 0
  %v489 = vsel %vm472, %v467, 0
  %v492 = vsel %vm472, %v468, 0
  %v495 = vsel %vm472, %v469, 0
  %vm497 = vcmask 1043456
  %v499 = vsel %vm497, %v471, 0
  %501 = vmatpush.bf16.msra.mxu0 0
  %502 = vmatpush.bf16.msra.mxu0 0
  %503 = vmatpush.bf16.msra.mxu0 0
  %504 = vmatpush.bf16.msra.mxu0 0
  %505 = vmatpush.bf16.msra.mxu0 0
  %506 = vmatpush.bf16.msra.mxu0 0
  %507 = vmatpush.bf16.msra.mxu0 0
  %508 = vmatpush.bf16.msra.mxu0 %v499
  %509 = vmatmul.bf16.gmra.mxu0 %v474
  %v510 = vpop.f32.mrf.mxu0
  %v511 = vadd.f32 0.0, %v510
  %v512 = vpop.f32.mrf.mxu0
  %v513 = vadd.f32 0.0, %v512
  %514 = vmatmul.bf16.gmra.mxu0 %v477
  %v515 = vpop.f32.mrf.mxu0
  %v516 = vadd.f32 0.0, %v515
  %v517 = vpop.f32.mrf.mxu0
  %v518 = vadd.f32 0.0, %v517
  %519 = vmatmul.bf16.gmra.mxu0 %v480
  %v520 = vpop.f32.mrf.mxu0
  %v521 = vadd.f32 0.0, %v520
  %v522 = vpop.f32.mrf.mxu0
  %v523 = vadd.f32 0.0, %v522
  %524 = vmatmul.bf16.gmra.mxu0 %v483
  %v525 = vpop.f32.mrf.mxu0
  %v526 = vadd.f32 0.0, %v525
  %v527 = vpop.f32.mrf.mxu0
  %v528 = vadd.f32 0.0, %v527
  %529 = vmatmul.bf16.gmra.mxu0 %v486
  %v530 = vpop.f32.mrf.mxu0
  %v531 = vadd.f32 0.0, %v530
  %v532 = vpop.f32.mrf.mxu0
  %v533 = vadd.f32 0.0, %v532
  %534 = vmatmul.bf16.gmra.mxu0 %v489
  %v535 = vpop.f32.mrf.mxu0
  %v536 = vadd.f32 0.0, %v535
  %v537 = vpop.f32.mrf.mxu0
  %v538 = vadd.f32 0.0, %v537
  %539 = vmatmul.bf16.gmra.mxu0 %v492
  %v540 = vpop.f32.mrf.mxu0
  %v541 = vadd.f32 0.0, %v540
  %v542 = vpop.f32.mrf.mxu0
  %v543 = vadd.f32 0.0, %v542
  %544 = vmatmul.bf16.gmra.mxu0 %v495
  %v545 = vpop.f32.mrf.mxu0
  %v546 = vadd.f32 0.0, %v545
  %v547 = vpop.f32.mrf.mxu0
  %v548 = vadd.f32 0.0, %v547
  %549 = vdwg.mxu0
  %v551 = vsel %vm472, %v356, 0
  %v554 = vsel %vm472, %v357, 0
  %v557 = vsel %vm472, %v358, 0
  %v560 = vsel %vm472, %v359, 0
  %v563 = vsel %vm472, %v360, 0
  %v566 = vsel %vm472, %v361, 0
  %v569 = vsel %vm472, %v362, 0
  %v572 = vsel %vm472, %v363, 0
  %v575 = vsel %vm497, %v364, 0
  %577 = vmatpush.bf16.msra.mxu0 0
  %578 = vmatpush.bf16.msra.mxu0 0
  %579 = vmatpush.bf16.msra.mxu0 0
  %580 = vmatpush.bf16.msra.mxu0 0
  %581 = vmatpush.bf16.msra.mxu0 0
  %582 = vmatpush.bf16.msra.mxu0 0
  %583 = vmatpush.bf16.msra.mxu0 0
  %584 = vmatpush.bf16.msra.mxu0 %v575
  %585 = vmatmul.bf16.gmra.mxu0 %v551
  %v586 = vpop.f32.mrf.mxu0
  %v587 = vadd.f32 %v511, %v586
  %v588 = vpop.f32.mrf.mxu0
  %v589 = vadd.f32 %v513, %v588
  %590 = vmatmul.bf16.gmra.mxu0 %v554
  %v591 = vpop.f32.mrf.mxu0
  %v592 = vadd.f32 %v516, %v591
  %v593 = vpop.f32.mrf.mxu0
  %v594 = vadd.f32 %v518, %v593
  %595 = vmatmul.bf16.gmra.mxu0 %v557
  %v596 = vpop.f32.mrf.mxu0
  %v597 = vadd.f32 %v521, %v596
  %v598 = vpop.f32.mrf.mxu0
  %v599 = vadd.f32 %v523, %v598
  %600 = vmatmul.bf16.gmra.mxu0 %v560
  %v601 = vpop.f32.mrf.mxu0
  %v602 = vadd.f32 %v526, %v601
  %v603 = vpop.f32.mrf.mxu0
  %v604 = vadd.f32 %v528, %v603
  %605 = vmatmul.bf16.gmra.mxu0 %v563
  %v606 = vpop.f32.mrf.mxu0
  %v607 = vadd.f32 %v531, %v606
  %v608 = vpop.f32.mrf.mxu0
  %v609 = vadd.f32 %v533, %v608
  %610 = vmatmul.bf16.gmra.mxu0 %v566
  %v611 = vpop.f32.mrf.mxu0
  %v612 = vadd.f32 %v536, %v611
  %v613 = vpop.f32.mrf.mxu0
  %v614 = vadd.f32 %v538, %v613
  %615 = vmatmul.bf16.gmra.mxu0 %v569
  %v616 = vpop.f32.mrf.mxu0
  %v617 = vadd.f32 %v541, %v616
  %v618 = vpop.f32.mrf.mxu0
  %v619 = vadd.f32 %v543, %v618
  %620 = vmatmul.bf16.gmra.mxu0 %v572
  %v621 = vpop.f32.mrf.mxu0
  %v622 = vadd.f32 %v546, %v621
  %v623 = vpop.f32.mrf.mxu0
  %v624 = vadd.f32 %v548, %v623
  %625 = vdwg.mxu0
  %vm626 = vcmask 1045504
  %v627 = vrot.slane %v316, 2
  %v628 = vrot.slane %v317, 2
  %v629 = vsel %vm626, %v627, %v628
  %v630 = vrot.slane %v318, 2
  %v631 = vrot.slane %v319, 2
  %v632 = vsel %vm626, %v630, %v631
  %v633 = vrot.slane %v320, 2
  %v634 = vrot.slane %v321, 2
  %v635 = vsel %vm626, %v633, %v634
  %v636 = vrot.slane %v322, 2
  %v637 = vrot.slane %v323, 2
  %v638 = vsel %vm626, %v636, %v637
  %v639 = vrot.slane %v324, 2
  %v640 = vrot.slane %v325, 2
  %v641 = vsel %vm626, %v639, %v640
  %v642 = vrot.slane %v326, 2
  %v643 = vrot.slane %v327, 2
  %v644 = vsel %vm626, %v642, %v643
  %v645 = vrot.slane %v328, 2
  %v646 = vrot.slane %v329, 2
  %v647 = vsel %vm626, %v645, %v646
  %v648 = vrot.slane %v330, 2
  %v649 = vrot.slane %v331, 2
  %v650 = vsel %vm626, %v648, %v649
  %v651 = vrot.slane %v336, 2
  %v652 = vrot.slane %v337, 2
  %v653 = vsel %vm626, %v651, %v652
  %v654 = vrot.slane %v338, 2
  %v655 = vrot.slane %v339, 2
  %v656 = vsel %vm626, %v654, %v655
  %v657 = vrot.slane %v340, 2
  %v658 = vrot.slane %v341, 2
  %v659 = vsel %vm626, %v657, %v658
  %v660 = vrot.slane %v342, 2
  %v661 = vrot.slane %v343, 2
  %v662 = vsel %vm626, %v660, %v661
  %v663 = vrot.slane %v344, 2
  %v664 = vrot.slane %v345, 2
  %v665 = vsel %vm626, %v663, %v664
  %v666 = vrot.slane %v346, 2
  %v667 = vrot.slane %v347, 2
  %v668 = vsel %vm626, %v666, %v667
  %v669 = vrot.slane %v348, 2
  %v670 = vrot.slane %v349, 2
  %v671 = vsel %vm626, %v669, %v670
  %v672 = vrot.slane %v350, 2
  %v673 = vrot.slane %v351, 2
  %v674 = vsel %vm626, %v672, %v673
  %v691 = vpack.c.bf16 %v632, %v629
  %v692 = vpack.c.bf16 %v638, %v635
  %v693 = vpack.c.bf16 %v644, %v641
  %v694 = vpack.c.bf16 %v650, %v647
  %v695 = vpack.c.bf16 %v656, %v653
  %v696 = vpack.c.bf16 %v662, %v659
  %v697 = vpack.c.bf16 %v668, %v665
  %v698 = vpack.c.bf16 %v674, %v671
  %s699 = scalar_lea.vmem %s1, 8
  %v700 = vld [vmem:[%s699] sm:$0xf]
  %v702 = vsel %vm472, %v691, 0
  %v705 = vsel %vm472, %v692, 0
  %v708 = vsel %vm472, %v693, 0
  %v711 = vsel %vm472, %v694, 0
  %v714 = vsel %vm472, %v695, 0
  %v717 = vsel %vm472, %v696, 0
  %v720 = vsel %vm472, %v697, 0
  %v723 = vsel %vm472, %v698, 0
  %v726 = vsel %vm497, %v700, 0
  %728 = vmatpush.bf16.msra.mxu0 0
  %729 = vmatpush.bf16.msra.mxu0 0
  %730 = vmatpush.bf16.msra.mxu0 0
  %731 = vmatpush.bf16.msra.mxu0 0
  %732 = vmatpush.bf16.msra.mxu0 0
  %733 = vmatpush.bf16.msra.mxu0 0
  %734 = vmatpush.bf16.msra.mxu0 0
  %735 = vmatpush.bf16.msra.mxu0 %v726
  %736 = vmatmul.bf16.gmra.mxu0 %v702
  %v737 = vpop.f32.mrf.mxu0
  %v738 = vadd.f32 0.0, %v737
  %v739 = vpop.f32.mrf.mxu0
  %v740 = vadd.f32 0.0, %v739
  %741 = vmatmul.bf16.gmra.mxu0 %v705
  %v742 = vpop.f32.mrf.mxu0
  %v743 = vadd.f32 0.0, %v742
  %v744 = vpop.f32.mrf.mxu0
  %v745 = vadd.f32 0.0, %v744
  %746 = vmatmul.bf16.gmra.mxu0 %v708
  %v747 = vpop.f32.mrf.mxu0
  %v748 = vadd.f32 0.0, %v747
  %v749 = vpop.f32.mrf.mxu0
  %v750 = vadd.f32 0.0, %v749
  %751 = vmatmul.bf16.gmra.mxu0 %v711
  %v752 = vpop.f32.mrf.mxu0
  %v753 = vadd.f32 0.0, %v752
  %v754 = vpop.f32.mrf.mxu0
  %v755 = vadd.f32 0.0, %v754
  %756 = vmatmul.bf16.gmra.mxu0 %v714
  %v757 = vpop.f32.mrf.mxu0
  %v758 = vadd.f32 0.0, %v757
  %v759 = vpop.f32.mrf.mxu0
  %v760 = vadd.f32 0.0, %v759
  %761 = vmatmul.bf16.gmra.mxu0 %v717
  %v762 = vpop.f32.mrf.mxu0
  %v763 = vadd.f32 0.0, %v762
  %v764 = vpop.f32.mrf.mxu0
  %v765 = vadd.f32 0.0, %v764
  %766 = vmatmul.bf16.gmra.mxu0 %v720
  %v767 = vpop.f32.mrf.mxu0
  %v768 = vadd.f32 0.0, %v767
  %v769 = vpop.f32.mrf.mxu0
  %v770 = vadd.f32 0.0, %v769
  %771 = vmatmul.bf16.gmra.mxu0 %v723
  %v772 = vpop.f32.mrf.mxu0
  %v773 = vadd.f32 0.0, %v772
  %v774 = vpop.f32.mrf.mxu0
  %v775 = vadd.f32 0.0, %v774
  %776 = vdwg.mxu0
  %v777 = vadd.f32 %v587, %v738
  %v778 = vadd.f32 %v589, %v740
  %v779 = vadd.f32 %v592, %v743
  %v780 = vadd.f32 %v594, %v745
  %v781 = vadd.f32 %v597, %v748
  %v782 = vadd.f32 %v599, %v750
  %v783 = vadd.f32 %v602, %v753
  %v784 = vadd.f32 %v604, %v755
  %v785 = vadd.f32 %v607, %v758
  %v786 = vadd.f32 %v609, %v760
  %v787 = vadd.f32 %v612, %v763
  %v788 = vadd.f32 %v614, %v765
  %v789 = vadd.f32 %v617, %v768
  %v790 = vadd.f32 %v619, %v770
  %v791 = vadd.f32 %v622, %v773
  %v792 = vadd.f32 %v624, %v775
  %v793 = vpack.c.bf16 %v320, %v318
  %v794 = vpack.c.bf16 %v324, %v322
  %v795 = vpack.c.bf16 %v328, %v326
  %v796 = vpack.c.bf16 %v332, %v330
  %v797 = vpack.c.bf16 %v340, %v338
  %v798 = vpack.c.bf16 %v344, %v342
  %v799 = vpack.c.bf16 %v348, %v346
  %v800 = vpack.c.bf16 %v352, %v350
  %s801 = scalar_lea.vmem %s1, 12
  %v802 = vld [vmem:[%s801] sm:$0xf]
  %v804 = vsel %vm472, %v793, 0
  %v807 = vsel %vm472, %v794, 0
  %v810 = vsel %vm472, %v795, 0
  %v813 = vsel %vm472, %v796, 0
  %v816 = vsel %vm472, %v797, 0
  %v819 = vsel %vm472, %v798, 0
  %v822 = vsel %vm472, %v799, 0
  %v825 = vsel %vm472, %v800, 0
  %v828 = vsel %vm497, %v802, 0
  %830 = vmatpush.bf16.msra.mxu0 0
  %831 = vmatpush.bf16.msra.mxu0 0
  %832 = vmatpush.bf16.msra.mxu0 0
  %833 = vmatpush.bf16.msra.mxu0 0
  %834 = vmatpush.bf16.msra.mxu0 0
  %835 = vmatpush.bf16.msra.mxu0 0
  %836 = vmatpush.bf16.msra.mxu0 0
  %837 = vmatpush.bf16.msra.mxu0 %v828
  %838 = vmatmul.bf16.gmra.mxu0 %v804
  %v839 = vpop.f32.mrf.mxu0
  %v840 = vadd.f32 0.0, %v839
  %v841 = vpop.f32.mrf.mxu0
  %v842 = vadd.f32 0.0, %v841
  %843 = vmatmul.bf16.gmra.mxu0 %v807
  %v844 = vpop.f32.mrf.mxu0
  %v845 = vadd.f32 0.0, %v844
  %v846 = vpop.f32.mrf.mxu0
  %v847 = vadd.f32 0.0, %v846
  %848 = vmatmul.bf16.gmra.mxu0 %v810
  %v849 = vpop.f32.mrf.mxu0
  %v850 = vadd.f32 0.0, %v849
  %v851 = vpop.f32.mrf.mxu0
  %v852 = vadd.f32 0.0, %v851
  %853 = vmatmul.bf16.gmra.mxu0 %v813
  %v854 = vpop.f32.mrf.mxu0
  %v855 = vadd.f32 0.0, %v854
  %v856 = vpop.f32.mrf.mxu0
  %v857 = vadd.f32 0.0, %v856
  %858 = vmatmul.bf16.gmra.mxu0 %v816
  %v859 = vpop.f32.mrf.mxu0
  %v860 = vadd.f32 0.0, %v859
  %v861 = vpop.f32.mrf.mxu0
  %v862 = vadd.f32 0.0, %v861
  %863 = vmatmul.bf16.gmra.mxu0 %v819
  %v864 = vpop.f32.mrf.mxu0
  %v865 = vadd.f32 0.0, %v864
  %v866 = vpop.f32.mrf.mxu0
  %v867 = vadd.f32 0.0, %v866
  %868 = vmatmul.bf16.gmra.mxu0 %v822
  %v869 = vpop.f32.mrf.mxu0
  %v870 = vadd.f32 0.0, %v869
  %v871 = vpop.f32.mrf.mxu0
  %v872 = vadd.f32 0.0, %v871
  %873 = vmatmul.bf16.gmra.mxu0 %v825
  %v874 = vpop.f32.mrf.mxu0
  %v875 = vadd.f32 0.0, %v874
  %v876 = vpop.f32.mrf.mxu0
  %v877 = vadd.f32 0.0, %v876
  %878 = vdwg.mxu0
  %v879 = vadd.f32 %v777, %v840
  %v880 = vadd.f32 %v778, %v842
  %v881 = vadd.f32 %v779, %v845
  %v882 = vadd.f32 %v780, %v847
  %v883 = vadd.f32 %v781, %v850
  %v884 = vadd.f32 %v782, %v852
  %v885 = vadd.f32 %v783, %v855
  %v886 = vadd.f32 %v784, %v857
  %v887 = vadd.f32 %v785, %v860
  %v888 = vadd.f32 %v786, %v862
  %v889 = vadd.f32 %v787, %v865
  %v890 = vadd.f32 %v788, %v867
  %v891 = vadd.f32 %v789, %v870
  %v892 = vadd.f32 %v790, %v872
  %v893 = vadd.f32 %v791, %v875
  %v894 = vadd.f32 %v792, %v877
  %v899 = vrot.slane %v332, 1
  %v900 = vrot.slane %v333, 1
  %v901 = vsel %vm397, %v899, %v900
  %v902 = vrot.slane %v352, 1
  %v903 = vrot.slane %v353, 1
  %v904 = vsel %vm397, %v902, %v903
  %v907 = vpack.c.bf16 %v406, %v403
  %v908 = vpack.c.bf16 %v412, %v409
  %v909 = vpack.c.bf16 %v418, %v415
  %v910 = vpack.c.bf16 %v901, %v421
  %v911 = vpack.c.bf16 %v430, %v427
  %v912 = vpack.c.bf16 %v436, %v433
  %v913 = vpack.c.bf16 %v442, %v439
  %v914 = vpack.c.bf16 %v904, %v445
  %s915 = scalar_lea.vmem %s1, 16
  %v916 = vld [vmem:[%s915] sm:$0xf]
  %v918 = vsel %vm472, %v907, 0
  %v921 = vsel %vm472, %v908, 0
  %v924 = vsel %vm472, %v909, 0
  %v927 = vsel %vm472, %v910, 0
  %v930 = vsel %vm472, %v911, 0
  %v933 = vsel %vm472, %v912, 0
  %v936 = vsel %vm472, %v913, 0
  %v939 = vsel %vm472, %v914, 0
  %v942 = vsel %vm497, %v916, 0
  %944 = vmatpush.bf16.msra.mxu0 0
  %945 = vmatpush.bf16.msra.mxu0 0
  %946 = vmatpush.bf16.msra.mxu0 0
  %947 = vmatpush.bf16.msra.mxu0 0
  %948 = vmatpush.bf16.msra.mxu0 0
  %949 = vmatpush.bf16.msra.mxu0 0
  %950 = vmatpush.bf16.msra.mxu0 0
  %951 = vmatpush.bf16.msra.mxu0 %v942
  %952 = vmatmul.bf16.gmra.mxu0 %v918
  %v953 = vpop.f32.mrf.mxu0
  %v954 = vadd.f32 0.0, %v953
  %v955 = vpop.f32.mrf.mxu0
  %v956 = vadd.f32 0.0, %v955
  %957 = vmatmul.bf16.gmra.mxu0 %v921
  %v958 = vpop.f32.mrf.mxu0
  %v959 = vadd.f32 0.0, %v958
  %v960 = vpop.f32.mrf.mxu0
  %v961 = vadd.f32 0.0, %v960
  %962 = vmatmul.bf16.gmra.mxu0 %v924
  %v963 = vpop.f32.mrf.mxu0
  %v964 = vadd.f32 0.0, %v963
  %v965 = vpop.f32.mrf.mxu0
  %v966 = vadd.f32 0.0, %v965
  %967 = vmatmul.bf16.gmra.mxu0 %v927
  %v968 = vpop.f32.mrf.mxu0
  %v969 = vadd.f32 0.0, %v968
  %v970 = vpop.f32.mrf.mxu0
  %v971 = vadd.f32 0.0, %v970
  %972 = vmatmul.bf16.gmra.mxu0 %v930
  %v973 = vpop.f32.mrf.mxu0
  %v974 = vadd.f32 0.0, %v973
  %v975 = vpop.f32.mrf.mxu0
  %v976 = vadd.f32 0.0, %v975
  %977 = vmatmul.bf16.gmra.mxu0 %v933
  %v978 = vpop.f32.mrf.mxu0
  %v979 = vadd.f32 0.0, %v978
  %v980 = vpop.f32.mrf.mxu0
  %v981 = vadd.f32 0.0, %v980
  %982 = vmatmul.bf16.gmra.mxu0 %v936
  %v983 = vpop.f32.mrf.mxu0
  %v984 = vadd.f32 0.0, %v983
  %v985 = vpop.f32.mrf.mxu0
  %v986 = vadd.f32 0.0, %v985
  %987 = vmatmul.bf16.gmra.mxu0 %v939
  %v988 = vpop.f32.mrf.mxu0
  %v989 = vadd.f32 0.0, %v988
  %v990 = vpop.f32.mrf.mxu0
  %v991 = vadd.f32 0.0, %v990
  %992 = vdwg.mxu0
  %v993 = vadd.f32 %v879, %v954
  %v994 = vadd.f32 %v880, %v956
  %v995 = vadd.f32 %v881, %v959
  %v996 = vadd.f32 %v882, %v961
  %v997 = vadd.f32 %v883, %v964
  %v998 = vadd.f32 %v884, %v966
  %v999 = vadd.f32 %v885, %v969
  %v1000 = vadd.f32 %v886, %v971
  %v1001 = vadd.f32 %v887, %v974
  %v1002 = vadd.f32 %v888, %v976
  %v1003 = vadd.f32 %v889, %v979
  %v1004 = vadd.f32 %v890, %v981
  %v1005 = vadd.f32 %v891, %v984
  %v1006 = vadd.f32 %v892, %v986
  %v1007 = vadd.f32 %v893, %v989
  %v1008 = vadd.f32 %v894, %v991
  %v1009 = vrot.slane %v332, 2
  %v1010 = vrot.slane %v333, 2
  %v1011 = vsel %vm626, %v1009, %v1010
  %v1012 = vrot.slane %v352, 2
  %v1013 = vrot.slane %v353, 2
  %v1014 = vsel %vm626, %v1012, %v1013
  %v1017 = vpack.c.bf16 %v635, %v632
  %v1018 = vpack.c.bf16 %v641, %v638
  %v1019 = vpack.c.bf16 %v647, %v644
  %v1020 = vpack.c.bf16 %v1011, %v650
  %v1021 = vpack.c.bf16 %v659, %v656
  %v1022 = vpack.c.bf16 %v665, %v662
  %v1023 = vpack.c.bf16 %v671, %v668
  %v1024 = vpack.c.bf16 %v1014, %v674
  %s1025 = scalar_lea.vmem %s1, 20
  %v1026 = vld [vmem:[%s1025] sm:$0xf]
  %v1028 = vsel %vm472, %v1017, 0
  %v1031 = vsel %vm472, %v1018, 0
  %v1034 = vsel %vm472, %v1019, 0
  %v1037 = vsel %vm472, %v1020, 0
  %v1040 = vsel %vm472, %v1021, 0
  %v1043 = vsel %vm472, %v1022, 0
  %v1046 = vsel %vm472, %v1023, 0
  %v1049 = vsel %vm472, %v1024, 0
  %v1052 = vsel %vm497, %v1026, 0
  %1054 = vmatpush.bf16.msra.mxu0 0
  %1055 = vmatpush.bf16.msra.mxu0 0
  %1056 = vmatpush.bf16.msra.mxu0 0
  %1057 = vmatpush.bf16.msra.mxu0 0
  %1058 = vmatpush.bf16.msra.mxu0 0
  %1059 = vmatpush.bf16.msra.mxu0 0
  %1060 = vmatpush.bf16.msra.mxu0 0
  %1061 = vmatpush.bf16.msra.mxu0 %v1052
  %1062 = vmatmul.bf16.gmra.mxu0 %v1028
  %v1063 = vpop.f32.mrf.mxu0
  %v1064 = vadd.f32 0.0, %v1063
  %v1065 = vpop.f32.mrf.mxu0
  %v1066 = vadd.f32 0.0, %v1065
  %1067 = vmatmul.bf16.gmra.mxu0 %v1031
  %v1068 = vpop.f32.mrf.mxu0
  %v1069 = vadd.f32 0.0, %v1068
  %v1070 = vpop.f32.mrf.mxu0
  %v1071 = vadd.f32 0.0, %v1070
  %1072 = vmatmul.bf16.gmra.mxu0 %v1034
  %v1073 = vpop.f32.mrf.mxu0
  %v1074 = vadd.f32 0.0, %v1073
  %v1075 = vpop.f32.mrf.mxu0
  %v1076 = vadd.f32 0.0, %v1075
  %1077 = vmatmul.bf16.gmra.mxu0 %v1037
  %v1078 = vpop.f32.mrf.mxu0
  %v1079 = vadd.f32 0.0, %v1078
  %v1080 = vpop.f32.mrf.mxu0
  %v1081 = vadd.f32 0.0, %v1080
  %1082 = vmatmul.bf16.gmra.mxu0 %v1040
  %v1083 = vpop.f32.mrf.mxu0
  %v1084 = vadd.f32 0.0, %v1083
  %v1085 = vpop.f32.mrf.mxu0
  %v1086 = vadd.f32 0.0, %v1085
  %1087 = vmatmul.bf16.gmra.mxu0 %v1043
  %v1088 = vpop.f32.mrf.mxu0
  %v1089 = vadd.f32 0.0, %v1088
  %v1090 = vpop.f32.mrf.mxu0
  %v1091 = vadd.f32 0.0, %v1090
  %1092 = vmatmul.bf16.gmra.mxu0 %v1046
  %v1093 = vpop.f32.mrf.mxu0
  %v1094 = vadd.f32 0.0, %v1093
  %v1095 = vpop.f32.mrf.mxu0
  %v1096 = vadd.f32 0.0, %v1095
  %1097 = vmatmul.bf16.gmra.mxu0 %v1049
  %v1098 = vpop.f32.mrf.mxu0
  %v1099 = vadd.f32 0.0, %v1098
  %v1100 = vpop.f32.mrf.mxu0
  %v1101 = vadd.f32 0.0, %v1100
  %1102 = vdwg.mxu0
  %v1103 = vadd.f32 %v993, %v1064
  %v1104 = vadd.f32 %v994, %v1066
  %v1105 = vadd.f32 %v995, %v1069
  %v1106 = vadd.f32 %v996, %v1071
  %v1107 = vadd.f32 %v997, %v1074
  %v1108 = vadd.f32 %v998, %v1076
  %v1109 = vadd.f32 %v999, %v1079
  %v1110 = vadd.f32 %v1000, %v1081
  %v1111 = vadd.f32 %v1001, %v1084
  %v1112 = vadd.f32 %v1002, %v1086
  %v1113 = vadd.f32 %v1003, %v1089
  %v1114 = vadd.f32 %v1004, %v1091
  %v1115 = vadd.f32 %v1005, %v1094
  %v1116 = vadd.f32 %v1006, %v1096
  %v1117 = vadd.f32 %v1007, %v1099
  %v1118 = vadd.f32 %v1008, %v1101
  %v1119 = vpack.c.bf16 %v334, %v332
  %v1120 = vpack.c.bf16 %v354, %v352
  %s1121 = scalar_lea.vmem %s1, 24
  %v1122 = vld [vmem:[%s1121] sm:$0xf]
  %v1124 = vsel %vm472, %v1119, 0
  %v1127 = vsel %vm472, %v1120, 0
  %v1130 = vsel %vm497, %v1122, 0
  %1132 = vmatpush.bf16.msra.mxu0 0
  %1133 = vmatpush.bf16.msra.mxu0 0
  %1134 = vmatpush.bf16.msra.mxu0 0
  %1135 = vmatpush.bf16.msra.mxu0 0
  %1136 = vmatpush.bf16.msra.mxu0 0
  %1137 = vmatpush.bf16.msra.mxu0 0
  %1138 = vmatpush.bf16.msra.mxu0 0
  %1139 = vmatpush.bf16.msra.mxu0 %v1130
  %1140 = vmatmul.bf16.gmra.mxu0 %v554
  %v1141 = vpop.f32.mrf.mxu0
  %v1142 = vadd.f32 0.0, %v1141
  %v1143 = vpop.f32.mrf.mxu0
  %v1144 = vadd.f32 0.0, %v1143
  %1145 = vmatmul.bf16.gmra.mxu0 %v557
  %v1146 = vpop.f32.mrf.mxu0
  %v1147 = vadd.f32 0.0, %v1146
  %v1148 = vpop.f32.mrf.mxu0
  %v1149 = vadd.f32 0.0, %v1148
  %1150 = vmatmul.bf16.gmra.mxu0 %v560
  %v1151 = vpop.f32.mrf.mxu0
  %v1152 = vadd.f32 0.0, %v1151
  %v1153 = vpop.f32.mrf.mxu0
  %v1154 = vadd.f32 0.0, %v1153
  %1155 = vmatmul.bf16.gmra.mxu0 %v1124
  %v1156 = vpop.f32.mrf.mxu0
  %v1157 = vadd.f32 0.0, %v1156
  %v1158 = vpop.f32.mrf.mxu0
  %v1159 = vadd.f32 0.0, %v1158
  %1160 = vmatmul.bf16.gmra.mxu0 %v566
  %v1161 = vpop.f32.mrf.mxu0
  %v1162 = vadd.f32 0.0, %v1161
  %v1163 = vpop.f32.mrf.mxu0
  %v1164 = vadd.f32 0.0, %v1163
  %1165 = vmatmul.bf16.gmra.mxu0 %v569
  %v1166 = vpop.f32.mrf.mxu0
  %v1167 = vadd.f32 0.0, %v1166
  %v1168 = vpop.f32.mrf.mxu0
  %v1169 = vadd.f32 0.0, %v1168
  %1170 = vmatmul.bf16.gmra.mxu0 %v572
  %v1171 = vpop.f32.mrf.mxu0
  %v1172 = vadd.f32 0.0, %v1171
  %v1173 = vpop.f32.mrf.mxu0
  %v1174 = vadd.f32 0.0, %v1173
  %1175 = vmatmul.bf16.gmra.mxu0 %v1127
  %v1176 = vpop.f32.mrf.mxu0
  %v1177 = vadd.f32 0.0, %v1176
  %v1178 = vpop.f32.mrf.mxu0
  %v1179 = vadd.f32 0.0, %v1178
  %1180 = vdwg.mxu0
  %v1181 = vadd.f32 %v1103, %v1142
  %v1182 = vadd.f32 %v1104, %v1144
  %v1183 = vadd.f32 %v1105, %v1147
  %v1184 = vadd.f32 %v1106, %v1149
  %v1185 = vadd.f32 %v1107, %v1152
  %v1186 = vadd.f32 %v1108, %v1154
  %v1187 = vadd.f32 %v1109, %v1157
  %v1188 = vadd.f32 %v1110, %v1159
  %v1189 = vadd.f32 %v1111, %v1162
  %v1190 = vadd.f32 %v1112, %v1164
  %v1191 = vadd.f32 %v1113, %v1167
  %v1192 = vadd.f32 %v1114, %v1169
  %v1193 = vadd.f32 %v1115, %v1172
  %v1194 = vadd.f32 %v1116, %v1174
  %v1195 = vadd.f32 %v1117, %v1177
  %v1196 = vadd.f32 %v1118, %v1179
  %v1201 = vrot.slane %v334, 1
  %v1202 = vrot.slane %v335, 1
  %v1203 = vsel %vm397, %v1201, %v1202
  %v1204 = vrot.slane %v354, 1
  %v1205 = vrot.slane %v355, 1
  %v1206 = vsel %vm397, %v1204, %v1205
  %v1209 = vpack.c.bf16 %v1203, %v901
  %v1210 = vpack.c.bf16 %v1206, %v904
  %s1211 = scalar_lea.vmem %s1, 28
  %v1212 = vld [vmem:[%s1211] sm:$0xf]
  %v1214 = vsel %vm472, %v1209, 0
  %v1217 = vsel %vm472, %v1210, 0
  %v1220 = vsel %vm497, %v1212, 0
  %1222 = vmatpush.bf16.msra.mxu0 0
  %1223 = vmatpush.bf16.msra.mxu0 0
  %1224 = vmatpush.bf16.msra.mxu0 0
  %1225 = vmatpush.bf16.msra.mxu0 0
  %1226 = vmatpush.bf16.msra.mxu0 0
  %1227 = vmatpush.bf16.msra.mxu0 0
  %1228 = vmatpush.bf16.msra.mxu0 0
  %1229 = vmatpush.bf16.msra.mxu0 %v1220
  %1230 = vmatmul.bf16.gmra.mxu0 %v477
  %v1231 = vpop.f32.mrf.mxu0
  %v1232 = vadd.f32 0.0, %v1231
  %v1233 = vpop.f32.mrf.mxu0
  %v1234 = vadd.f32 0.0, %v1233
  %1235 = vmatmul.bf16.gmra.mxu0 %v480
  %v1236 = vpop.f32.mrf.mxu0
  %v1237 = vadd.f32 0.0, %v1236
  %v1238 = vpop.f32.mrf.mxu0
  %v1239 = vadd.f32 0.0, %v1238
  %1240 = vmatmul.bf16.gmra.mxu0 %v483
  %v1241 = vpop.f32.mrf.mxu0
  %v1242 = vadd.f32 0.0, %v1241
  %v1243 = vpop.f32.mrf.mxu0
  %v1244 = vadd.f32 0.0, %v1243
  %1245 = vmatmul.bf16.gmra.mxu0 %v1214
  %v1246 = vpop.f32.mrf.mxu0
  %v1247 = vadd.f32 0.0, %v1246
  %v1248 = vpop.f32.mrf.mxu0
  %v1249 = vadd.f32 0.0, %v1248
  %1250 = vmatmul.bf16.gmra.mxu0 %v489
  %v1251 = vpop.f32.mrf.mxu0
  %v1252 = vadd.f32 0.0, %v1251
  %v1253 = vpop.f32.mrf.mxu0
  %v1254 = vadd.f32 0.0, %v1253
  %1255 = vmatmul.bf16.gmra.mxu0 %v492
  %v1256 = vpop.f32.mrf.mxu0
  %v1257 = vadd.f32 0.0, %v1256
  %v1258 = vpop.f32.mrf.mxu0
  %v1259 = vadd.f32 0.0, %v1258
  %1260 = vmatmul.bf16.gmra.mxu0 %v495
  %v1261 = vpop.f32.mrf.mxu0
  %v1262 = vadd.f32 0.0, %v1261
  %v1263 = vpop.f32.mrf.mxu0
  %v1264 = vadd.f32 0.0, %v1263
  %1265 = vmatmul.bf16.gmra.mxu0 %v1217
  %v1266 = vpop.f32.mrf.mxu0
  %v1267 = vadd.f32 0.0, %v1266
  %v1268 = vpop.f32.mrf.mxu0
  %v1269 = vadd.f32 0.0, %v1268
  %1270 = vdwg.mxu0
  %v1271 = vadd.f32 %v1181, %v1232
  %v1272 = vadd.f32 %v1182, %v1234
  %v1273 = vadd.f32 %v1183, %v1237
  %v1274 = vadd.f32 %v1184, %v1239
  %v1275 = vadd.f32 %v1185, %v1242
  %v1276 = vadd.f32 %v1186, %v1244
  %v1277 = vadd.f32 %v1187, %v1247
  %v1278 = vadd.f32 %v1188, %v1249
  %v1279 = vadd.f32 %v1189, %v1252
  %v1280 = vadd.f32 %v1190, %v1254
  %v1281 = vadd.f32 %v1191, %v1257
  %v1282 = vadd.f32 %v1192, %v1259
  %v1283 = vadd.f32 %v1193, %v1262
  %v1284 = vadd.f32 %v1194, %v1264
  %v1285 = vadd.f32 %v1195, %v1267
  %v1286 = vadd.f32 %v1196, %v1269
  %v1287 = vrot.slane %v334, 2
  %v1288 = vrot.slane %v335, 2
  %v1289 = vsel %vm626, %v1287, %v1288
  %v1290 = vrot.slane %v354, 2
  %v1291 = vrot.slane %v355, 2
  %v1292 = vsel %vm626, %v1290, %v1291
  %v1295 = vpack.c.bf16 %v1289, %v1011
  %v1296 = vpack.c.bf16 %v1292, %v1014
  %s1297 = scalar_lea.vmem %s1, 32
  %v1298 = vld [vmem:[%s1297] sm:$0xf]
  %v1300 = vsel %vm472, %v1295, 0
  %v1303 = vsel %vm472, %v1296, 0
  %v1306 = vsel %vm497, %v1298, 0
  %1308 = vmatpush.bf16.msra.mxu0 0
  %1309 = vmatpush.bf16.msra.mxu0 0
  %1310 = vmatpush.bf16.msra.mxu0 0
  %1311 = vmatpush.bf16.msra.mxu0 0
  %1312 = vmatpush.bf16.msra.mxu0 0
  %1313 = vmatpush.bf16.msra.mxu0 0
  %1314 = vmatpush.bf16.msra.mxu0 0
  %1315 = vmatpush.bf16.msra.mxu0 %v1306
  %1316 = vmatmul.bf16.gmra.mxu0 %v705
  %v1317 = vpop.f32.mrf.mxu0
  %v1318 = vadd.f32 0.0, %v1317
  %v1319 = vpop.f32.mrf.mxu0
  %v1320 = vadd.f32 0.0, %v1319
  %1321 = vmatmul.bf16.gmra.mxu0 %v708
  %v1322 = vpop.f32.mrf.mxu0
  %v1323 = vadd.f32 0.0, %v1322
  %v1324 = vpop.f32.mrf.mxu0
  %v1325 = vadd.f32 0.0, %v1324
  %1326 = vmatmul.bf16.gmra.mxu0 %v711
  %v1327 = vpop.f32.mrf.mxu0
  %v1328 = vadd.f32 0.0, %v1327
  %v1329 = vpop.f32.mrf.mxu0
  %v1330 = vadd.f32 0.0, %v1329
  %1331 = vmatmul.bf16.gmra.mxu0 %v1300
  %v1332 = vpop.f32.mrf.mxu0
  %v1333 = vadd.f32 0.0, %v1332
  %v1334 = vpop.f32.mrf.mxu0
  %v1335 = vadd.f32 0.0, %v1334
  %1336 = vmatmul.bf16.gmra.mxu0 %v717
  %v1337 = vpop.f32.mrf.mxu0
  %v1338 = vadd.f32 0.0, %v1337
  %v1339 = vpop.f32.mrf.mxu0
  %v1340 = vadd.f32 0.0, %v1339
  %1341 = vmatmul.bf16.gmra.mxu0 %v720
  %v1342 = vpop.f32.mrf.mxu0
  %v1343 = vadd.f32 0.0, %v1342
  %v1344 = vpop.f32.mrf.mxu0
  %v1345 = vadd.f32 0.0, %v1344
  %1346 = vmatmul.bf16.gmra.mxu0 %v723
  %v1347 = vpop.f32.mrf.mxu0
  %v1348 = vadd.f32 0.0, %v1347
  %v1349 = vpop.f32.mrf.mxu0
  %v1350 = vadd.f32 0.0, %v1349
  %1351 = vmatmul.bf16.gmra.mxu0 %v1303
  %v1352 = vpop.f32.mrf.mxu0
  %v1353 = vadd.f32 0.0, %v1352
  %v1354 = vpop.f32.mrf.mxu0
  %v1355 = vadd.f32 0.0, %v1354
  %1356 = vdwg.mxu0
  %v1357 = vadd.f32 %v1271, %v1318
  %v1358 = vadd.f32 %v1272, %v1320
  %v1359 = vadd.f32 %v1273, %v1323
  %v1360 = vadd.f32 %v1274, %v1325
  %v1361 = vadd.f32 %v1275, %v1328
  %v1362 = vadd.f32 %v1276, %v1330
  %v1363 = vadd.f32 %v1277, %v1333
  %v1364 = vadd.f32 %v1278, %v1335
  %v1365 = vadd.f32 %v1279, %v1338
  %v1366 = vadd.f32 %v1280, %v1340
  %v1367 = vadd.f32 %v1281, %v1343
  %v1368 = vadd.f32 %v1282, %v1345
  %v1369 = vadd.f32 %v1283, %v1348
  %v1370 = vadd.f32 %v1284, %v1350
  %v1371 = vadd.f32 %v1285, %v1353
  %v1372 = vadd.f32 %v1286, %v1355
  %v1373 = vld [vmem:[%s2] sm:$0x1]
  %v1375 = vperm.slane %v1373, 0
  %v1377 = vadd.f32 %v1357, %v1375
  %v1378 = vadd.f32 %v1358, %v1375
  %v1379 = vadd.f32 %v1359, %v1375
  %v1380 = vadd.f32 %v1360, %v1375
  %v1381 = vadd.f32 %v1361, %v1375
  %v1382 = vadd.f32 %v1362, %v1375
  %v1383 = vadd.f32 %v1363, %v1375
  %v1384 = vadd.f32 %v1364, %v1375
  %v1385 = vadd.f32 %v1365, %v1375
  %v1386 = vadd.f32 %v1366, %v1375
  %v1387 = vadd.f32 %v1367, %v1375
  %v1388 = vadd.f32 %v1368, %v1375
  %v1389 = vadd.f32 %v1369, %v1375
  %v1390 = vadd.f32 %v1370, %v1375
  %v1391 = vadd.f32 %v1371, %v1375
  %v1392 = vadd.f32 %v1372, %v1375
  %v1393 = vld [vmem:[%s3] sm:$0x1]
  %v1394 = vld [vmem:[%s3 + $0x1] sm:$0x1]
  %v1395 = vld [vmem:[%s3 + $0x2] sm:$0x1]
  %v1396 = vld [vmem:[%s3 + $0x3] sm:$0x1]
  %v1397 = vld [vmem:[%s4] sm:$0x1]
  %v1398 = vld [vmem:[%s4 + $0x1] sm:$0x1]
  %v1399 = vsel %vm472, %v1377, 0.0
  %v1400 = vsel %vm472, %v1378, 0.0
  %v1401 = vadd.f32 %v1399, %v1400
  %v1402 = vsel %vm472, %v1379, 0.0
  %v1403 = vadd.f32 %v1401, %v1402
  %v1404 = vsel %vm472, %v1380, 0.0
  %v1405 = vadd.f32 %v1403, %v1404
  %v1406 = vsel %vm472, %v1381, 0.0
  %v1407 = vadd.f32 %v1405, %v1406
  %v1408 = vsel %vm472, %v1382, 0.0
  %v1409 = vadd.f32 %v1407, %v1408
  %v1410 = vsel %vm472, %v1383, 0.0
  %v1411 = vadd.f32 %v1409, %v1410
  %v1412 = vsel %vm472, %v1384, 0.0
  %v1413 = vadd.f32 %v1411, %v1412
  %v1414 = vsel %vm472, %v1385, 0.0
  %v1415 = vadd.f32 %v1413, %v1414
  %v1416 = vsel %vm472, %v1386, 0.0
  %v1417 = vadd.f32 %v1415, %v1416
  %v1418 = vsel %vm472, %v1387, 0.0
  %v1419 = vadd.f32 %v1417, %v1418
  %v1420 = vsel %vm472, %v1388, 0.0
  %v1421 = vadd.f32 %v1419, %v1420
  %v1422 = vsel %vm472, %v1389, 0.0
  %v1423 = vadd.f32 %v1421, %v1422
  %v1424 = vsel %vm472, %v1390, 0.0
  %v1425 = vadd.f32 %v1423, %v1424
  %v1426 = vsel %vm472, %v1391, 0.0
  %v1427 = vadd.f32 %v1425, %v1426
  %v1428 = vsel %vm472, %v1392, 0.0
  %v1429 = vadd.f32 %v1427, %v1428
  %v1430 = vrot.slane %v1429, 4
  %v1431 = vadd.f32 %v1429, %v1430
  %v1432 = vrot.slane %v1431, 2
  %v1433 = vadd.f32 %v1431, %v1432
  %v1434 = vrot.slane %v1433, 1
  %v1435 = vadd.f32 %v1433, %v1434
  %v1436 = vmul.f32 %v1435, 0.0078125
  %vm1437 = vcmask 130112
  %v1438 = vsel %vm1437, %v1377, 0.0
  %v1439 = vsel %vm1437, %v1378, 0.0
  %v1440 = vadd.f32 %v1438, %v1439
  %v1441 = vsel %vm1437, %v1379, 0.0
  %v1442 = vadd.f32 %v1440, %v1441
  %v1443 = vsel %vm1437, %v1380, 0.0
  %v1444 = vadd.f32 %v1442, %v1443
  %v1445 = vsel %vm1437, %v1381, 0.0
  %v1446 = vadd.f32 %v1444, %v1445
  %v1447 = vsel %vm1437, %v1382, 0.0
  %v1448 = vadd.f32 %v1446, %v1447
  %v1449 = vsel %vm1437, %v1383, 0.0
  %v1450 = vadd.f32 %v1448, %v1449
  %v1451 = vsel %vm1437, %v1384, 0.0
  %v1452 = vadd.f32 %v1450, %v1451
  %v1453 = vsel %vm1437, %v1385, 0.0
  %v1454 = vadd.f32 %v1452, %v1453
  %v1455 = vsel %vm1437, %v1386, 0.0
  %v1456 = vadd.f32 %v1454, %v1455
  %v1457 = vsel %vm1437, %v1387, 0.0
  %v1458 = vadd.f32 %v1456, %v1457
  %v1459 = vsel %vm1437, %v1388, 0.0
  %v1460 = vadd.f32 %v1458, %v1459
  %v1461 = vsel %vm1437, %v1389, 0.0
  %v1462 = vadd.f32 %v1460, %v1461
  %v1463 = vsel %vm1437, %v1390, 0.0
  %v1464 = vadd.f32 %v1462, %v1463
  %v1465 = vsel %vm1437, %v1391, 0.0
  %v1466 = vadd.f32 %v1464, %v1465
  %v1467 = vsel %vm1437, %v1392, 0.0
  %v1468 = vadd.f32 %v1466, %v1467
  %v1469 = vrot.slane %v1468, 4
  %v1470 = vadd.f32 %v1468, %v1469
  %v1471 = vrot.slane %v1470, 2
  %v1472 = vadd.f32 %v1470, %v1471
  %v1473 = vrot.slane %v1472, 1
  %v1474 = vadd.f32 %v1472, %v1473
  %v1475 = vmul.f32 %v1474, 0.0078125
  %v1476 = vsub.f32 %v1377, %v1436
  %v1477 = vsub.f32 %v1378, %v1436
  %v1478 = vsub.f32 %v1379, %v1436
  %v1479 = vsub.f32 %v1380, %v1436
  %v1480 = vsub.f32 %v1381, %v1436
  %v1481 = vsub.f32 %v1382, %v1436
  %v1482 = vsub.f32 %v1383, %v1436
  %v1483 = vsub.f32 %v1384, %v1436
  %v1484 = vsub.f32 %v1385, %v1436
  %v1485 = vsub.f32 %v1386, %v1436
  %v1486 = vsub.f32 %v1387, %v1436
  %v1487 = vsub.f32 %v1388, %v1436
  %v1488 = vsub.f32 %v1389, %v1436
  %v1489 = vsub.f32 %v1390, %v1436
  %v1490 = vsub.f32 %v1391, %v1436
  %v1491 = vsub.f32 %v1392, %v1436
  %v1492 = vsub.f32 %v1377, %v1475
  %v1493 = vsub.f32 %v1378, %v1475
  %v1494 = vsub.f32 %v1379, %v1475
  %v1495 = vsub.f32 %v1380, %v1475
  %v1496 = vsub.f32 %v1381, %v1475
  %v1497 = vsub.f32 %v1382, %v1475
  %v1498 = vsub.f32 %v1383, %v1475
  %v1499 = vsub.f32 %v1384, %v1475
  %v1500 = vsub.f32 %v1385, %v1475
  %v1501 = vsub.f32 %v1386, %v1475
  %v1502 = vsub.f32 %v1387, %v1475
  %v1503 = vsub.f32 %v1388, %v1475
  %v1504 = vsub.f32 %v1389, %v1475
  %v1505 = vsub.f32 %v1390, %v1475
  %v1506 = vsub.f32 %v1391, %v1475
  %v1507 = vsub.f32 %v1392, %v1475
  %v1508 = vmul.f32 %v1476, %v1476
  %v1509 = vmul.f32 %v1477, %v1477
  %v1510 = vmul.f32 %v1478, %v1478
  %v1511 = vmul.f32 %v1479, %v1479
  %v1512 = vmul.f32 %v1480, %v1480
  %v1513 = vmul.f32 %v1481, %v1481
  %v1514 = vmul.f32 %v1482, %v1482
  %v1515 = vmul.f32 %v1483, %v1483
  %v1516 = vmul.f32 %v1484, %v1484
  %v1517 = vmul.f32 %v1485, %v1485
  %v1518 = vmul.f32 %v1486, %v1486
  %v1519 = vmul.f32 %v1487, %v1487
  %v1520 = vmul.f32 %v1488, %v1488
  %v1521 = vmul.f32 %v1489, %v1489
  %v1522 = vmul.f32 %v1490, %v1490
  %v1523 = vmul.f32 %v1491, %v1491
  %v1524 = vsel %vm472, %v1508, 0.0
  %v1525 = vsel %vm472, %v1509, 0.0
  %v1526 = vadd.f32 %v1524, %v1525
  %v1527 = vsel %vm472, %v1510, 0.0
  %v1528 = vadd.f32 %v1526, %v1527
  %v1529 = vsel %vm472, %v1511, 0.0
  %v1530 = vadd.f32 %v1528, %v1529
  %v1531 = vsel %vm472, %v1512, 0.0
  %v1532 = vadd.f32 %v1530, %v1531
  %v1533 = vsel %vm472, %v1513, 0.0
  %v1534 = vadd.f32 %v1532, %v1533
  %v1535 = vsel %vm472, %v1514, 0.0
  %v1536 = vadd.f32 %v1534, %v1535
  %v1537 = vsel %vm472, %v1515, 0.0
  %v1538 = vadd.f32 %v1536, %v1537
  %v1539 = vsel %vm472, %v1516, 0.0
  %v1540 = vadd.f32 %v1538, %v1539
  %v1541 = vsel %vm472, %v1517, 0.0
  %v1542 = vadd.f32 %v1540, %v1541
  %v1543 = vsel %vm472, %v1518, 0.0
  %v1544 = vadd.f32 %v1542, %v1543
  %v1545 = vsel %vm472, %v1519, 0.0
  %v1546 = vadd.f32 %v1544, %v1545
  %v1547 = vsel %vm472, %v1520, 0.0
  %v1548 = vadd.f32 %v1546, %v1547
  %v1549 = vsel %vm472, %v1521, 0.0
  %v1550 = vadd.f32 %v1548, %v1549
  %v1551 = vsel %vm472, %v1522, 0.0
  %v1552 = vadd.f32 %v1550, %v1551
  %v1553 = vsel %vm472, %v1523, 0.0
  %v1554 = vadd.f32 %v1552, %v1553
  %v1555 = vrot.slane %v1554, 4
  %v1556 = vadd.f32 %v1554, %v1555
  %v1557 = vrot.slane %v1556, 2
  %v1558 = vadd.f32 %v1556, %v1557
  %v1559 = vrot.slane %v1558, 1
  %v1560 = vadd.f32 %v1558, %v1559
  %v1561 = vmul.f32 %v1560, 0.0078125
  %v1562 = vadd.f32 %v1561, 1e-05
  %v1563 = vmul.f32 %v1492, %v1492
  %v1564 = vmul.f32 %v1493, %v1493
  %v1565 = vmul.f32 %v1494, %v1494
  %v1566 = vmul.f32 %v1495, %v1495
  %v1567 = vmul.f32 %v1496, %v1496
  %v1568 = vmul.f32 %v1497, %v1497
  %v1569 = vmul.f32 %v1498, %v1498
  %v1570 = vmul.f32 %v1499, %v1499
  %v1571 = vmul.f32 %v1500, %v1500
  %v1572 = vmul.f32 %v1501, %v1501
  %v1573 = vmul.f32 %v1502, %v1502
  %v1574 = vmul.f32 %v1503, %v1503
  %v1575 = vmul.f32 %v1504, %v1504
  %v1576 = vmul.f32 %v1505, %v1505
  %v1577 = vmul.f32 %v1506, %v1506
  %v1578 = vmul.f32 %v1507, %v1507
  %v1579 = vsel %vm1437, %v1563, 0.0
  %v1580 = vsel %vm1437, %v1564, 0.0
  %v1581 = vadd.f32 %v1579, %v1580
  %v1582 = vsel %vm1437, %v1565, 0.0
  %v1583 = vadd.f32 %v1581, %v1582
  %v1584 = vsel %vm1437, %v1566, 0.0
  %v1585 = vadd.f32 %v1583, %v1584
  %v1586 = vsel %vm1437, %v1567, 0.0
  %v1587 = vadd.f32 %v1585, %v1586
  %v1588 = vsel %vm1437, %v1568, 0.0
  %v1589 = vadd.f32 %v1587, %v1588
  %v1590 = vsel %vm1437, %v1569, 0.0
  %v1591 = vadd.f32 %v1589, %v1590
  %v1592 = vsel %vm1437, %v1570, 0.0
  %v1593 = vadd.f32 %v1591, %v1592
  %v1594 = vsel %vm1437, %v1571, 0.0
  %v1595 = vadd.f32 %v1593, %v1594
  %v1596 = vsel %vm1437, %v1572, 0.0
  %v1597 = vadd.f32 %v1595, %v1596
  %v1598 = vsel %vm1437, %v1573, 0.0
  %v1599 = vadd.f32 %v1597, %v1598
  %v1600 = vsel %vm1437, %v1574, 0.0
  %v1601 = vadd.f32 %v1599, %v1600
  %v1602 = vsel %vm1437, %v1575, 0.0
  %v1603 = vadd.f32 %v1601, %v1602
  %v1604 = vsel %vm1437, %v1576, 0.0
  %v1605 = vadd.f32 %v1603, %v1604
  %v1606 = vsel %vm1437, %v1577, 0.0
  %v1607 = vadd.f32 %v1605, %v1606
  %v1608 = vsel %vm1437, %v1578, 0.0
  %v1609 = vadd.f32 %v1607, %v1608
  %v1610 = vrot.slane %v1609, 4
  %v1611 = vadd.f32 %v1609, %v1610
  %v1612 = vrot.slane %v1611, 2
  %v1613 = vadd.f32 %v1611, %v1612
  %v1614 = vrot.slane %v1613, 1
  %v1615 = vadd.f32 %v1613, %v1614
  %v1616 = vmul.f32 %v1615, 0.0078125
  %v1617 = vadd.f32 %v1616, 1e-05
  %1634 = vrot.lane.b32.xlu0 %v1492, 120
  %v1635 = vpop.permute.xlu0 %1634
  %1636 = vrot.lane.b32.xlu0 %v1493, 120
  %v1637 = vpop.permute.xlu0 %1636
  %1638 = vrot.lane.b32.xlu0 %v1494, 120
  %v1639 = vpop.permute.xlu0 %1638
  %1640 = vrot.lane.b32.xlu0 %v1495, 120
  %v1641 = vpop.permute.xlu0 %1640
  %1642 = vrot.lane.b32.xlu0 %v1496, 120
  %v1643 = vpop.permute.xlu0 %1642
  %1644 = vrot.lane.b32.xlu0 %v1497, 120
  %v1645 = vpop.permute.xlu0 %1644
  %1646 = vrot.lane.b32.xlu0 %v1498, 120
  %v1647 = vpop.permute.xlu0 %1646
  %1648 = vrot.lane.b32.xlu0 %v1499, 120
  %v1649 = vpop.permute.xlu0 %1648
  %1650 = vrot.lane.b32.xlu0 %v1500, 120
  %v1651 = vpop.permute.xlu0 %1650
  %1652 = vrot.lane.b32.xlu0 %v1501, 120
  %v1653 = vpop.permute.xlu0 %1652
  %1654 = vrot.lane.b32.xlu0 %v1502, 120
  %v1655 = vpop.permute.xlu0 %1654
  %1656 = vrot.lane.b32.xlu0 %v1503, 120
  %v1657 = vpop.permute.xlu0 %1656
  %1658 = vrot.lane.b32.xlu0 %v1504, 120
  %v1659 = vpop.permute.xlu0 %1658
  %1660 = vrot.lane.b32.xlu0 %v1505, 120
  %v1661 = vpop.permute.xlu0 %1660
  %1662 = vrot.lane.b32.xlu0 %v1506, 120
  %v1663 = vpop.permute.xlu0 %1662
  %1664 = vrot.lane.b32.xlu0 %v1507, 120
  %v1665 = vpop.permute.xlu0 %1664
  %v1682 = vmul.f32 %v1476, %v1635
  %v1683 = vmul.f32 %v1477, %v1637
  %v1684 = vmul.f32 %v1478, %v1639
  %v1685 = vmul.f32 %v1479, %v1641
  %v1686 = vmul.f32 %v1480, %v1643
  %v1687 = vmul.f32 %v1481, %v1645
  %v1688 = vmul.f32 %v1482, %v1647
  %v1689 = vmul.f32 %v1483, %v1649
  %v1690 = vmul.f32 %v1484, %v1651
  %v1691 = vmul.f32 %v1485, %v1653
  %v1692 = vmul.f32 %v1486, %v1655
  %v1693 = vmul.f32 %v1487, %v1657
  %v1694 = vmul.f32 %v1488, %v1659
  %v1695 = vmul.f32 %v1489, %v1661
  %v1696 = vmul.f32 %v1490, %v1663
  %v1697 = vmul.f32 %v1491, %v1665
  %v1698 = vsel %vm472, %v1682, 0.0
  %v1699 = vsel %vm472, %v1683, 0.0
  %v1700 = vadd.f32 %v1698, %v1699
  %v1701 = vsel %vm472, %v1684, 0.0
  %v1702 = vadd.f32 %v1700, %v1701
  %v1703 = vsel %vm472, %v1685, 0.0
  %v1704 = vadd.f32 %v1702, %v1703
  %v1705 = vsel %vm472, %v1686, 0.0
  %v1706 = vadd.f32 %v1704, %v1705
  %v1707 = vsel %vm472, %v1687, 0.0
  %v1708 = vadd.f32 %v1706, %v1707
  %v1709 = vsel %vm472, %v1688, 0.0
  %v1710 = vadd.f32 %v1708, %v1709
  %v1711 = vsel %vm472, %v1689, 0.0
  %v1712 = vadd.f32 %v1710, %v1711
  %v1713 = vsel %vm472, %v1690, 0.0
  %v1714 = vadd.f32 %v1712, %v1713
  %v1715 = vsel %vm472, %v1691, 0.0
  %v1716 = vadd.f32 %v1714, %v1715
  %v1717 = vsel %vm472, %v1692, 0.0
  %v1718 = vadd.f32 %v1716, %v1717
  %v1719 = vsel %vm472, %v1693, 0.0
  %v1720 = vadd.f32 %v1718, %v1719
  %v1721 = vsel %vm472, %v1694, 0.0
  %v1722 = vadd.f32 %v1720, %v1721
  %v1723 = vsel %vm472, %v1695, 0.0
  %v1724 = vadd.f32 %v1722, %v1723
  %v1725 = vsel %vm472, %v1696, 0.0
  %v1726 = vadd.f32 %v1724, %v1725
  %v1727 = vsel %vm472, %v1697, 0.0
  %v1728 = vadd.f32 %v1726, %v1727
  %v1729 = vrot.slane %v1728, 4
  %v1730 = vadd.f32 %v1728, %v1729
  %v1731 = vrot.slane %v1730, 2
  %v1732 = vadd.f32 %v1730, %v1731
  %v1733 = vrot.slane %v1732, 1
  %v1734 = vadd.f32 %v1732, %v1733
  %v1735 = vmul.f32 %v1734, 0.0078125
  %1737 = vrot.lane.b32.xlu0 %v1617, 120
  %v1738 = vpop.permute.xlu0 %1737
  %v1740 = vmul.f32 %v1562, %v1738
  %v1741 = vmul.f32 %v1735, %v1735
  %v1742 = vsub.f32 %v1740, %v1741
  %v1743 = vrsqrt.pop %v1742
  %v1744 = vmul.f32 %v1743, %v1742
  %v1745 = vmul.f32 %v1744, %v1743
  %v1746 = vmul.f32 0.5, %v1745
  %v1747 = vsub.f32 1.5, %v1746
  %v1748 = vmul.f32 %v1743, %v1747
  %v1749 = vmul.f32 %v1742, %v1748
  %vm1750 = vcmp.eq.f32.partialorder %v1742, inf
  %v1751 = vsel %vm1750, %v1742, %v1749
  %vm1752 = vcmp.eq.f32.partialorder %v1742, 0.0
  %v1753 = vand.u32 %v1742, 2147483648
  %v1754 = vsel %vm1752, %v1753, %v1751
  %v1755 = vmul.f32 %v1754, 2.0
  %v1756 = vadd.f32 %v1562, %v1755
  %v1757 = vadd.f32 %v1756, %v1738
  %v1758 = vrsqrt.pop %v1757
  %v1759 = vmul.f32 %v1758, %v1757
  %v1760 = vmul.f32 %v1759, %v1758
  %v1761 = vmul.f32 0.5, %v1760
  %v1762 = vsub.f32 1.5, %v1761
  %v1763 = vmul.f32 %v1758, %v1762
  %v1764 = vmul.f32 %v1757, %v1763
  %vm1765 = vcmp.eq.f32.partialorder %v1757, inf
  %v1766 = vsel %vm1765, %v1757, %v1764
  %vm1767 = vcmp.eq.f32.partialorder %v1757, 0.0
  %v1768 = vand.u32 %v1757, 2147483648
  %v1769 = vsel %vm1767, %v1768, %v1766
  %v1770 = vmul.f32 %v1754, %v1769
  %v1771 = vrcp.pop %v1770
  %1773 = vrot.lane.b32.xlu0 %v1754, 8
  %v1774 = vpop.permute.xlu0 %1773
  %v1776 = vadd.f32 %v1617, %v1774
  %1778 = vrot.lane.b32.xlu0 %v1771, 8
  %v1779 = vpop.permute.xlu0 %1778
  %v1781 = vmul.f32 %v1776, %v1779
  %v1782 = vsub.f32 0.0, %v1735
  %v1783 = vmul.f32 %v1782, %v1771
  %v1784 = vadd.f32 %v1562, %v1754
  %v1785 = vmul.f32 %v1784, %v1771
  %v1786 = vperm.slane %v1781, 0
  %1803 = vrot.lane.b32.xlu0 %v1476, 8
  %v1804 = vpop.permute.xlu0 %1803
  %1805 = vrot.lane.b32.xlu0 %v1477, 8
  %v1806 = vpop.permute.xlu0 %1805
  %1807 = vrot.lane.b32.xlu0 %v1478, 8
  %v1808 = vpop.permute.xlu0 %1807
  %1809 = vrot.lane.b32.xlu0 %v1479, 8
  %v1810 = vpop.permute.xlu0 %1809
  %1811 = vrot.lane.b32.xlu0 %v1480, 8
  %v1812 = vpop.permute.xlu0 %1811
  %1813 = vrot.lane.b32.xlu0 %v1481, 8
  %v1814 = vpop.permute.xlu0 %1813
  %1815 = vrot.lane.b32.xlu0 %v1482, 8
  %v1816 = vpop.permute.xlu0 %1815
  %1817 = vrot.lane.b32.xlu0 %v1483, 8
  %v1818 = vpop.permute.xlu0 %1817
  %1819 = vrot.lane.b32.xlu0 %v1484, 8
  %v1820 = vpop.permute.xlu0 %1819
  %1821 = vrot.lane.b32.xlu0 %v1485, 8
  %v1822 = vpop.permute.xlu0 %1821
  %1823 = vrot.lane.b32.xlu0 %v1486, 8
  %v1824 = vpop.permute.xlu0 %1823
  %1825 = vrot.lane.b32.xlu0 %v1487, 8
  %v1826 = vpop.permute.xlu0 %1825
  %1827 = vrot.lane.b32.xlu0 %v1488, 8
  %v1828 = vpop.permute.xlu0 %1827
  %1829 = vrot.lane.b32.xlu0 %v1489, 8
  %v1830 = vpop.permute.xlu0 %1829
  %1831 = vrot.lane.b32.xlu0 %v1490, 8
  %v1832 = vpop.permute.xlu0 %1831
  %1833 = vrot.lane.b32.xlu0 %v1491, 8
  %v1834 = vpop.permute.xlu0 %1833
  %v1851 = vmul.f32 %v1786, %v1804
  %v1852 = vmul.f32 %v1786, %v1806
  %v1853 = vmul.f32 %v1786, %v1808
  %v1854 = vmul.f32 %v1786, %v1810
  %v1855 = vmul.f32 %v1786, %v1812
  %v1856 = vmul.f32 %v1786, %v1814
  %v1857 = vmul.f32 %v1786, %v1816
  %v1858 = vmul.f32 %v1786, %v1818
  %v1859 = vmul.f32 %v1786, %v1820
  %v1860 = vmul.f32 %v1786, %v1822
  %v1861 = vmul.f32 %v1786, %v1824
  %v1862 = vmul.f32 %v1786, %v1826
  %v1863 = vmul.f32 %v1786, %v1828
  %v1864 = vmul.f32 %v1786, %v1830
  %v1865 = vmul.f32 %v1786, %v1832
  %v1866 = vmul.f32 %v1786, %v1834
  %v1867 = vperm.slane %v1783, 0
  %v1868 = vmul.f32 %v1867, %v1635
  %v1869 = vmul.f32 %v1867, %v1637
  %v1870 = vmul.f32 %v1867, %v1639
  %v1871 = vmul.f32 %v1867, %v1641
  %v1872 = vmul.f32 %v1867, %v1643
  %v1873 = vmul.f32 %v1867, %v1645
  %v1874 = vmul.f32 %v1867, %v1647
  %v1875 = vmul.f32 %v1867, %v1649
  %v1876 = vmul.f32 %v1867, %v1651
  %v1877 = vmul.f32 %v1867, %v1653
  %v1878 = vmul.f32 %v1867, %v1655
  %v1879 = vmul.f32 %v1867, %v1657
  %v1880 = vmul.f32 %v1867, %v1659
  %v1881 = vmul.f32 %v1867, %v1661
  %v1882 = vmul.f32 %v1867, %v1663
  %v1883 = vmul.f32 %v1867, %v1665
  %1900 = vrot.lane.b32.xlu0 %v1868, 8
  %v1901 = vpop.permute.xlu0 %1900
  %1902 = vrot.lane.b32.xlu0 %v1869, 8
  %v1903 = vpop.permute.xlu0 %1902
  %1904 = vrot.lane.b32.xlu0 %v1870, 8
  %v1905 = vpop.permute.xlu0 %1904
  %1906 = vrot.lane.b32.xlu0 %v1871, 8
  %v1907 = vpop.permute.xlu0 %1906
  %1908 = vrot.lane.b32.xlu0 %v1872, 8
  %v1909 = vpop.permute.xlu0 %1908
  %1910 = vrot.lane.b32.xlu0 %v1873, 8
  %v1911 = vpop.permute.xlu0 %1910
  %1912 = vrot.lane.b32.xlu0 %v1874, 8
  %v1913 = vpop.permute.xlu0 %1912
  %1914 = vrot.lane.b32.xlu0 %v1875, 8
  %v1915 = vpop.permute.xlu0 %1914
  %1916 = vrot.lane.b32.xlu0 %v1876, 8
  %v1917 = vpop.permute.xlu0 %1916
  %1918 = vrot.lane.b32.xlu0 %v1877, 8
  %v1919 = vpop.permute.xlu0 %1918
  %1920 = vrot.lane.b32.xlu0 %v1878, 8
  %v1921 = vpop.permute.xlu0 %1920
  %1922 = vrot.lane.b32.xlu0 %v1879, 8
  %v1923 = vpop.permute.xlu0 %1922
  %1924 = vrot.lane.b32.xlu0 %v1880, 8
  %v1925 = vpop.permute.xlu0 %1924
  %1926 = vrot.lane.b32.xlu0 %v1881, 8
  %v1927 = vpop.permute.xlu0 %1926
  %1928 = vrot.lane.b32.xlu0 %v1882, 8
  %v1929 = vpop.permute.xlu0 %1928
  %1930 = vrot.lane.b32.xlu0 %v1883, 8
  %v1931 = vpop.permute.xlu0 %1930
  %v1948 = vadd.f32 %v1851, %v1901
  %v1949 = vadd.f32 %v1852, %v1903
  %v1950 = vadd.f32 %v1853, %v1905
  %v1951 = vadd.f32 %v1854, %v1907
  %v1952 = vadd.f32 %v1855, %v1909
  %v1953 = vadd.f32 %v1856, %v1911
  %v1954 = vadd.f32 %v1857, %v1913
  %v1955 = vadd.f32 %v1858, %v1915
  %v1956 = vadd.f32 %v1859, %v1917
  %v1957 = vadd.f32 %v1860, %v1919
  %v1958 = vadd.f32 %v1861, %v1921
  %v1959 = vadd.f32 %v1862, %v1923
  %v1960 = vadd.f32 %v1863, %v1925
  %v1961 = vadd.f32 %v1864, %v1927
  %v1962 = vadd.f32 %v1865, %v1929
  %v1963 = vadd.f32 %v1866, %v1931
  %v1964 = vmul.f32 %v1867, %v1476
  %v1965 = vmul.f32 %v1867, %v1477
  %v1966 = vmul.f32 %v1867, %v1478
  %v1967 = vmul.f32 %v1867, %v1479
  %v1968 = vmul.f32 %v1867, %v1480
  %v1969 = vmul.f32 %v1867, %v1481
  %v1970 = vmul.f32 %v1867, %v1482
  %v1971 = vmul.f32 %v1867, %v1483
  %v1972 = vmul.f32 %v1867, %v1484
  %v1973 = vmul.f32 %v1867, %v1485
  %v1974 = vmul.f32 %v1867, %v1486
  %v1975 = vmul.f32 %v1867, %v1487
  %v1976 = vmul.f32 %v1867, %v1488
  %v1977 = vmul.f32 %v1867, %v1489
  %v1978 = vmul.f32 %v1867, %v1490
  %v1979 = vmul.f32 %v1867, %v1491
  %v1980 = vperm.slane %v1785, 0
  %v1981 = vmul.f32 %v1980, %v1635
  %v1982 = vmul.f32 %v1980, %v1637
  %v1983 = vmul.f32 %v1980, %v1639
  %v1984 = vmul.f32 %v1980, %v1641
  %v1985 = vmul.f32 %v1980, %v1643
  %v1986 = vmul.f32 %v1980, %v1645
  %v1987 = vmul.f32 %v1980, %v1647
  %v1988 = vmul.f32 %v1980, %v1649
  %v1989 = vmul.f32 %v1980, %v1651
  %v1990 = vmul.f32 %v1980, %v1653
  %v1991 = vmul.f32 %v1980, %v1655
  %v1992 = vmul.f32 %v1980, %v1657
  %v1993 = vmul.f32 %v1980, %v1659
  %v1994 = vmul.f32 %v1980, %v1661
  %v1995 = vmul.f32 %v1980, %v1663
  %v1996 = vmul.f32 %v1980, %v1665
  %v1997 = vadd.f32 %v1964, %v1981
  %v1998 = vadd.f32 %v1965, %v1982
  %v1999 = vadd.f32 %v1966, %v1983
  %v2000 = vadd.f32 %v1967, %v1984
  %v2001 = vadd.f32 %v1968, %v1985
  %v2002 = vadd.f32 %v1969, %v1986
  %v2003 = vadd.f32 %v1970, %v1987
  %v2004 = vadd.f32 %v1971, %v1988
  %v2005 = vadd.f32 %v1972, %v1989
  %v2006 = vadd.f32 %v1973, %v1990
  %v2007 = vadd.f32 %v1974, %v1991
  %v2008 = vadd.f32 %v1975, %v1992
  %v2009 = vadd.f32 %v1976, %v1993
  %v2010 = vadd.f32 %v1977, %v1994
  %v2011 = vadd.f32 %v1978, %v1995
  %v2012 = vadd.f32 %v1979, %v1996
  %v2014 = vperm.slane %v1393, 0
  %2015 = vrot.lane.b32.xlu0 %v2014, 8
  %v2016 = vpop.permute.xlu0 %2015
  %v2018 = vmul.f32 %v1948, %v2016
  %v2019 = vmul.f32 %v1949, %v2016
  %v2020 = vmul.f32 %v1950, %v2016
  %v2021 = vmul.f32 %v1951, %v2016
  %v2022 = vmul.f32 %v1952, %v2016
  %v2023 = vmul.f32 %v1953, %v2016
  %v2024 = vmul.f32 %v1954, %v2016
  %v2025 = vmul.f32 %v1955, %v2016
  %v2026 = vmul.f32 %v1956, %v2016
  %v2027 = vmul.f32 %v1957, %v2016
  %v2028 = vmul.f32 %v1958, %v2016
  %v2029 = vmul.f32 %v1959, %v2016
  %v2030 = vmul.f32 %v1960, %v2016
  %v2031 = vmul.f32 %v1961, %v2016
  %v2032 = vmul.f32 %v1962, %v2016
  %v2033 = vmul.f32 %v1963, %v2016
  %v2035 = vperm.slane %v1394, 0
  %v2037 = vmul.f32 %v1997, %v2035
  %v2038 = vmul.f32 %v1998, %v2035
  %v2039 = vmul.f32 %v1999, %v2035
  %v2040 = vmul.f32 %v2000, %v2035
  %v2041 = vmul.f32 %v2001, %v2035
  %v2042 = vmul.f32 %v2002, %v2035
  %v2043 = vmul.f32 %v2003, %v2035
  %v2044 = vmul.f32 %v2004, %v2035
  %v2045 = vmul.f32 %v2005, %v2035
  %v2046 = vmul.f32 %v2006, %v2035
  %v2047 = vmul.f32 %v2007, %v2035
  %v2048 = vmul.f32 %v2008, %v2035
  %v2049 = vmul.f32 %v2009, %v2035
  %v2050 = vmul.f32 %v2010, %v2035
  %v2051 = vmul.f32 %v2011, %v2035
  %v2052 = vmul.f32 %v2012, %v2035
  %2069 = vrot.lane.b32.xlu0 %v2037, 8
  %v2070 = vpop.permute.xlu0 %2069
  %2071 = vrot.lane.b32.xlu0 %v2038, 8
  %v2072 = vpop.permute.xlu0 %2071
  %2073 = vrot.lane.b32.xlu0 %v2039, 8
  %v2074 = vpop.permute.xlu0 %2073
  %2075 = vrot.lane.b32.xlu0 %v2040, 8
  %v2076 = vpop.permute.xlu0 %2075
  %2077 = vrot.lane.b32.xlu0 %v2041, 8
  %v2078 = vpop.permute.xlu0 %2077
  %2079 = vrot.lane.b32.xlu0 %v2042, 8
  %v2080 = vpop.permute.xlu0 %2079
  %2081 = vrot.lane.b32.xlu0 %v2043, 8
  %v2082 = vpop.permute.xlu0 %2081
  %2083 = vrot.lane.b32.xlu0 %v2044, 8
  %v2084 = vpop.permute.xlu0 %2083
  %2085 = vrot.lane.b32.xlu0 %v2045, 8
  %v2086 = vpop.permute.xlu0 %2085
  %2087 = vrot.lane.b32.xlu0 %v2046, 8
  %v2088 = vpop.permute.xlu0 %2087
  %2089 = vrot.lane.b32.xlu0 %v2047, 8
  %v2090 = vpop.permute.xlu0 %2089
  %2091 = vrot.lane.b32.xlu0 %v2048, 8
  %v2092 = vpop.permute.xlu0 %2091
  %2093 = vrot.lane.b32.xlu0 %v2049, 8
  %v2094 = vpop.permute.xlu0 %2093
  %2095 = vrot.lane.b32.xlu0 %v2050, 8
  %v2096 = vpop.permute.xlu0 %2095
  %2097 = vrot.lane.b32.xlu0 %v2051, 8
  %v2098 = vpop.permute.xlu0 %2097
  %2099 = vrot.lane.b32.xlu0 %v2052, 8
  %v2100 = vpop.permute.xlu0 %2099
  %v2117 = vadd.f32 %v2018, %v2070
  %v2118 = vadd.f32 %v2019, %v2072
  %v2119 = vadd.f32 %v2020, %v2074
  %v2120 = vadd.f32 %v2021, %v2076
  %v2121 = vadd.f32 %v2022, %v2078
  %v2122 = vadd.f32 %v2023, %v2080
  %v2123 = vadd.f32 %v2024, %v2082
  %v2124 = vadd.f32 %v2025, %v2084
  %v2125 = vadd.f32 %v2026, %v2086
  %v2126 = vadd.f32 %v2027, %v2088
  %v2127 = vadd.f32 %v2028, %v2090
  %v2128 = vadd.f32 %v2029, %v2092
  %v2129 = vadd.f32 %v2030, %v2094
  %v2130 = vadd.f32 %v2031, %v2096
  %v2131 = vadd.f32 %v2032, %v2098
  %v2132 = vadd.f32 %v2033, %v2100
  %v2134 = vperm.slane %v1397, 0
  %2135 = vrot.lane.b32.xlu0 %v2134, 8
  %v2136 = vpop.permute.xlu0 %2135
  %v2138 = vadd.f32 %v2117, %v2136
  %v2139 = vadd.f32 %v2118, %v2136
  %v2140 = vadd.f32 %v2119, %v2136
  %v2141 = vadd.f32 %v2120, %v2136
  %v2142 = vadd.f32 %v2121, %v2136
  %v2143 = vadd.f32 %v2122, %v2136
  %v2144 = vadd.f32 %v2123, %v2136
  %v2145 = vadd.f32 %v2124, %v2136
  %v2146 = vadd.f32 %v2125, %v2136
  %v2147 = vadd.f32 %v2126, %v2136
  %v2148 = vadd.f32 %v2127, %v2136
  %v2149 = vadd.f32 %v2128, %v2136
  %v2150 = vadd.f32 %v2129, %v2136
  %v2151 = vadd.f32 %v2130, %v2136
  %v2152 = vadd.f32 %v2131, %v2136
  %v2153 = vadd.f32 %v2132, %v2136
  %v2155 = vperm.slane %v1395, 0
  %2156 = vrot.lane.b32.xlu0 %v2155, 8
  %v2157 = vpop.permute.xlu0 %2156
  %v2159 = vmul.f32 %v1948, %v2157
  %v2160 = vmul.f32 %v1949, %v2157
  %v2161 = vmul.f32 %v1950, %v2157
  %v2162 = vmul.f32 %v1951, %v2157
  %v2163 = vmul.f32 %v1952, %v2157
  %v2164 = vmul.f32 %v1953, %v2157
  %v2165 = vmul.f32 %v1954, %v2157
  %v2166 = vmul.f32 %v1955, %v2157
  %v2167 = vmul.f32 %v1956, %v2157
  %v2168 = vmul.f32 %v1957, %v2157
  %v2169 = vmul.f32 %v1958, %v2157
  %v2170 = vmul.f32 %v1959, %v2157
  %v2171 = vmul.f32 %v1960, %v2157
  %v2172 = vmul.f32 %v1961, %v2157
  %v2173 = vmul.f32 %v1962, %v2157
  %v2174 = vmul.f32 %v1963, %v2157
  %v2176 = vperm.slane %v1396, 0
  %v2178 = vmul.f32 %v1997, %v2176
  %v2179 = vmul.f32 %v1998, %v2176
  %v2180 = vmul.f32 %v1999, %v2176
  %v2181 = vmul.f32 %v2000, %v2176
  %v2182 = vmul.f32 %v2001, %v2176
  %v2183 = vmul.f32 %v2002, %v2176
  %v2184 = vmul.f32 %v2003, %v2176
  %v2185 = vmul.f32 %v2004, %v2176
  %v2186 = vmul.f32 %v2005, %v2176
  %v2187 = vmul.f32 %v2006, %v2176
  %v2188 = vmul.f32 %v2007, %v2176
  %v2189 = vmul.f32 %v2008, %v2176
  %v2190 = vmul.f32 %v2009, %v2176
  %v2191 = vmul.f32 %v2010, %v2176
  %v2192 = vmul.f32 %v2011, %v2176
  %v2193 = vmul.f32 %v2012, %v2176
  %2210 = vrot.lane.b32.xlu0 %v2178, 8
  %v2211 = vpop.permute.xlu0 %2210
  %2212 = vrot.lane.b32.xlu0 %v2179, 8
  %v2213 = vpop.permute.xlu0 %2212
  %2214 = vrot.lane.b32.xlu0 %v2180, 8
  %v2215 = vpop.permute.xlu0 %2214
  %2216 = vrot.lane.b32.xlu0 %v2181, 8
  %v2217 = vpop.permute.xlu0 %2216
  %2218 = vrot.lane.b32.xlu0 %v2182, 8
  %v2219 = vpop.permute.xlu0 %2218
  %2220 = vrot.lane.b32.xlu0 %v2183, 8
  %v2221 = vpop.permute.xlu0 %2220
  %2222 = vrot.lane.b32.xlu0 %v2184, 8
  %v2223 = vpop.permute.xlu0 %2222
  %2224 = vrot.lane.b32.xlu0 %v2185, 8
  %v2225 = vpop.permute.xlu0 %2224
  %2226 = vrot.lane.b32.xlu0 %v2186, 8
  %v2227 = vpop.permute.xlu0 %2226
  %2228 = vrot.lane.b32.xlu0 %v2187, 8
  %v2229 = vpop.permute.xlu0 %2228
  %2230 = vrot.lane.b32.xlu0 %v2188, 8
  %v2231 = vpop.permute.xlu0 %2230
  %2232 = vrot.lane.b32.xlu0 %v2189, 8
  %v2233 = vpop.permute.xlu0 %2232
  %2234 = vrot.lane.b32.xlu0 %v2190, 8
  %v2235 = vpop.permute.xlu0 %2234
  %2236 = vrot.lane.b32.xlu0 %v2191, 8
  %v2237 = vpop.permute.xlu0 %2236
  %2238 = vrot.lane.b32.xlu0 %v2192, 8
  %v2239 = vpop.permute.xlu0 %2238
  %2240 = vrot.lane.b32.xlu0 %v2193, 8
  %v2241 = vpop.permute.xlu0 %2240
  %v2258 = vadd.f32 %v2159, %v2211
  %v2259 = vadd.f32 %v2160, %v2213
  %v2260 = vadd.f32 %v2161, %v2215
  %v2261 = vadd.f32 %v2162, %v2217
  %v2262 = vadd.f32 %v2163, %v2219
  %v2263 = vadd.f32 %v2164, %v2221
  %v2264 = vadd.f32 %v2165, %v2223
  %v2265 = vadd.f32 %v2166, %v2225
  %v2266 = vadd.f32 %v2167, %v2227
  %v2267 = vadd.f32 %v2168, %v2229
  %v2268 = vadd.f32 %v2169, %v2231
  %v2269 = vadd.f32 %v2170, %v2233
  %v2270 = vadd.f32 %v2171, %v2235
  %v2271 = vadd.f32 %v2172, %v2237
  %v2272 = vadd.f32 %v2173, %v2239
  %v2273 = vadd.f32 %v2174, %v2241
  %v2275 = vperm.slane %v1398, 0
  %2276 = vrot.lane.b32.xlu0 %v2275, 8
  %v2277 = vpop.permute.xlu0 %2276
  %v2279 = vadd.f32 %v2258, %v2277
  %v2280 = vadd.f32 %v2259, %v2277
  %v2281 = vadd.f32 %v2260, %v2277
  %v2282 = vadd.f32 %v2261, %v2277
  %v2283 = vadd.f32 %v2262, %v2277
  %v2284 = vadd.f32 %v2263, %v2277
  %v2285 = vadd.f32 %v2264, %v2277
  %v2286 = vadd.f32 %v2265, %v2277
  %v2287 = vadd.f32 %v2266, %v2277
  %v2288 = vadd.f32 %v2267, %v2277
  %v2289 = vadd.f32 %v2268, %v2277
  %v2290 = vadd.f32 %v2269, %v2277
  %v2291 = vadd.f32 %v2270, %v2277
  %v2292 = vadd.f32 %v2271, %v2277
  %v2293 = vadd.f32 %v2272, %v2277
  %v2294 = vadd.f32 %v2273, %v2277
  %v2295 = vmax.f32 %v2138, 0.0
  %v2296 = vmax.f32 %v2139, 0.0
  %v2297 = vmax.f32 %v2140, 0.0
  %v2298 = vmax.f32 %v2141, 0.0
  %v2299 = vmax.f32 %v2142, 0.0
  %v2300 = vmax.f32 %v2143, 0.0
  %v2301 = vmax.f32 %v2144, 0.0
  %v2302 = vmax.f32 %v2145, 0.0
  %v2303 = vmax.f32 %v2146, 0.0
  %v2304 = vmax.f32 %v2147, 0.0
  %v2305 = vmax.f32 %v2148, 0.0
  %v2306 = vmax.f32 %v2149, 0.0
  %v2307 = vmax.f32 %v2150, 0.0
  %v2308 = vmax.f32 %v2151, 0.0
  %v2309 = vmax.f32 %v2152, 0.0
  %v2310 = vmax.f32 %v2153, 0.0
  %v2311 = vmax.f32 %v2279, 0.0
  %v2312 = vmax.f32 %v2280, 0.0
  %v2313 = vmax.f32 %v2281, 0.0
  %v2314 = vmax.f32 %v2282, 0.0
  %v2315 = vmax.f32 %v2283, 0.0
  %v2316 = vmax.f32 %v2284, 0.0
  %v2317 = vmax.f32 %v2285, 0.0
  %v2318 = vmax.f32 %v2286, 0.0
  %v2319 = vmax.f32 %v2287, 0.0
  %v2320 = vmax.f32 %v2288, 0.0
  %v2321 = vmax.f32 %v2289, 0.0
  %v2322 = vmax.f32 %v2290, 0.0
  %v2323 = vmax.f32 %v2291, 0.0
  %v2324 = vmax.f32 %v2292, 0.0
  %v2325 = vmax.f32 %v2293, 0.0
  %v2326 = vmax.f32 %v2294, 0.0
  %2343 = vrot.lane.b32.xlu0 %v2295, 120
  %v2344 = vpop.permute.xlu0 %2343
  %2345 = vrot.lane.b32.xlu0 %v2296, 120
  %v2346 = vpop.permute.xlu0 %2345
  %2347 = vrot.lane.b32.xlu0 %v2297, 120
  %v2348 = vpop.permute.xlu0 %2347
  %2349 = vrot.lane.b32.xlu0 %v2298, 120
  %v2350 = vpop.permute.xlu0 %2349
  %2351 = vrot.lane.b32.xlu0 %v2299, 120
  %v2352 = vpop.permute.xlu0 %2351
  %2353 = vrot.lane.b32.xlu0 %v2300, 120
  %v2354 = vpop.permute.xlu0 %2353
  %2355 = vrot.lane.b32.xlu0 %v2301, 120
  %v2356 = vpop.permute.xlu0 %2355
  %2357 = vrot.lane.b32.xlu0 %v2302, 120
  %v2358 = vpop.permute.xlu0 %2357
  %2359 = vrot.lane.b32.xlu0 %v2303, 120
  %v2360 = vpop.permute.xlu0 %2359
  %2361 = vrot.lane.b32.xlu0 %v2304, 120
  %v2362 = vpop.permute.xlu0 %2361
  %2363 = vrot.lane.b32.xlu0 %v2305, 120
  %v2364 = vpop.permute.xlu0 %2363
  %2365 = vrot.lane.b32.xlu0 %v2306, 120
  %v2366 = vpop.permute.xlu0 %2365
  %2367 = vrot.lane.b32.xlu0 %v2307, 120
  %v2368 = vpop.permute.xlu0 %2367
  %2369 = vrot.lane.b32.xlu0 %v2308, 120
  %v2370 = vpop.permute.xlu0 %2369
  %2371 = vrot.lane.b32.xlu0 %v2309, 120
  %v2372 = vpop.permute.xlu0 %2371
  %2373 = vrot.lane.b32.xlu0 %v2310, 120
  %v2374 = vpop.permute.xlu0 %2373
  %v2391 = vsel %vm472, %v2344, %v2311
  %v2392 = vsel %vm472, %v2346, %v2312
  %v2393 = vsel %vm472, %v2348, %v2313
  %v2394 = vsel %vm472, %v2350, %v2314
  %v2395 = vsel %vm472, %v2352, %v2315
  %v2396 = vsel %vm472, %v2354, %v2316
  %v2397 = vsel %vm472, %v2356, %v2317
  %v2398 = vsel %vm472, %v2358, %v2318
  %v2399 = vsel %vm472, %v2360, %v2319
  %v2400 = vsel %vm472, %v2362, %v2320
  %v2401 = vsel %vm472, %v2364, %v2321
  %v2402 = vsel %vm472, %v2366, %v2322
  %v2403 = vsel %vm472, %v2368, %v2323
  %v2404 = vsel %vm472, %v2370, %v2324
  %v2405 = vsel %vm472, %v2372, %v2325
  %v2406 = vsel %vm472, %v2374, %v2326
  %vm2407 = vcmask 130048
  %2408 = vst.msk [vmem:[#allocation2] sm:$0xff] %vm2407, 0.0
  %vm2409 = vcmask 123904
  %2410 = vst.msk [vmem:[#allocation2 + $0x8] sm:$0x3] %vm2409, 0.0
  %2411 = vst.msk [vmem:[#allocation2 + $0xa0] sm:$0xff] %vm2407, 0.0
  %2412 = vst.msk [vmem:[#allocation2 + $0xa8] sm:$0x3] %vm2409, 0.0
  %s2413 = scalar_lea.vmem [#allocation2], 144
  %2414 = vst.msk [vmem:[%s2413] sm:$0xff] %vm2407, 0.0
  %2415 = vst.msk [vmem:[%s2413 + $0x8] sm:$0x3] %vm2409, 0.0
  %2416 = vst.msk [vmem:[%s2413 + $0xa0] sm:$0xff] %vm2407, 0.0
  %2417 = vst.msk [vmem:[%s2413 + $0xa8] sm:$0x3] %vm2409, 0.0
  %vm2418 = vcmask 122880
  %2419 = vst.msk [vmem:[#allocation2] sm:$0x1] %vm2418, 0.0
  %2420 = vst.msk [vmem:[#allocation2 + $0x10] sm:$0x1] %vm2418, 0.0
  %2421 = vst.msk [vmem:[#allocation2 + $0x20] sm:$0x1] %vm2418, 0.0
  %2422 = vst.msk [vmem:[#allocation2 + $0x30] sm:$0x1] %vm2418, 0.0
  %2423 = vst.msk [vmem:[#allocation2 + $0x40] sm:$0x1] %vm2418, 0.0
  %2424 = vst.msk [vmem:[#allocation2 + $0x50] sm:$0x1] %vm2418, 0.0
  %2425 = vst.msk [vmem:[#allocation2 + $0x60] sm:$0x1] %vm2418, 0.0
  %2426 = vst.msk [vmem:[#allocation2 + $0x70] sm:$0x1] %vm2418, 0.0
  %2427 = vst.msk [vmem:[#allocation2 + $0x80] sm:$0x1] %vm2418, 0.0
  %2428 = vst.msk [vmem:[#allocation2 + $0x90] sm:$0x1] %vm2418, 0.0
  %2429 = vst.msk [vmem:[#allocation2 + $0xa0] sm:$0x1] %vm2418, 0.0
  %2430 = vst.msk [vmem:[#allocation2 + $0xb0] sm:$0x1] %vm2418, 0.0
  %2431 = vst.msk [vmem:[#allocation2 + $0xc0] sm:$0x1] %vm2418, 0.0
  %2432 = vst.msk [vmem:[#allocation2 + $0xd0] sm:$0x1] %vm2418, 0.0
  %2433 = vst.msk [vmem:[#allocation2 + $0xe0] sm:$0x1] %vm2418, 0.0
  %2434 = vst.msk [vmem:[#allocation2 + $0xf0] sm:$0x1] %vm2418, 0.0
  %2435 = vst.msk [vmem:[#allocation2 + $0x100] sm:$0x1] %vm2418, 0.0
  %2436 = vst.msk [vmem:[#allocation2 + $0x110] sm:$0x1] %vm2418, 0.0
  %2437 = vst.msk [vmem:[#allocation2 + $0x120] sm:$0x1] %vm2418, 0.0
  %2438 = vst.msk [vmem:[#allocation2 + $0x130] sm:$0x1] %vm2418, 0.0
  %2439 = vst.msk [vmem:[#allocation2 + $0x9] sm:$0x1] %vm2418, 0.0
  %2440 = vst.msk [vmem:[#allocation2 + $0x19] sm:$0x1] %vm2418, 0.0
  %2441 = vst.msk [vmem:[#allocation2 + $0x29] sm:$0x1] %vm2418, 0.0
  %2442 = vst.msk [vmem:[#allocation2 + $0x39] sm:$0x1] %vm2418, 0.0
  %2443 = vst.msk [vmem:[#allocation2 + $0x49] sm:$0x1] %vm2418, 0.0
  %2444 = vst.msk [vmem:[#allocation2 + $0x59] sm:$0x1] %vm2418, 0.0
  %2445 = vst.msk [vmem:[#allocation2 + $0x69] sm:$0x1] %vm2418, 0.0
  %2446 = vst.msk [vmem:[#allocation2 + $0x79] sm:$0x1] %vm2418, 0.0
  %2447 = vst.msk [vmem:[#allocation2 + $0x89] sm:$0x1] %vm2418, 0.0
  %2448 = vst.msk [vmem:[#allocation2 + $0x99] sm:$0x1] %vm2418, 0.0
  %2449 = vst.msk [vmem:[#allocation2 + $0xa9] sm:$0x1] %vm2418, 0.0
  %2450 = vst.msk [vmem:[#allocation2 + $0xb9] sm:$0x1] %vm2418, 0.0
  %2451 = vst.msk [vmem:[#allocation2 + $0xc9] sm:$0x1] %vm2418, 0.0
  %2452 = vst.msk [vmem:[#allocation2 + $0xd9] sm:$0x1] %vm2418, 0.0
  %2453 = vst.msk [vmem:[#allocation2 + $0xe9] sm:$0x1] %vm2418, 0.0
  %2454 = vst.msk [vmem:[#allocation2 + $0xf9] sm:$0x1] %vm2418, 0.0
  %2455 = vst.msk [vmem:[#allocation2 + $0x109] sm:$0x1] %vm2418, 0.0
  %2456 = vst.msk [vmem:[#allocation2 + $0x119] sm:$0x1] %vm2418, 0.0
  %2457 = vst.msk [vmem:[#allocation2 + $0x129] sm:$0x1] %vm2418, 0.0
  %2458 = vst.msk [vmem:[#allocation2 + $0x139] sm:$0x1] %vm2418, 0.0
  %s2459 = scalar_lea.vmem [#allocation2], 16
  %2460 = vst.msk [vmem:[%s2459 + $0x1] sm:$0xff] %vm2407, %v2391
  %2461 = vst.msk [vmem:[%s2459 + $0x11] sm:$0xff] %vm2407, %v2392
  %2462 = vst.msk [vmem:[%s2459 + $0x21] sm:$0xff] %vm2407, %v2393
  %2463 = vst.msk [vmem:[%s2459 + $0x31] sm:$0xff] %vm2407, %v2394
  %2464 = vst.msk [vmem:[%s2459 + $0x41] sm:$0xff] %vm2407, %v2395
  %2465 = vst.msk [vmem:[%s2459 + $0x51] sm:$0xff] %vm2407, %v2396
  %2466 = vst.msk [vmem:[%s2459 + $0x61] sm:$0xff] %vm2407, %v2397
  %2467 = vst.msk [vmem:[%s2459 + $0x71] sm:$0xff] %vm2407, %v2398
  %2468 = vst.msk [vmem:[%s2459 + $0xa1] sm:$0xff] %vm2407, %v2399
  %2469 = vst.msk [vmem:[%s2459 + $0xb1] sm:$0xff] %vm2407, %v2400
  %2470 = vst.msk [vmem:[%s2459 + $0xc1] sm:$0xff] %vm2407, %v2401
  %2471 = vst.msk [vmem:[%s2459 + $0xd1] sm:$0xff] %vm2407, %v2402
  %2472 = vst.msk [vmem:[%s2459 + $0xe1] sm:$0xff] %vm2407, %v2403
  %2473 = vst.msk [vmem:[%s2459 + $0xf1] sm:$0xff] %vm2407, %v2404
  %2474 = vst.msk [vmem:[%s2459 + $0x101] sm:$0xff] %vm2407, %v2405
  %2475 = vst.msk [vmem:[%s2459 + $0x111] sm:$0xff] %vm2407, %v2406
  %v2476 = vld [vmem:[#allocation2] sm:$0xff]
  %v2477 = vld [vmem:[#allocation2 + $0x8] sm:$0x3]
  %v2478 = vld [vmem:[#allocation2 + $0x10] sm:$0xff]
  %v2479 = vld [vmem:[#allocation2 + $0x18] sm:$0x3]
  %v2480 = vld [vmem:[#allocation2 + $0x20] sm:$0xff]
  %v2481 = vld [vmem:[#allocation2 + $0x28] sm:$0x3]
  %v2482 = vld [vmem:[#allocation2 + $0x30] sm:$0xff]
  %v2483 = vld [vmem:[#allocation2 + $0x38] sm:$0x3]
  %v2484 = vld [vmem:[#allocation2 + $0x40] sm:$0xff]
  %v2485 = vld [vmem:[#allocation2 + $0x48] sm:$0x3]
  %v2486 = vld [vmem:[#allocation2 + $0x50] sm:$0xff]
  %v2487 = vld [vmem:[#allocation2 + $0x58] sm:$0x3]
  %v2488 = vld [vmem:[#allocation2 + $0x60] sm:$0xff]
  %v2489 = vld [vmem:[#allocation2 + $0x68] sm:$0x3]
  %v2490 = vld [vmem:[#allocation2 + $0x70] sm:$0xff]
  %v2491 = vld [vmem:[#allocation2 + $0x78] sm:$0x3]
  %v2492 = vld [vmem:[#allocation2 + $0x80] sm:$0xff]
  %v2493 = vld [vmem:[#allocation2 + $0x88] sm:$0x3]
  %v2494 = vld [vmem:[#allocation2 + $0x90] sm:$0xff]
  %v2495 = vld [vmem:[#allocation2 + $0x98] sm:$0x3]
  %v2496 = vld [vmem:[#allocation2 + $0xa0] sm:$0xff]
  %v2497 = vld [vmem:[#allocation2 + $0xa8] sm:$0x3]
  %v2498 = vld [vmem:[#allocation2 + $0xb0] sm:$0xff]
  %v2499 = vld [vmem:[#allocation2 + $0xb8] sm:$0x3]
  %v2500 = vld [vmem:[#allocation2 + $0xc0] sm:$0xff]
  %v2501 = vld [vmem:[#allocation2 + $0xc8] sm:$0x3]
  %v2502 = vld [vmem:[#allocation2 + $0xd0] sm:$0xff]
  %v2503 = vld [vmem:[#allocation2 + $0xd8] sm:$0x3]
  %v2504 = vld [vmem:[#allocation2 + $0xe0] sm:$0xff]
  %v2505 = vld [vmem:[#allocation2 + $0xe8] sm:$0x3]
  %v2506 = vld [vmem:[#allocation2 + $0xf0] sm:$0xff]
  %v2507 = vld [vmem:[#allocation2 + $0xf8] sm:$0x3]
  %v2508 = vld [vmem:[#allocation2 + $0x100] sm:$0xff]
  %v2509 = vld [vmem:[#allocation2 + $0x108] sm:$0x3]
  %v2510 = vld [vmem:[#allocation2 + $0x110] sm:$0xff]
  %v2511 = vld [vmem:[#allocation2 + $0x118] sm:$0x3]
  %v2512 = vld [vmem:[#allocation2 + $0x120] sm:$0xff]
  %v2513 = vld [vmem:[#allocation2 + $0x128] sm:$0x3]
  %v2514 = vld [vmem:[#allocation2 + $0x130] sm:$0xff]
  %v2515 = vld [vmem:[#allocation2 + $0x138] sm:$0x3]
  %v2516 = vpack.c.bf16 %v2478, %v2476
  %v2517 = vpack.c.bf16 %v2482, %v2480
  %v2518 = vpack.c.bf16 %v2486, %v2484
  %v2519 = vpack.c.bf16 %v2490, %v2488
  %v2520 = vpack.c.bf16 %v2498, %v2496
  %v2521 = vpack.c.bf16 %v2502, %v2500
  %v2522 = vpack.c.bf16 %v2506, %v2504
  %v2523 = vpack.c.bf16 %v2510, %v2508
  %v2524 = vld [vmem:[%s5] sm:$0xf]
  %v2525 = vld [vmem:[%s5 + $0x4] sm:$0xf]
  %v2558 = vrot.slane %v2476, 1
  %v2559 = vrot.slane %v2477, 1
  %v2560 = vsel %vm397, %v2558, %v2559
  %v2561 = vrot.slane %v2478, 1
  %v2562 = vrot.slane %v2479, 1
  %v2563 = vsel %vm397, %v2561, %v2562
  %v2564 = vrot.slane %v2480, 1
  %v2565 = vrot.slane %v2481, 1
  %v2566 = vsel %vm397, %v2564, %v2565
  %v2567 = vrot.slane %v2482, 1
  %v2568 = vrot.slane %v2483, 1
  %v2569 = vsel %vm397, %v2567, %v2568
  %v2570 = vrot.slane %v2484, 1
  %v2571 = vrot.slane %v2485, 1
  %v2572 = vsel %vm397, %v2570, %v2571
  %v2573 = vrot.slane %v2486, 1
  %v2574 = vrot.slane %v2487, 1
  %v2575 = vsel %vm397, %v2573, %v2574
  %v2576 = vrot.slane %v2488, 1
  %v2577 = vrot.slane %v2489, 1
  %v2578 = vsel %vm397, %v2576, %v2577
  %v2579 = vrot.slane %v2490, 1
  %v2580 = vrot.slane %v2491, 1
  %v2581 = vsel %vm397, %v2579, %v2580
  %v2582 = vrot.slane %v2496, 1
  %v2583 = vrot.slane %v2497, 1
  %v2584 = vsel %vm397, %v2582, %v2583
  %v2585 = vrot.slane %v2498, 1
  %v2586 = vrot.slane %v2499, 1
  %v2587 = vsel %vm397, %v2585, %v2586
  %v2588 = vrot.slane %v2500, 1
  %v2589 = vrot.slane %v2501, 1
  %v2590 = vsel %vm397, %v2588, %v2589
  %v2591 = vrot.slane %v2502, 1
  %v2592 = vrot.slane %v2503, 1
  %v2593 = vsel %vm397, %v2591, %v2592
  %v2594 = vrot.slane %v2504, 1
  %v2595 = vrot.slane %v2505, 1
  %v2596 = vsel %vm397, %v2594, %v2595
  %v2597 = vrot.slane %v2506, 1
  %v2598 = vrot.slane %v2507, 1
  %v2599 = vsel %vm397, %v2597, %v2598
  %v2600 = vrot.slane %v2508, 1
  %v2601 = vrot.slane %v2509, 1
  %v2602 = vsel %vm397, %v2600, %v2601
  %v2603 = vrot.slane %v2510, 1
  %v2604 = vrot.slane %v2511, 1
  %v2605 = vsel %vm397, %v2603, %v2604
  %v2622 = vpack.c.bf16 %v2563, %v2560
  %v2623 = vpack.c.bf16 %v2569, %v2566
  %v2624 = vpack.c.bf16 %v2575, %v2572
  %v2625 = vpack.c.bf16 %v2581, %v2578
  %v2626 = vpack.c.bf16 %v2587, %v2584
  %v2627 = vpack.c.bf16 %v2593, %v2590
  %v2628 = vpack.c.bf16 %v2599, %v2596
  %v2629 = vpack.c.bf16 %v2605, %v2602
  %s2630 = scalar_lea.vmem %s5, 8
  %v2631 = vld [vmem:[%s2630] sm:$0xf]
  %v2632 = vld [vmem:[%s2630 + $0x4] sm:$0xf]
  %v2635 = vunpack.c.l.b16 %v2631
  %v2636 = vunpack.c.l.b16 %v2632
  %v2637 = vpack.c.b16 %v2636, %v2635
  %v2640 = vsel %vm2407, %v2622, 0
  %v2643 = vsel %vm2407, %v2623, 0
  %v2646 = vsel %vm2407, %v2624, 0
  %v2649 = vsel %vm2407, %v2625, 0
  %v2652 = vsel %vm2407, %v2626, 0
  %v2655 = vsel %vm2407, %v2627, 0
  %v2658 = vsel %vm2407, %v2628, 0
  %v2661 = vsel %vm2407, %v2629, 0
  %2663 = vmatpush.bf16.msra.mxu0 0
  %2664 = vmatpush.bf16.msra.mxu0 0
  %2665 = vmatpush.bf16.msra.mxu0 0
  %2666 = vmatpush.bf16.msra.mxu0 0
  %2667 = vmatpush.bf16.msra.mxu0 0
  %2668 = vmatpush.bf16.msra.mxu0 0
  %2669 = vmatpush.bf16.msra.mxu0 0
  %2670 = vmatpush.bf16.msra.mxu0 %v2637
  %2671 = vmatmul.bf16.gmra.mxu0 %v2640
  %v2672 = vpop.f32.mrf.mxu0
  %v2673 = vadd.f32 0.0, %v2672
  %v2674 = vpop.f32.mrf.mxu0
  %v2675 = vadd.f32 0.0, %v2674
  %2676 = vmatmul.bf16.gmra.mxu0 %v2643
  %v2677 = vpop.f32.mrf.mxu0
  %v2678 = vadd.f32 0.0, %v2677
  %v2679 = vpop.f32.mrf.mxu0
  %v2680 = vadd.f32 0.0, %v2679
  %2681 = vmatmul.bf16.gmra.mxu0 %v2646
  %v2682 = vpop.f32.mrf.mxu0
  %v2683 = vadd.f32 0.0, %v2682
  %v2684 = vpop.f32.mrf.mxu0
  %v2685 = vadd.f32 0.0, %v2684
  %2686 = vmatmul.bf16.gmra.mxu0 %v2649
  %v2687 = vpop.f32.mrf.mxu0
  %v2688 = vadd.f32 0.0, %v2687
  %v2689 = vpop.f32.mrf.mxu0
  %v2690 = vadd.f32 0.0, %v2689
  %2691 = vmatmul.bf16.gmra.mxu0 %v2652
  %v2692 = vpop.f32.mrf.mxu0
  %v2693 = vadd.f32 0.0, %v2692
  %v2694 = vpop.f32.mrf.mxu0
  %v2695 = vadd.f32 0.0, %v2694
  %2696 = vmatmul.bf16.gmra.mxu0 %v2655
  %v2697 = vpop.f32.mrf.mxu0
  %v2698 = vadd.f32 0.0, %v2697
  %v2699 = vpop.f32.mrf.mxu0
  %v2700 = vadd.f32 0.0, %v2699
  %2701 = vmatmul.bf16.gmra.mxu0 %v2658
  %v2702 = vpop.f32.mrf.mxu0
  %v2703 = vadd.f32 0.0, %v2702
  %v2704 = vpop.f32.mrf.mxu0
  %v2705 = vadd.f32 0.0, %v2704
  %2706 = vmatmul.bf16.gmra.mxu0 %v2661
  %v2707 = vpop.f32.mrf.mxu0
  %v2708 = vadd.f32 0.0, %v2707
  %v2709 = vpop.f32.mrf.mxu0
  %v2710 = vadd.f32 0.0, %v2709
  %2711 = vdwg.mxu0
  %v2714 = vunpack.c.l.b16 %v2524
  %v2715 = vunpack.c.l.b16 %v2525
  %v2716 = vpack.c.b16 %v2715, %v2714
  %v2719 = vsel %vm2407, %v2516, 0
  %v2722 = vsel %vm2407, %v2517, 0
  %v2725 = vsel %vm2407, %v2518, 0
  %v2728 = vsel %vm2407, %v2519, 0
  %v2731 = vsel %vm2407, %v2520, 0
  %v2734 = vsel %vm2407, %v2521, 0
  %v2737 = vsel %vm2407, %v2522, 0
  %v2740 = vsel %vm2407, %v2523, 0
  %2742 = vmatpush.bf16.msra.mxu0 0
  %2743 = vmatpush.bf16.msra.mxu0 0
  %2744 = vmatpush.bf16.msra.mxu0 0
  %2745 = vmatpush.bf16.msra.mxu0 0
  %2746 = vmatpush.bf16.msra.mxu0 0
  %2747 = vmatpush.bf16.msra.mxu0 0
  %2748 = vmatpush.bf16.msra.mxu0 0
  %2749 = vmatpush.bf16.msra.mxu0 %v2716
  %2750 = vmatmul.bf16.gmra.mxu0 %v2719
  %v2751 = vpop.f32.mrf.mxu0
  %v2752 = vadd.f32 %v2673, %v2751
  %v2753 = vpop.f32.mrf.mxu0
  %v2754 = vadd.f32 %v2675, %v2753
  %2755 = vmatmul.bf16.gmra.mxu0 %v2722
  %v2756 = vpop.f32.mrf.mxu0
  %v2757 = vadd.f32 %v2678, %v2756
  %v2758 = vpop.f32.mrf.mxu0
  %v2759 = vadd.f32 %v2680, %v2758
  %2760 = vmatmul.bf16.gmra.mxu0 %v2725
  %v2761 = vpop.f32.mrf.mxu0
  %v2762 = vadd.f32 %v2683, %v2761
  %v2763 = vpop.f32.mrf.mxu0
  %v2764 = vadd.f32 %v2685, %v2763
  %2765 = vmatmul.bf16.gmra.mxu0 %v2728
  %v2766 = vpop.f32.mrf.mxu0
  %v2767 = vadd.f32 %v2688, %v2766
  %v2768 = vpop.f32.mrf.mxu0
  %v2769 = vadd.f32 %v2690, %v2768
  %2770 = vmatmul.bf16.gmra.mxu0 %v2731
  %v2771 = vpop.f32.mrf.mxu0
  %v2772 = vadd.f32 %v2693, %v2771
  %v2773 = vpop.f32.mrf.mxu0
  %v2774 = vadd.f32 %v2695, %v2773
  %2775 = vmatmul.bf16.gmra.mxu0 %v2734
  %v2776 = vpop.f32.mrf.mxu0
  %v2777 = vadd.f32 %v2698, %v2776
  %v2778 = vpop.f32.mrf.mxu0
  %v2779 = vadd.f32 %v2700, %v2778
  %2780 = vmatmul.bf16.gmra.mxu0 %v2737
  %v2781 = vpop.f32.mrf.mxu0
  %v2782 = vadd.f32 %v2703, %v2781
  %v2783 = vpop.f32.mrf.mxu0
  %v2784 = vadd.f32 %v2705, %v2783
  %2785 = vmatmul.bf16.gmra.mxu0 %v2740
  %v2786 = vpop.f32.mrf.mxu0
  %v2787 = vadd.f32 %v2708, %v2786
  %v2788 = vpop.f32.mrf.mxu0
  %v2789 = vadd.f32 %v2710, %v2788
  %2790 = vdwg.mxu0
  %v2791 = vrot.slane %v2476, 2
  %v2792 = vrot.slane %v2477, 2
  %v2793 = vsel %vm626, %v2791, %v2792
  %v2794 = vrot.slane %v2478, 2
  %v2795 = vrot.slane %v2479, 2
  %v2796 = vsel %vm626, %v2794, %v2795
  %v2797 = vrot.slane %v2480, 2
  %v2798 = vrot.slane %v2481, 2
  %v2799 = vsel %vm626, %v2797, %v2798
  %v2800 = vrot.slane %v2482, 2
  %v2801 = vrot.slane %v2483, 2
  %v2802 = vsel %vm626, %v2800, %v2801
  %v2803 = vrot.slane %v2484, 2
  %v2804 = vrot.slane %v2485, 2
  %v2805 = vsel %vm626, %v2803, %v2804
  %v2806 = vrot.slane %v2486, 2
  %v2807 = vrot.slane %v2487, 2
  %v2808 = vsel %vm626, %v2806, %v2807
  %v2809 = vrot.slane %v2488, 2
  %v2810 = vrot.slane %v2489, 2
  %v2811 = vsel %vm626, %v2809, %v2810
  %v2812 = vrot.slane %v2490, 2
  %v2813 = vrot.slane %v2491, 2
  %v2814 = vsel %vm626, %v2812, %v2813
  %v2815 = vrot.slane %v2496, 2
  %v2816 = vrot.slane %v2497, 2
  %v2817 = vsel %vm626, %v2815, %v2816
  %v2818 = vrot.slane %v2498, 2
  %v2819 = vrot.slane %v2499, 2
  %v2820 = vsel %vm626, %v2818, %v2819
  %v2821 = vrot.slane %v2500, 2
  %v2822 = vrot.slane %v2501, 2
  %v2823 = vsel %vm626, %v2821, %v2822
  %v2824 = vrot.slane %v2502, 2
  %v2825 = vrot.slane %v2503, 2
  %v2826 = vsel %vm626, %v2824, %v2825
  %v2827 = vrot.slane %v2504, 2
  %v2828 = vrot.slane %v2505, 2
  %v2829 = vsel %vm626, %v2827, %v2828
  %v2830 = vrot.slane %v2506, 2
  %v2831 = vrot.slane %v2507, 2
  %v2832 = vsel %vm626, %v2830, %v2831
  %v2833 = vrot.slane %v2508, 2
  %v2834 = vrot.slane %v2509, 2
  %v2835 = vsel %vm626, %v2833, %v2834
  %v2836 = vrot.slane %v2510, 2
  %v2837 = vrot.slane %v2511, 2
  %v2838 = vsel %vm626, %v2836, %v2837
  %v2855 = vpack.c.bf16 %v2796, %v2793
  %v2856 = vpack.c.bf16 %v2802, %v2799
  %v2857 = vpack.c.bf16 %v2808, %v2805
  %v2858 = vpack.c.bf16 %v2814, %v2811
  %v2859 = vpack.c.bf16 %v2820, %v2817
  %v2860 = vpack.c.bf16 %v2826, %v2823
  %v2861 = vpack.c.bf16 %v2832, %v2829
  %v2862 = vpack.c.bf16 %v2838, %v2835
  %s2863 = scalar_lea.vmem %s5, 16
  %v2864 = vld [vmem:[%s2863] sm:$0xf]
  %v2865 = vld [vmem:[%s2863 + $0x4] sm:$0xf]
  %v2868 = vunpack.c.l.b16 %v2864
  %v2869 = vunpack.c.l.b16 %v2865
  %v2870 = vpack.c.b16 %v2869, %v2868
  %v2873 = vsel %vm2407, %v2855, 0
  %v2876 = vsel %vm2407, %v2856, 0
  %v2879 = vsel %vm2407, %v2857, 0
  %v2882 = vsel %vm2407, %v2858, 0
  %v2885 = vsel %vm2407, %v2859, 0
  %v2888 = vsel %vm2407, %v2860, 0
  %v2891 = vsel %vm2407, %v2861, 0
  %v2894 = vsel %vm2407, %v2862, 0
  %2896 = vmatpush.bf16.msra.mxu0 0
  %2897 = vmatpush.bf16.msra.mxu0 0
  %2898 = vmatpush.bf16.msra.mxu0 0
  %2899 = vmatpush.bf16.msra.mxu0 0
  %2900 = vmatpush.bf16.msra.mxu0 0
  %2901 = vmatpush.bf16.msra.mxu0 0
  %2902 = vmatpush.bf16.msra.mxu0 0
  %2903 = vmatpush.bf16.msra.mxu0 %v2870
  %2904 = vmatmul.bf16.gmra.mxu0 %v2873
  %v2905 = vpop.f32.mrf.mxu0
  %v2906 = vadd.f32 0.0, %v2905
  %v2907 = vpop.f32.mrf.mxu0
  %v2908 = vadd.f32 0.0, %v2907
  %2909 = vmatmul.bf16.gmra.mxu0 %v2876
  %v2910 = vpop.f32.mrf.mxu0
  %v2911 = vadd.f32 0.0, %v2910
  %v2912 = vpop.f32.mrf.mxu0
  %v2913 = vadd.f32 0.0, %v2912
  %2914 = vmatmul.bf16.gmra.mxu0 %v2879
  %v2915 = vpop.f32.mrf.mxu0
  %v2916 = vadd.f32 0.0, %v2915
  %v2917 = vpop.f32.mrf.mxu0
  %v2918 = vadd.f32 0.0, %v2917
  %2919 = vmatmul.bf16.gmra.mxu0 %v2882
  %v2920 = vpop.f32.mrf.mxu0
  %v2921 = vadd.f32 0.0, %v2920
  %v2922 = vpop.f32.mrf.mxu0
  %v2923 = vadd.f32 0.0, %v2922
  %2924 = vmatmul.bf16.gmra.mxu0 %v2885
  %v2925 = vpop.f32.mrf.mxu0
  %v2926 = vadd.f32 0.0, %v2925
  %v2927 = vpop.f32.mrf.mxu0
  %v2928 = vadd.f32 0.0, %v2927
  %2929 = vmatmul.bf16.gmra.mxu0 %v2888
  %v2930 = vpop.f32.mrf.mxu0
  %v2931 = vadd.f32 0.0, %v2930
  %v2932 = vpop.f32.mrf.mxu0
  %v2933 = vadd.f32 0.0, %v2932
  %2934 = vmatmul.bf16.gmra.mxu0 %v2891
  %v2935 = vpop.f32.mrf.mxu0
  %v2936 = vadd.f32 0.0, %v2935
  %v2937 = vpop.f32.mrf.mxu0
  %v2938 = vadd.f32 0.0, %v2937
  %2939 = vmatmul.bf16.gmra.mxu0 %v2894
  %v2940 = vpop.f32.mrf.mxu0
  %v2941 = vadd.f32 0.0, %v2940
  %v2942 = vpop.f32.mrf.mxu0
  %v2943 = vadd.f32 0.0, %v2942
  %2944 = vdwg.mxu0
  %v2945 = vadd.f32 %v2752, %v2906
  %v2946 = vadd.f32 %v2754, %v2908
  %v2947 = vadd.f32 %v2757, %v2911
  %v2948 = vadd.f32 %v2759, %v2913
  %v2949 = vadd.f32 %v2762, %v2916
  %v2950 = vadd.f32 %v2764, %v2918
  %v2951 = vadd.f32 %v2767, %v2921
  %v2952 = vadd.f32 %v2769, %v2923
  %v2953 = vadd.f32 %v2772, %v2926
  %v2954 = vadd.f32 %v2774, %v2928
  %v2955 = vadd.f32 %v2777, %v2931
  %v2956 = vadd.f32 %v2779, %v2933
  %v2957 = vadd.f32 %v2782, %v2936
  %v2958 = vadd.f32 %v2784, %v2938
  %v2959 = vadd.f32 %v2787, %v2941
  %v2960 = vadd.f32 %v2789, %v2943
  %v2961 = vpack.c.bf16 %v2480, %v2478
  %v2962 = vpack.c.bf16 %v2484, %v2482
  %v2963 = vpack.c.bf16 %v2488, %v2486
  %v2964 = vpack.c.bf16 %v2492, %v2490
  %v2965 = vpack.c.bf16 %v2500, %v2498
  %v2966 = vpack.c.bf16 %v2504, %v2502
  %v2967 = vpack.c.bf16 %v2508, %v2506
  %v2968 = vpack.c.bf16 %v2512, %v2510
  %s2969 = scalar_lea.vmem %s5, 24
  %v2970 = vld [vmem:[%s2969] sm:$0xf]
  %v2971 = vld [vmem:[%s2969 + $0x4] sm:$0xf]
  %v2974 = vunpack.c.l.b16 %v2970
  %v2975 = vunpack.c.l.b16 %v2971
  %v2976 = vpack.c.b16 %v2975, %v2974
  %v2979 = vsel %vm2407, %v2961, 0
  %v2982 = vsel %vm2407, %v2962, 0
  %v2985 = vsel %vm2407, %v2963, 0
  %v2988 = vsel %vm2407, %v2964, 0
  %v2991 = vsel %vm2407, %v2965, 0
  %v2994 = vsel %vm2407, %v2966, 0
  %v2997 = vsel %vm2407, %v2967, 0
  %v3000 = vsel %vm2407, %v2968, 0
  %3002 = vmatpush.bf16.msra.mxu0 0
  %3003 = vmatpush.bf16.msra.mxu0 0
  %3004 = vmatpush.bf16.msra.mxu0 0
  %3005 = vmatpush.bf16.msra.mxu0 0
  %3006 = vmatpush.bf16.msra.mxu0 0
  %3007 = vmatpush.bf16.msra.mxu0 0
  %3008 = vmatpush.bf16.msra.mxu0 0
  %3009 = vmatpush.bf16.msra.mxu0 %v2976
  %3010 = vmatmul.bf16.gmra.mxu0 %v2979
  %v3011 = vpop.f32.mrf.mxu0
  %v3012 = vadd.f32 0.0, %v3011
  %v3013 = vpop.f32.mrf.mxu0
  %v3014 = vadd.f32 0.0, %v3013
  %3015 = vmatmul.bf16.gmra.mxu0 %v2982
  %v3016 = vpop.f32.mrf.mxu0
  %v3017 = vadd.f32 0.0, %v3016
  %v3018 = vpop.f32.mrf.mxu0
  %v3019 = vadd.f32 0.0, %v3018
  %3020 = vmatmul.bf16.gmra.mxu0 %v2985
  %v3021 = vpop.f32.mrf.mxu0
  %v3022 = vadd.f32 0.0, %v3021
  %v3023 = vpop.f32.mrf.mxu0
  %v3024 = vadd.f32 0.0, %v3023
  %3025 = vmatmul.bf16.gmra.mxu0 %v2988
  %v3026 = vpop.f32.mrf.mxu0
  %v3027 = vadd.f32 0.0, %v3026
  %v3028 = vpop.f32.mrf.mxu0
  %v3029 = vadd.f32 0.0, %v3028
  %3030 = vmatmul.bf16.gmra.mxu0 %v2991
  %v3031 = vpop.f32.mrf.mxu0
  %v3032 = vadd.f32 0.0, %v3031
  %v3033 = vpop.f32.mrf.mxu0
  %v3034 = vadd.f32 0.0, %v3033
  %3035 = vmatmul.bf16.gmra.mxu0 %v2994
  %v3036 = vpop.f32.mrf.mxu0
  %v3037 = vadd.f32 0.0, %v3036
  %v3038 = vpop.f32.mrf.mxu0
  %v3039 = vadd.f32 0.0, %v3038
  %3040 = vmatmul.bf16.gmra.mxu0 %v2997
  %v3041 = vpop.f32.mrf.mxu0
  %v3042 = vadd.f32 0.0, %v3041
  %v3043 = vpop.f32.mrf.mxu0
  %v3044 = vadd.f32 0.0, %v3043
  %3045 = vmatmul.bf16.gmra.mxu0 %v3000
  %v3046 = vpop.f32.mrf.mxu0
  %v3047 = vadd.f32 0.0, %v3046
  %v3048 = vpop.f32.mrf.mxu0
  %v3049 = vadd.f32 0.0, %v3048
  %3050 = vdwg.mxu0
  %v3051 = vadd.f32 %v2945, %v3012
  %v3052 = vadd.f32 %v2946, %v3014
  %v3053 = vadd.f32 %v2947, %v3017
  %v3054 = vadd.f32 %v2948, %v3019
  %v3055 = vadd.f32 %v2949, %v3022
  %v3056 = vadd.f32 %v2950, %v3024
  %v3057 = vadd.f32 %v2951, %v3027
  %v3058 = vadd.f32 %v2952, %v3029
  %v3059 = vadd.f32 %v2953, %v3032
  %v3060 = vadd.f32 %v2954, %v3034
  %v3061 = vadd.f32 %v2955, %v3037
  %v3062 = vadd.f32 %v2956, %v3039
  %v3063 = vadd.f32 %v2957, %v3042
  %v3064 = vadd.f32 %v2958, %v3044
  %v3065 = vadd.f32 %v2959, %v3047
  %v3066 = vadd.f32 %v2960, %v3049
  %v3071 = vrot.slane %v2492, 1
  %v3072 = vrot.slane %v2493, 1
  %v3073 = vsel %vm397, %v3071, %v3072
  %v3074 = vrot.slane %v2512, 1
  %v3075 = vrot.slane %v2513, 1
  %v3076 = vsel %vm397, %v3074, %v3075
  %v3079 = vpack.c.bf16 %v2566, %v2563
  %v3080 = vpack.c.bf16 %v2572, %v2569
  %v3081 = vpack.c.bf16 %v2578, %v2575
  %v3082 = vpack.c.bf16 %v3073, %v2581
  %v3083 = vpack.c.bf16 %v2590, %v2587
  %v3084 = vpack.c.bf16 %v2596, %v2593
  %v3085 = vpack.c.bf16 %v2602, %v2599
  %v3086 = vpack.c.bf16 %v3076, %v2605
  %s3087 = scalar_lea.vmem %s5, 32
  %v3088 = vld [vmem:[%s3087] sm:$0xf]
  %v3089 = vld [vmem:[%s3087 + $0x4] sm:$0xf]
  %v3092 = vunpack.c.l.b16 %v3088
  %v3093 = vunpack.c.l.b16 %v3089
  %v3094 = vpack.c.b16 %v3093, %v3092
  %v3097 = vsel %vm2407, %v3079, 0
  %v3100 = vsel %vm2407, %v3080, 0
  %v3103 = vsel %vm2407, %v3081, 0
  %v3106 = vsel %vm2407, %v3082, 0
  %v3109 = vsel %vm2407, %v3083, 0
  %v3112 = vsel %vm2407, %v3084, 0
  %v3115 = vsel %vm2407, %v3085, 0
  %v3118 = vsel %vm2407, %v3086, 0
  %3120 = vmatpush.bf16.msra.mxu0 0
  %3121 = vmatpush.bf16.msra.mxu0 0
  %3122 = vmatpush.bf16.msra.mxu0 0
  %3123 = vmatpush.bf16.msra.mxu0 0
  %3124 = vmatpush.bf16.msra.mxu0 0
  %3125 = vmatpush.bf16.msra.mxu0 0
  %3126 = vmatpush.bf16.msra.mxu0 0
  %3127 = vmatpush.bf16.msra.mxu0 %v3094
  %3128 = vmatmul.bf16.gmra.mxu0 %v3097
  %v3129 = vpop.f32.mrf.mxu0
  %v3130 = vadd.f32 0.0, %v3129
  %v3131 = vpop.f32.mrf.mxu0
  %v3132 = vadd.f32 0.0, %v3131
  %3133 = vmatmul.bf16.gmra.mxu0 %v3100
  %v3134 = vpop.f32.mrf.mxu0
  %v3135 = vadd.f32 0.0, %v3134
  %v3136 = vpop.f32.mrf.mxu0
  %v3137 = vadd.f32 0.0, %v3136
  %3138 = vmatmul.bf16.gmra.mxu0 %v3103
  %v3139 = vpop.f32.mrf.mxu0
  %v3140 = vadd.f32 0.0, %v3139
  %v3141 = vpop.f32.mrf.mxu0
  %v3142 = vadd.f32 0.0, %v3141
  %3143 = vmatmul.bf16.gmra.mxu0 %v3106
  %v3144 = vpop.f32.mrf.mxu0
  %v3145 = vadd.f32 0.0, %v3144
  %v3146 = vpop.f32.mrf.mxu0
  %v3147 = vadd.f32 0.0, %v3146
  %3148 = vmatmul.bf16.gmra.mxu0 %v3109
  %v3149 = vpop.f32.mrf.mxu0
  %v3150 = vadd.f32 0.0, %v3149
  %v3151 = vpop.f32.mrf.mxu0
  %v3152 = vadd.f32 0.0, %v3151
  %3153 = vmatmul.bf16.gmra.mxu0 %v3112
  %v3154 = vpop.f32.mrf.mxu0
  %v3155 = vadd.f32 0.0, %v3154
  %v3156 = vpop.f32.mrf.mxu0
  %v3157 = vadd.f32 0.0, %v3156
  %3158 = vmatmul.bf16.gmra.mxu0 %v3115
  %v3159 = vpop.f32.mrf.mxu0
  %v3160 = vadd.f32 0.0, %v3159
  %v3161 = vpop.f32.mrf.mxu0
  %v3162 = vadd.f32 0.0, %v3161
  %3163 = vmatmul.bf16.gmra.mxu0 %v3118
  %v3164 = vpop.f32.mrf.mxu0
  %v3165 = vadd.f32 0.0, %v3164
  %v3166 = vpop.f32.mrf.mxu0
  %v3167 = vadd.f32 0.0, %v3166
  %3168 = vdwg.mxu0
  %v3169 = vadd.f32 %v3051, %v3130
  %v3170 = vadd.f32 %v3052, %v3132
  %v3171 = vadd.f32 %v3053, %v3135
  %v3172 = vadd.f32 %v3054, %v3137
  %v3173 = vadd.f32 %v3055, %v3140
  %v3174 = vadd.f32 %v3056, %v3142
  %v3175 = vadd.f32 %v3057, %v3145
  %v3176 = vadd.f32 %v3058, %v3147
  %v3177 = vadd.f32 %v3059, %v3150
  %v3178 = vadd.f32 %v3060, %v3152
  %v3179 = vadd.f32 %v3061, %v3155
  %v3180 = vadd.f32 %v3062, %v3157
  %v3181 = vadd.f32 %v3063, %v3160
  %v3182 = vadd.f32 %v3064, %v3162
  %v3183 = vadd.f32 %v3065, %v3165
  %v3184 = vadd.f32 %v3066, %v3167
  %v3185 = vrot.slane %v2492, 2
  %v3186 = vrot.slane %v2493, 2
  %v3187 = vsel %vm626, %v3185, %v3186
  %v3188 = vrot.slane %v2512, 2
  %v3189 = vrot.slane %v2513, 2
  %v3190 = vsel %vm626, %v3188, %v3189
  %v3193 = vpack.c.bf16 %v2799, %v2796
  %v3194 = vpack.c.bf16 %v2805, %v2802
  %v3195 = vpack.c.bf16 %v2811, %v2808
  %v3196 = vpack.c.bf16 %v3187, %v2814
  %v3197 = vpack.c.bf16 %v2823, %v2820
  %v3198 = vpack.c.bf16 %v2829, %v2826
  %v3199 = vpack.c.bf16 %v2835, %v2832
  %v3200 = vpack.c.bf16 %v3190, %v2838
  %s3201 = scalar_lea.vmem %s5, 40
  %v3202 = vld [vmem:[%s3201] sm:$0xf]
  %v3203 = vld [vmem:[%s3201 + $0x4] sm:$0xf]
  %v3206 = vunpack.c.l.b16 %v3202
  %v3207 = vunpack.c.l.b16 %v3203
  %v3208 = vpack.c.b16 %v3207, %v3206
  %v3211 = vsel %vm2407, %v3193, 0
  %v3214 = vsel %vm2407, %v3194, 0
  %v3217 = vsel %vm2407, %v3195, 0
  %v3220 = vsel %vm2407, %v3196, 0
  %v3223 = vsel %vm2407, %v3197, 0
  %v3226 = vsel %vm2407, %v3198, 0
  %v3229 = vsel %vm2407, %v3199, 0
  %v3232 = vsel %vm2407, %v3200, 0
  %3234 = vmatpush.bf16.msra.mxu0 0
  %3235 = vmatpush.bf16.msra.mxu0 0
  %3236 = vmatpush.bf16.msra.mxu0 0
  %3237 = vmatpush.bf16.msra.mxu0 0
  %3238 = vmatpush.bf16.msra.mxu0 0
  %3239 = vmatpush.bf16.msra.mxu0 0
  %3240 = vmatpush.bf16.msra.mxu0 0
  %3241 = vmatpush.bf16.msra.mxu0 %v3208
  %3242 = vmatmul.bf16.gmra.mxu0 %v3211
  %v3243 = vpop.f32.mrf.mxu0
  %v3244 = vadd.f32 0.0, %v3243
  %v3245 = vpop.f32.mrf.mxu0
  %v3246 = vadd.f32 0.0, %v3245
  %3247 = vmatmul.bf16.gmra.mxu0 %v3214
  %v3248 = vpop.f32.mrf.mxu0
  %v3249 = vadd.f32 0.0, %v3248
  %v3250 = vpop.f32.mrf.mxu0
  %v3251 = vadd.f32 0.0, %v3250
  %3252 = vmatmul.bf16.gmra.mxu0 %v3217
  %v3253 = vpop.f32.mrf.mxu0
  %v3254 = vadd.f32 0.0, %v3253
  %v3255 = vpop.f32.mrf.mxu0
  %v3256 = vadd.f32 0.0, %v3255
  %3257 = vmatmul.bf16.gmra.mxu0 %v3220
  %v3258 = vpop.f32.mrf.mxu0
  %v3259 = vadd.f32 0.0, %v3258
  %v3260 = vpop.f32.mrf.mxu0
  %v3261 = vadd.f32 0.0, %v3260
  %3262 = vmatmul.bf16.gmra.mxu0 %v3223
  %v3263 = vpop.f32.mrf.mxu0
  %v3264 = vadd.f32 0.0, %v3263
  %v3265 = vpop.f32.mrf.mxu0
  %v3266 = vadd.f32 0.0, %v3265
  %3267 = vmatmul.bf16.gmra.mxu0 %v3226
  %v3268 = vpop.f32.mrf.mxu0
  %v3269 = vadd.f32 0.0, %v3268
  %v3270 = vpop.f32.mrf.mxu0
  %v3271 = vadd.f32 0.0, %v3270
  %3272 = vmatmul.bf16.gmra.mxu0 %v3229
  %v3273 = vpop.f32.mrf.mxu0
  %v3274 = vadd.f32 0.0, %v3273
  %v3275 = vpop.f32.mrf.mxu0
  %v3276 = vadd.f32 0.0, %v3275
  %3277 = vmatmul.bf16.gmra.mxu0 %v3232
  %v3278 = vpop.f32.mrf.mxu0
  %v3279 = vadd.f32 0.0, %v3278
  %v3280 = vpop.f32.mrf.mxu0
  %v3281 = vadd.f32 0.0, %v3280
  %3282 = vdwg.mxu0
  %v3283 = vadd.f32 %v3169, %v3244
  %v3284 = vadd.f32 %v3170, %v3246
  %v3285 = vadd.f32 %v3171, %v3249
  %v3286 = vadd.f32 %v3172, %v3251
  %v3287 = vadd.f32 %v3173, %v3254
  %v3288 = vadd.f32 %v3174, %v3256
  %v3289 = vadd.f32 %v3175, %v3259
  %v3290 = vadd.f32 %v3176, %v3261
  %v3291 = vadd.f32 %v3177, %v3264
  %v3292 = vadd.f32 %v3178, %v3266
  %v3293 = vadd.f32 %v3179, %v3269
  %v3294 = vadd.f32 %v3180, %v3271
  %v3295 = vadd.f32 %v3181, %v3274
  %v3296 = vadd.f32 %v3182, %v3276
  %v3297 = vadd.f32 %v3183, %v3279
  %v3298 = vadd.f32 %v3184, %v3281
  %v3299 = vpack.c.bf16 %v2494, %v2492
  %v3300 = vpack.c.bf16 %v2514, %v2512
  %s3301 = scalar_lea.vmem %s5, 48
  %v3302 = vld [vmem:[%s3301] sm:$0xf]
  %v3303 = vld [vmem:[%s3301 + $0x4] sm:$0xf]
  %v3306 = vunpack.c.l.b16 %v3302
  %v3307 = vunpack.c.l.b16 %v3303
  %v3308 = vpack.c.b16 %v3307, %v3306
  %v3311 = vsel %vm2407, %v3299, 0
  %v3314 = vsel %vm2407, %v3300, 0
  %3316 = vmatpush.bf16.msra.mxu0 0
  %3317 = vmatpush.bf16.msra.mxu0 0
  %3318 = vmatpush.bf16.msra.mxu0 0
  %3319 = vmatpush.bf16.msra.mxu0 0
  %3320 = vmatpush.bf16.msra.mxu0 0
  %3321 = vmatpush.bf16.msra.mxu0 0
  %3322 = vmatpush.bf16.msra.mxu0 0
  %3323 = vmatpush.bf16.msra.mxu0 %v3308
  %3324 = vmatmul.bf16.gmra.mxu0 %v2722
  %v3325 = vpop.f32.mrf.mxu0
  %v3326 = vadd.f32 0.0, %v3325
  %v3327 = vpop.f32.mrf.mxu0
  %v3328 = vadd.f32 0.0, %v3327
  %3329 = vmatmul.bf16.gmra.mxu0 %v2725
  %v3330 = vpop.f32.mrf.mxu0
  %v3331 = vadd.f32 0.0, %v3330
  %v3332 = vpop.f32.mrf.mxu0
  %v3333 = vadd.f32 0.0, %v3332
  %3334 = vmatmul.bf16.gmra.mxu0 %v2728
  %v3335 = vpop.f32.mrf.mxu0
  %v3336 = vadd.f32 0.0, %v3335
  %v3337 = vpop.f32.mrf.mxu0
  %v3338 = vadd.f32 0.0, %v3337
  %3339 = vmatmul.bf16.gmra.mxu0 %v3311
  %v3340 = vpop.f32.mrf.mxu0
  %v3341 = vadd.f32 0.0, %v3340
  %v3342 = vpop.f32.mrf.mxu0
  %v3343 = vadd.f32 0.0, %v3342
  %3344 = vmatmul.bf16.gmra.mxu0 %v2734
  %v3345 = vpop.f32.mrf.mxu0
  %v3346 = vadd.f32 0.0, %v3345
  %v3347 = vpop.f32.mrf.mxu0
  %v3348 = vadd.f32 0.0, %v3347
  %3349 = vmatmul.bf16.gmra.mxu0 %v2737
  %v3350 = vpop.f32.mrf.mxu0
  %v3351 = vadd.f32 0.0, %v3350
  %v3352 = vpop.f32.mrf.mxu0
  %v3353 = vadd.f32 0.0, %v3352
  %3354 = vmatmul.bf16.gmra.mxu0 %v2740
  %v3355 = vpop.f32.mrf.mxu0
  %v3356 = vadd.f32 0.0, %v3355
  %v3357 = vpop.f32.mrf.mxu0
  %v3358 = vadd.f32 0.0, %v3357
  %3359 = vmatmul.bf16.gmra.mxu0 %v3314
  %v3360 = vpop.f32.mrf.mxu0
  %v3361 = vadd.f32 0.0, %v3360
  %v3362 = vpop.f32.mrf.mxu0
  %v3363 = vadd.f32 0.0, %v3362
  %3364 = vdwg.mxu0
  %v3365 = vadd.f32 %v3283, %v3326
  %v3366 = vadd.f32 %v3284, %v3328
  %v3367 = vadd.f32 %v3285, %v3331
  %v3368 = vadd.f32 %v3286, %v3333
  %v3369 = vadd.f32 %v3287, %v3336
  %v3370 = vadd.f32 %v3288, %v3338
  %v3371 = vadd.f32 %v3289, %v3341
  %v3372 = vadd.f32 %v3290, %v3343
  %v3373 = vadd.f32 %v3291, %v3346
  %v3374 = vadd.f32 %v3292, %v3348
  %v3375 = vadd.f32 %v3293, %v3351
  %v3376 = vadd.f32 %v3294, %v3353
  %v3377 = vadd.f32 %v3295, %v3356
  %v3378 = vadd.f32 %v3296, %v3358
  %v3379 = vadd.f32 %v3297, %v3361
  %v3380 = vadd.f32 %v3298, %v3363
  %v3385 = vrot.slane %v2494, 1
  %v3386 = vrot.slane %v2495, 1
  %v3387 = vsel %vm397, %v3385, %v3386
  %v3388 = vrot.slane %v2514, 1
  %v3389 = vrot.slane %v2515, 1
  %v3390 = vsel %vm397, %v3388, %v3389
  %v3393 = vpack.c.bf16 %v3387, %v3073
  %v3394 = vpack.c.bf16 %v3390, %v3076
  %s3395 = scalar_lea.vmem %s5, 56
  %v3396 = vld [vmem:[%s3395] sm:$0xf]
  %v3397 = vld [vmem:[%s3395 + $0x4] sm:$0xf]
  %v3400 = vunpack.c.l.b16 %v3396
  %v3401 = vunpack.c.l.b16 %v3397
  %v3402 = vpack.c.b16 %v3401, %v3400
  %v3405 = vsel %vm2407, %v3393, 0
  %v3408 = vsel %vm2407, %v3394, 0
  %3410 = vmatpush.bf16.msra.mxu0 0
  %3411 = vmatpush.bf16.msra.mxu0 0
  %3412 = vmatpush.bf16.msra.mxu0 0
  %3413 = vmatpush.bf16.msra.mxu0 0
  %3414 = vmatpush.bf16.msra.mxu0 0
  %3415 = vmatpush.bf16.msra.mxu0 0
  %3416 = vmatpush.bf16.msra.mxu0 0
  %3417 = vmatpush.bf16.msra.mxu0 %v3402
  %3418 = vmatmul.bf16.gmra.mxu0 %v2643
  %v3419 = vpop.f32.mrf.mxu0
  %v3420 = vadd.f32 0.0, %v3419
  %v3421 = vpop.f32.mrf.mxu0
  %v3422 = vadd.f32 0.0, %v3421
  %3423 = vmatmul.bf16.gmra.mxu0 %v2646
  %v3424 = vpop.f32.mrf.mxu0
  %v3425 = vadd.f32 0.0, %v3424
  %v3426 = vpop.f32.mrf.mxu0
  %v3427 = vadd.f32 0.0, %v3426
  %3428 = vmatmul.bf16.gmra.mxu0 %v2649
  %v3429 = vpop.f32.mrf.mxu0
  %v3430 = vadd.f32 0.0, %v3429
  %v3431 = vpop.f32.mrf.mxu0
  %v3432 = vadd.f32 0.0, %v3431
  %3433 = vmatmul.bf16.gmra.mxu0 %v3405
  %v3434 = vpop.f32.mrf.mxu0
  %v3435 = vadd.f32 0.0, %v3434
  %v3436 = vpop.f32.mrf.mxu0
  %v3437 = vadd.f32 0.0, %v3436
  %3438 = vmatmul.bf16.gmra.mxu0 %v2655
  %v3439 = vpop.f32.mrf.mxu0
  %v3440 = vadd.f32 0.0, %v3439
  %v3441 = vpop.f32.mrf.mxu0
  %v3442 = vadd.f32 0.0, %v3441
  %3443 = vmatmul.bf16.gmra.mxu0 %v2658
  %v3444 = vpop.f32.mrf.mxu0
  %v3445 = vadd.f32 0.0, %v3444
  %v3446 = vpop.f32.mrf.mxu0
  %v3447 = vadd.f32 0.0, %v3446
  %3448 = vmatmul.bf16.gmra.mxu0 %v2661
  %v3449 = vpop.f32.mrf.mxu0
  %v3450 = vadd.f32 0.0, %v3449
  %v3451 = vpop.f32.mrf.mxu0
  %v3452 = vadd.f32 0.0, %v3451
  %3453 = vmatmul.bf16.gmra.mxu0 %v3408
  %v3454 = vpop.f32.mrf.mxu0
  %v3455 = vadd.f32 0.0, %v3454
  %v3456 = vpop.f32.mrf.mxu0
  %v3457 = vadd.f32 0.0, %v3456
  %3458 = vdwg.mxu0
  %v3459 = vadd.f32 %v3365, %v3420
  %v3460 = vadd.f32 %v3366, %v3422
  %v3461 = vadd.f32 %v3367, %v3425
  %v3462 = vadd.f32 %v3368, %v3427
  %v3463 = vadd.f32 %v3369, %v3430
  %v3464 = vadd.f32 %v3370, %v3432
  %v3465 = vadd.f32 %v3371, %v3435
  %v3466 = vadd.f32 %v3372, %v3437
  %v3467 = vadd.f32 %v3373, %v3440
  %v3468 = vadd.f32 %v3374, %v3442
  %v3469 = vadd.f32 %v3375, %v3445
  %v3470 = vadd.f32 %v3376, %v3447
  %v3471 = vadd.f32 %v3377, %v3450
  %v3472 = vadd.f32 %v3378, %v3452
  %v3473 = vadd.f32 %v3379, %v3455
  %v3474 = vadd.f32 %v3380, %v3457
  %v3475 = vrot.slane %v2494, 2
  %v3476 = vrot.slane %v2495, 2
  %v3477 = vsel %vm626, %v3475, %v3476
  %v3478 = vrot.slane %v2514, 2
  %v3479 = vrot.slane %v2515, 2
  %v3480 = vsel %vm626, %v3478, %v3479
  %v3483 = vpack.c.bf16 %v3477, %v3187
  %v3484 = vpack.c.bf16 %v3480, %v3190
  %s3485 = scalar_lea.vmem %s5, 64
  %v3486 = vld [vmem:[%s3485] sm:$0xf]
  %v3487 = vld [vmem:[%s3485 + $0x4] sm:$0xf]
  %v3490 = vunpack.c.l.b16 %v3486
  %v3491 = vunpack.c.l.b16 %v3487
  %v3492 = vpack.c.b16 %v3491, %v3490
  %v3495 = vsel %vm2407, %v3483, 0
  %v3498 = vsel %vm2407, %v3484, 0
  %3500 = vmatpush.bf16.msra.mxu0 0
  %3501 = vmatpush.bf16.msra.mxu0 0
  %3502 = vmatpush.bf16.msra.mxu0 0
  %3503 = vmatpush.bf16.msra.mxu0 0
  %3504 = vmatpush.bf16.msra.mxu0 0
  %3505 = vmatpush.bf16.msra.mxu0 0
  %3506 = vmatpush.bf16.msra.mxu0 0
  %3507 = vmatpush.bf16.msra.mxu0 %v3492
  %3508 = vmatmul.bf16.gmra.mxu0 %v2876
  %v3509 = vpop.f32.mrf.mxu0
  %v3510 = vadd.f32 0.0, %v3509
  %v3511 = vpop.f32.mrf.mxu0
  %v3512 = vadd.f32 0.0, %v3511
  %3513 = vmatmul.bf16.gmra.mxu0 %v2879
  %v3514 = vpop.f32.mrf.mxu0
  %v3515 = vadd.f32 0.0, %v3514
  %v3516 = vpop.f32.mrf.mxu0
  %v3517 = vadd.f32 0.0, %v3516
  %3518 = vmatmul.bf16.gmra.mxu0 %v2882
  %v3519 = vpop.f32.mrf.mxu0
  %v3520 = vadd.f32 0.0, %v3519
  %v3521 = vpop.f32.mrf.mxu0
  %v3522 = vadd.f32 0.0, %v3521
  %3523 = vmatmul.bf16.gmra.mxu0 %v3495
  %v3524 = vpop.f32.mrf.mxu0
  %v3525 = vadd.f32 0.0, %v3524
  %v3526 = vpop.f32.mrf.mxu0
  %v3527 = vadd.f32 0.0, %v3526
  %3528 = vmatmul.bf16.gmra.mxu0 %v2888
  %v3529 = vpop.f32.mrf.mxu0
  %v3530 = vadd.f32 0.0, %v3529
  %v3531 = vpop.f32.mrf.mxu0
  %v3532 = vadd.f32 0.0, %v3531
  %3533 = vmatmul.bf16.gmra.mxu0 %v2891
  %v3534 = vpop.f32.mrf.mxu0
  %v3535 = vadd.f32 0.0, %v3534
  %v3536 = vpop.f32.mrf.mxu0
  %v3537 = vadd.f32 0.0, %v3536
  %3538 = vmatmul.bf16.gmra.mxu0 %v2894
  %v3539 = vpop.f32.mrf.mxu0
  %v3540 = vadd.f32 0.0, %v3539
  %v3541 = vpop.f32.mrf.mxu0
  %v3542 = vadd.f32 0.0, %v3541
  %3543 = vmatmul.bf16.gmra.mxu0 %v3498
  %v3544 = vpop.f32.mrf.mxu0
  %v3545 = vadd.f32 0.0, %v3544
  %v3546 = vpop.f32.mrf.mxu0
  %v3547 = vadd.f32 0.0, %v3546
  %3548 = vdwg.mxu0
  %v3549 = vadd.f32 %v3459, %v3510
  %v3550 = vadd.f32 %v3460, %v3512
  %v3551 = vadd.f32 %v3461, %v3515
  %v3552 = vadd.f32 %v3462, %v3517
  %v3553 = vadd.f32 %v3463, %v3520
  %v3554 = vadd.f32 %v3464, %v3522
  %v3555 = vadd.f32 %v3465, %v3525
  %v3556 = vadd.f32 %v3466, %v3527
  %v3557 = vadd.f32 %v3467, %v3530
  %v3558 = vadd.f32 %v3468, %v3532
  %v3559 = vadd.f32 %v3469, %v3535
  %v3560 = vadd.f32 %v3470, %v3537
  %v3561 = vadd.f32 %v3471, %v3540
  %v3562 = vadd.f32 %v3472, %v3542
  %v3563 = vadd.f32 %v3473, %v3545
  %v3564 = vadd.f32 %v3474, %v3547
  %v3565 = vld [vmem:[%s6] sm:$0x1]
  %v3567 = vperm.slane %v3565, 0
  %v3569 = vadd.f32 %v3549, %v3567
  %v3570 = vadd.f32 %v3550, %v3567
  %v3571 = vadd.f32 %v3551, %v3567
  %v3572 = vadd.f32 %v3552, %v3567
  %v3573 = vadd.f32 %v3553, %v3567
  %v3574 = vadd.f32 %v3554, %v3567
  %v3575 = vadd.f32 %v3555, %v3567
  %v3576 = vadd.f32 %v3556, %v3567
  %v3577 = vadd.f32 %v3557, %v3567
  %v3578 = vadd.f32 %v3558, %v3567
  %v3579 = vadd.f32 %v3559, %v3567
  %v3580 = vadd.f32 %v3560, %v3567
  %v3581 = vadd.f32 %v3561, %v3567
  %v3582 = vadd.f32 %v3562, %v3567
  %v3583 = vadd.f32 %v3563, %v3567
  %v3584 = vadd.f32 %v3564, %v3567
  %v3585 = vld [vmem:[%s7] sm:$0x1]
  %v3586 = vld [vmem:[%s7 + $0x1] sm:$0x1]
  %v3587 = vld [vmem:[%s7 + $0x2] sm:$0x1]
  %v3588 = vld [vmem:[%s7 + $0x3] sm:$0x1]
  %v3589 = vld [vmem:[%s8] sm:$0x1]
  %v3590 = vld [vmem:[%s8 + $0x1] sm:$0x1]
  %v3591 = vsel %vm472, %v3569, 0.0
  %v3592 = vsel %vm472, %v3570, 0.0
  %v3593 = vadd.f32 %v3591, %v3592
  %v3594 = vsel %vm472, %v3571, 0.0
  %v3595 = vadd.f32 %v3593, %v3594
  %v3596 = vsel %vm472, %v3572, 0.0
  %v3597 = vadd.f32 %v3595, %v3596
  %v3598 = vsel %vm472, %v3573, 0.0
  %v3599 = vadd.f32 %v3597, %v3598
  %v3600 = vsel %vm472, %v3574, 0.0
  %v3601 = vadd.f32 %v3599, %v3600
  %v3602 = vsel %vm472, %v3575, 0.0
  %v3603 = vadd.f32 %v3601, %v3602
  %v3604 = vsel %vm472, %v3576, 0.0
  %v3605 = vadd.f32 %v3603, %v3604
  %v3606 = vsel %vm472, %v3577, 0.0
  %v3607 = vadd.f32 %v3605, %v3606
  %v3608 = vsel %vm472, %v3578, 0.0
  %v3609 = vadd.f32 %v3607, %v3608
  %v3610 = vsel %vm472, %v3579, 0.0
  %v3611 = vadd.f32 %v3609, %v3610
  %v3612 = vsel %vm472, %v3580, 0.0
  %v3613 = vadd.f32 %v3611, %v3612
  %v3614 = vsel %vm472, %v3581, 0.0
  %v3615 = vadd.f32 %v3613, %v3614
  %v3616 = vsel %vm472, %v3582, 0.0
  %v3617 = vadd.f32 %v3615, %v3616
  %v3618 = vsel %vm472, %v3583, 0.0
  %v3619 = vadd.f32 %v3617, %v3618
  %v3620 = vsel %vm472, %v3584, 0.0
  %v3621 = vadd.f32 %v3619, %v3620
  %v3622 = vrot.slane %v3621, 4
  %v3623 = vadd.f32 %v3621, %v3622
  %v3624 = vrot.slane %v3623, 2
  %v3625 = vadd.f32 %v3623, %v3624
  %v3626 = vrot.slane %v3625, 1
  %v3627 = vadd.f32 %v3625, %v3626
  %v3628 = vmul.f32 %v3627, 0.0078125
  %v3629 = vsel %vm1437, %v3569, 0.0
  %v3630 = vsel %vm1437, %v3570, 0.0
  %v3631 = vadd.f32 %v3629, %v3630
  %v3632 = vsel %vm1437, %v3571, 0.0
  %v3633 = vadd.f32 %v3631, %v3632
  %v3634 = vsel %vm1437, %v3572, 0.0
  %v3635 = vadd.f32 %v3633, %v3634
  %v3636 = vsel %vm1437, %v3573, 0.0
  %v3637 = vadd.f32 %v3635, %v3636
  %v3638 = vsel %vm1437, %v3574, 0.0
  %v3639 = vadd.f32 %v3637, %v3638
  %v3640 = vsel %vm1437, %v3575, 0.0
  %v3641 = vadd.f32 %v3639, %v3640
  %v3642 = vsel %vm1437, %v3576, 0.0
  %v3643 = vadd.f32 %v3641, %v3642
  %v3644 = vsel %vm1437, %v3577, 0.0
  %v3645 = vadd.f32 %v3643, %v3644
  %v3646 = vsel %vm1437, %v3578, 0.0
  %v3647 = vadd.f32 %v3645, %v3646
  %v3648 = vsel %vm1437, %v3579, 0.0
  %v3649 = vadd.f32 %v3647, %v3648
  %v3650 = vsel %vm1437, %v3580, 0.0
  %v3651 = vadd.f32 %v3649, %v3650
  %v3652 = vsel %vm1437, %v3581, 0.0
  %v3653 = vadd.f32 %v3651, %v3652
  %v3654 = vsel %vm1437, %v3582, 0.0
  %v3655 = vadd.f32 %v3653, %v3654
  %v3656 = vsel %vm1437, %v3583, 0.0
  %v3657 = vadd.f32 %v3655, %v3656
  %v3658 = vsel %vm1437, %v3584, 0.0
  %v3659 = vadd.f32 %v3657, %v3658
  %v3660 = vrot.slane %v3659, 4
  %v3661 = vadd.f32 %v3659, %v3660
  %v3662 = vrot.slane %v3661, 2
  %v3663 = vadd.f32 %v3661, %v3662
  %v3664 = vrot.slane %v3663, 1
  %v3665 = vadd.f32 %v3663, %v3664
  %v3666 = vmul.f32 %v3665, 0.0078125
  %v3667 = vsub.f32 %v3569, %v3628
  %v3668 = vsub.f32 %v3570, %v3628
  %v3669 = vsub.f32 %v3571, %v3628
  %v3670 = vsub.f32 %v3572, %v3628
  %v3671 = vsub.f32 %v3573, %v3628
  %v3672 = vsub.f32 %v3574, %v3628
  %v3673 = vsub.f32 %v3575, %v3628
  %v3674 = vsub.f32 %v3576, %v3628
  %v3675 = vsub.f32 %v3577, %v3628
  %v3676 = vsub.f32 %v3578, %v3628
  %v3677 = vsub.f32 %v3579, %v3628
  %v3678 = vsub.f32 %v3580, %v3628
  %v3679 = vsub.f32 %v3581, %v3628
  %v3680 = vsub.f32 %v3582, %v3628
  %v3681 = vsub.f32 %v3583, %v3628
  %v3682 = vsub.f32 %v3584, %v3628
  %v3683 = vsub.f32 %v3569, %v3666
  %v3684 = vsub.f32 %v3570, %v3666
  %v3685 = vsub.f32 %v3571, %v3666
  %v3686 = vsub.f32 %v3572, %v3666
  %v3687 = vsub.f32 %v3573, %v3666
  %v3688 = vsub.f32 %v3574, %v3666
  %v3689 = vsub.f32 %v3575, %v3666
  %v3690 = vsub.f32 %v3576, %v3666
  %v3691 = vsub.f32 %v3577, %v3666
  %v3692 = vsub.f32 %v3578, %v3666
  %v3693 = vsub.f32 %v3579, %v3666
  %v3694 = vsub.f32 %v3580, %v3666
  %v3695 = vsub.f32 %v3581, %v3666
  %v3696 = vsub.f32 %v3582, %v3666
  %v3697 = vsub.f32 %v3583, %v3666
  %v3698 = vsub.f32 %v3584, %v3666
  %v3699 = vmul.f32 %v3667, %v3667
  %v3700 = vmul.f32 %v3668, %v3668
  %v3701 = vmul.f32 %v3669, %v3669
  %v3702 = vmul.f32 %v3670, %v3670
  %v3703 = vmul.f32 %v3671, %v3671
  %v3704 = vmul.f32 %v3672, %v3672
  %v3705 = vmul.f32 %v3673, %v3673
  %v3706 = vmul.f32 %v3674, %v3674
  %v3707 = vmul.f32 %v3675, %v3675
  %v3708 = vmul.f32 %v3676, %v3676
  %v3709 = vmul.f32 %v3677, %v3677
  %v3710 = vmul.f32 %v3678, %v3678
  %v3711 = vmul.f32 %v3679, %v3679
  %v3712 = vmul.f32 %v3680, %v3680
  %v3713 = vmul.f32 %v3681, %v3681
  %v3714 = vmul.f32 %v3682, %v3682
  %v3715 = vsel %vm472, %v3699, 0.0
  %v3716 = vsel %vm472, %v3700, 0.0
  %v3717 = vadd.f32 %v3715, %v3716
  %v3718 = vsel %vm472, %v3701, 0.0
  %v3719 = vadd.f32 %v3717, %v3718
  %v3720 = vsel %vm472, %v3702, 0.0
  %v3721 = vadd.f32 %v3719, %v3720
  %v3722 = vsel %vm472, %v3703, 0.0
  %v3723 = vadd.f32 %v3721, %v3722
  %v3724 = vsel %vm472, %v3704, 0.0
  %v3725 = vadd.f32 %v3723, %v3724
  %v3726 = vsel %vm472, %v3705, 0.0
  %v3727 = vadd.f32 %v3725, %v3726
  %v3728 = vsel %vm472, %v3706, 0.0
  %v3729 = vadd.f32 %v3727, %v3728
  %v3730 = vsel %vm472, %v3707, 0.0
  %v3731 = vadd.f32 %v3729, %v3730
  %v3732 = vsel %vm472, %v3708, 0.0
  %v3733 = vadd.f32 %v3731, %v3732
  %v3734 = vsel %vm472, %v3709, 0.0
  %v3735 = vadd.f32 %v3733, %v3734
  %v3736 = vsel %vm472, %v3710, 0.0
  %v3737 = vadd.f32 %v3735, %v3736
  %v3738 = vsel %vm472, %v3711, 0.0
  %v3739 = vadd.f32 %v3737, %v3738
  %v3740 = vsel %vm472, %v3712, 0.0
  %v3741 = vadd.f32 %v3739, %v3740
  %v3742 = vsel %vm472, %v3713, 0.0
  %v3743 = vadd.f32 %v3741, %v3742
  %v3744 = vsel %vm472, %v3714, 0.0
  %v3745 = vadd.f32 %v3743, %v3744
  %v3746 = vrot.slane %v3745, 4
  %v3747 = vadd.f32 %v3745, %v3746
  %v3748 = vrot.slane %v3747, 2
  %v3749 = vadd.f32 %v3747, %v3748
  %v3750 = vrot.slane %v3749, 1
  %v3751 = vadd.f32 %v3749, %v3750
  %v3752 = vmul.f32 %v3751, 0.0078125
  %v3753 = vadd.f32 %v3752, 1e-05
  %v3754 = vmul.f32 %v3683, %v3683
  %v3755 = vmul.f32 %v3684, %v3684
  %v3756 = vmul.f32 %v3685, %v3685
  %v3757 = vmul.f32 %v3686, %v3686
  %v3758 = vmul.f32 %v3687, %v3687
  %v3759 = vmul.f32 %v3688, %v3688
  %v3760 = vmul.f32 %v3689, %v3689
  %v3761 = vmul.f32 %v3690, %v3690
  %v3762 = vmul.f32 %v3691, %v3691
  %v3763 = vmul.f32 %v3692, %v3692
  %v3764 = vmul.f32 %v3693, %v3693
  %v3765 = vmul.f32 %v3694, %v3694
  %v3766 = vmul.f32 %v3695, %v3695
  %v3767 = vmul.f32 %v3696, %v3696
  %v3768 = vmul.f32 %v3697, %v3697
  %v3769 = vmul.f32 %v3698, %v3698
  %v3770 = vsel %vm1437, %v3754, 0.0
  %v3771 = vsel %vm1437, %v3755, 0.0
  %v3772 = vadd.f32 %v3770, %v3771
  %v3773 = vsel %vm1437, %v3756, 0.0
  %v3774 = vadd.f32 %v3772, %v3773
  %v3775 = vsel %vm1437, %v3757, 0.0
  %v3776 = vadd.f32 %v3774, %v3775
  %v3777 = vsel %vm1437, %v3758, 0.0
  %v3778 = vadd.f32 %v3776, %v3777
  %v3779 = vsel %vm1437, %v3759, 0.0
  %v3780 = vadd.f32 %v3778, %v3779
  %v3781 = vsel %vm1437, %v3760, 0.0
  %v3782 = vadd.f32 %v3780, %v3781
  %v3783 = vsel %vm1437, %v3761, 0.0
  %v3784 = vadd.f32 %v3782, %v3783
  %v3785 = vsel %vm1437, %v3762, 0.0
  %v3786 = vadd.f32 %v3784, %v3785
  %v3787 = vsel %vm1437, %v3763, 0.0
  %v3788 = vadd.f32 %v3786, %v3787
  %v3789 = vsel %vm1437, %v3764, 0.0
  %v3790 = vadd.f32 %v3788, %v3789
  %v3791 = vsel %vm1437, %v3765, 0.0
  %v3792 = vadd.f32 %v3790, %v3791
  %v3793 = vsel %vm1437, %v3766, 0.0
  %v3794 = vadd.f32 %v3792, %v3793
  %v3795 = vsel %vm1437, %v3767, 0.0
  %v3796 = vadd.f32 %v3794, %v3795
  %v3797 = vsel %vm1437, %v3768, 0.0
  %v3798 = vadd.f32 %v3796, %v3797
  %v3799 = vsel %vm1437, %v3769, 0.0
  %v3800 = vadd.f32 %v3798, %v3799
  %v3801 = vrot.slane %v3800, 4
  %v3802 = vadd.f32 %v3800, %v3801
  %v3803 = vrot.slane %v3802, 2
  %v3804 = vadd.f32 %v3802, %v3803
  %v3805 = vrot.slane %v3804, 1
  %v3806 = vadd.f32 %v3804, %v3805
  %v3807 = vmul.f32 %v3806, 0.0078125
  %v3808 = vadd.f32 %v3807, 1e-05
  %3825 = vrot.lane.b32.xlu0 %v3683, 120
  %v3826 = vpop.permute.xlu0 %3825
  %3827 = vrot.lane.b32.xlu0 %v3684, 120
  %v3828 = vpop.permute.xlu0 %3827
  %3829 = vrot.lane.b32.xlu0 %v3685, 120
  %v3830 = vpop.permute.xlu0 %3829
  %3831 = vrot.lane.b32.xlu0 %v3686, 120
  %v3832 = vpop.permute.xlu0 %3831
  %3833 = vrot.lane.b32.xlu0 %v3687, 120
  %v3834 = vpop.permute.xlu0 %3833
  %3835 = vrot.lane.b32.xlu0 %v3688, 120
  %v3836 = vpop.permute.xlu0 %3835
  %3837 = vrot.lane.b32.xlu0 %v3689, 120
  %v3838 = vpop.permute.xlu0 %3837
  %3839 = vrot.lane.b32.xlu0 %v3690, 120
  %v3840 = vpop.permute.xlu0 %3839
  %3841 = vrot.lane.b32.xlu0 %v3691, 120
  %v3842 = vpop.permute.xlu0 %3841
  %3843 = vrot.lane.b32.xlu0 %v3692, 120
  %v3844 = vpop.permute.xlu0 %3843
  %3845 = vrot.lane.b32.xlu0 %v3693, 120
  %v3846 = vpop.permute.xlu0 %3845
  %3847 = vrot.lane.b32.xlu0 %v3694, 120
  %v3848 = vpop.permute.xlu0 %3847
  %3849 = vrot.lane.b32.xlu0 %v3695, 120
  %v3850 = vpop.permute.xlu0 %3849
  %3851 = vrot.lane.b32.xlu0 %v3696, 120
  %v3852 = vpop.permute.xlu0 %3851
  %3853 = vrot.lane.b32.xlu0 %v3697, 120
  %v3854 = vpop.permute.xlu0 %3853
  %3855 = vrot.lane.b32.xlu0 %v3698, 120
  %v3856 = vpop.permute.xlu0 %3855
  %v3873 = vmul.f32 %v3667, %v3826
  %v3874 = vmul.f32 %v3668, %v3828
  %v3875 = vmul.f32 %v3669, %v3830
  %v3876 = vmul.f32 %v3670, %v3832
  %v3877 = vmul.f32 %v3671, %v3834
  %v3878 = vmul.f32 %v3672, %v3836
  %v3879 = vmul.f32 %v3673, %v3838
  %v3880 = vmul.f32 %v3674, %v3840
  %v3881 = vmul.f32 %v3675, %v3842
  %v3882 = vmul.f32 %v3676, %v3844
  %v3883 = vmul.f32 %v3677, %v3846
  %v3884 = vmul.f32 %v3678, %v3848
  %v3885 = vmul.f32 %v3679, %v3850
  %v3886 = vmul.f32 %v3680, %v3852
  %v3887 = vmul.f32 %v3681, %v3854
  %v3888 = vmul.f32 %v3682, %v3856
  %v3889 = vsel %vm472, %v3873, 0.0
  %v3890 = vsel %vm472, %v3874, 0.0
  %v3891 = vadd.f32 %v3889, %v3890
  %v3892 = vsel %vm472, %v3875, 0.0
  %v3893 = vadd.f32 %v3891, %v3892
  %v3894 = vsel %vm472, %v3876, 0.0
  %v3895 = vadd.f32 %v3893, %v3894
  %v3896 = vsel %vm472, %v3877, 0.0
  %v3897 = vadd.f32 %v3895, %v3896
  %v3898 = vsel %vm472, %v3878, 0.0
  %v3899 = vadd.f32 %v3897, %v3898
  %v3900 = vsel %vm472, %v3879, 0.0
  %v3901 = vadd.f32 %v3899, %v3900
  %v3902 = vsel %vm472, %v3880, 0.0
  %v3903 = vadd.f32 %v3901, %v3902
  %v3904 = vsel %vm472, %v3881, 0.0
  %v3905 = vadd.f32 %v3903, %v3904
  %v3906 = vsel %vm472, %v3882, 0.0
  %v3907 = vadd.f32 %v3905, %v3906
  %v3908 = vsel %vm472, %v3883, 0.0
  %v3909 = vadd.f32 %v3907, %v3908
  %v3910 = vsel %vm472, %v3884, 0.0
  %v3911 = vadd.f32 %v3909, %v3910
  %v3912 = vsel %vm472, %v3885, 0.0
  %v3913 = vadd.f32 %v3911, %v3912
  %v3914 = vsel %vm472, %v3886, 0.0
  %v3915 = vadd.f32 %v3913, %v3914
  %v3916 = vsel %vm472, %v3887, 0.0
  %v3917 = vadd.f32 %v3915, %v3916
  %v3918 = vsel %vm472, %v3888, 0.0
  %v3919 = vadd.f32 %v3917, %v3918
  %v3920 = vrot.slane %v3919, 4
  %v3921 = vadd.f32 %v3919, %v3920
  %v3922 = vrot.slane %v3921, 2
  %v3923 = vadd.f32 %v3921, %v3922
  %v3924 = vrot.slane %v3923, 1
  %v3925 = vadd.f32 %v3923, %v3924
  %v3926 = vmul.f32 %v3925, 0.0078125
  %3928 = vrot.lane.b32.xlu0 %v3808, 120
  %v3929 = vpop.permute.xlu0 %3928
  %v3931 = vmul.f32 %v3753, %v3929
  %v3932 = vmul.f32 %v3926, %v3926
  %v3933 = vsub.f32 %v3931, %v3932
  %v3934 = vrsqrt.pop %v3933
  %v3935 = vmul.f32 %v3934, %v3933
  %v3936 = vmul.f32 %v3935, %v3934
  %v3937 = vmul.f32 0.5, %v3936
  %v3938 = vsub.f32 1.5, %v3937
  %v3939 = vmul.f32 %v3934, %v3938
  %v3940 = vmul.f32 %v3933, %v3939
  %vm3941 = vcmp.eq.f32.partialorder %v3933, inf
  %v3942 = vsel %vm3941, %v3933, %v3940
  %vm3943 = vcmp.eq.f32.partialorder %v3933, 0.0
  %v3944 = vand.u32 %v3933, 2147483648
  %v3945 = vsel %vm3943, %v3944, %v3942
  %v3946 = vmul.f32 %v3945, 2.0
  %v3947 = vadd.f32 %v3753, %v3946
  %v3948 = vadd.f32 %v3947, %v3929
  %v3949 = vrsqrt.pop %v3948
  %v3950 = vmul.f32 %v3949, %v3948
  %v3951 = vmul.f32 %v3950, %v3949
  %v3952 = vmul.f32 0.5, %v3951
  %v3953 = vsub.f32 1.5, %v3952
  %v3954 = vmul.f32 %v3949, %v3953
  %v3955 = vmul.f32 %v3948, %v3954
  %vm3956 = vcmp.eq.f32.partialorder %v3948, inf
  %v3957 = vsel %vm3956, %v3948, %v3955
  %vm3958 = vcmp.eq.f32.partialorder %v3948, 0.0
  %v3959 = vand.u32 %v3948, 2147483648
  %v3960 = vsel %vm3958, %v3959, %v3957
  %v3961 = vmul.f32 %v3945, %v3960
  %v3962 = vrcp.pop %v3961
  %3964 = vrot.lane.b32.xlu0 %v3945, 8
  %v3965 = vpop.permute.xlu0 %3964
  %v3967 = vadd.f32 %v3808, %v3965
  %3969 = vrot.lane.b32.xlu0 %v3962, 8
  %v3970 = vpop.permute.xlu0 %3969
  %v3972 = vmul.f32 %v3967, %v3970
  %v3973 = vsub.f32 0.0, %v3926
  %v3974 = vmul.f32 %v3973, %v3962
  %v3975 = vadd.f32 %v3753, %v3945
  %v3976 = vmul.f32 %v3975, %v3962
  %v3977 = vperm.slane %v3972, 0
  %3994 = vrot.lane.b32.xlu0 %v3667, 8
  %v3995 = vpop.permute.xlu0 %3994
  %3996 = vrot.lane.b32.xlu0 %v3668, 8
  %v3997 = vpop.permute.xlu0 %3996
  %3998 = vrot.lane.b32.xlu0 %v3669, 8
  %v3999 = vpop.permute.xlu0 %3998
  %4000 = vrot.lane.b32.xlu0 %v3670, 8
  %v4001 = vpop.permute.xlu0 %4000
  %4002 = vrot.lane.b32.xlu0 %v3671, 8
  %v4003 = vpop.permute.xlu0 %4002
  %4004 = vrot.lane.b32.xlu0 %v3672, 8
  %v4005 = vpop.permute.xlu0 %4004
  %4006 = vrot.lane.b32.xlu0 %v3673, 8
  %v4007 = vpop.permute.xlu0 %4006
  %4008 = vrot.lane.b32.xlu0 %v3674, 8
  %v4009 = vpop.permute.xlu0 %4008
  %4010 = vrot.lane.b32.xlu0 %v3675, 8
  %v4011 = vpop.permute.xlu0 %4010
  %4012 = vrot.lane.b32.xlu0 %v3676, 8
  %v4013 = vpop.permute.xlu0 %4012
  %4014 = vrot.lane.b32.xlu0 %v3677, 8
  %v4015 = vpop.permute.xlu0 %4014
  %4016 = vrot.lane.b32.xlu0 %v3678, 8
  %v4017 = vpop.permute.xlu0 %4016
  %4018 = vrot.lane.b32.xlu0 %v3679, 8
  %v4019 = vpop.permute.xlu0 %4018
  %4020 = vrot.lane.b32.xlu0 %v3680, 8
  %v4021 = vpop.permute.xlu0 %4020
  %4022 = vrot.lane.b32.xlu0 %v3681, 8
  %v4023 = vpop.permute.xlu0 %4022
  %4024 = vrot.lane.b32.xlu0 %v3682, 8
  %v4025 = vpop.permute.xlu0 %4024
  %v4042 = vmul.f32 %v3977, %v3995
  %v4043 = vmul.f32 %v3977, %v3997
  %v4044 = vmul.f32 %v3977, %v3999
  %v4045 = vmul.f32 %v3977, %v4001
  %v4046 = vmul.f32 %v3977, %v4003
  %v4047 = vmul.f32 %v3977, %v4005
  %v4048 = vmul.f32 %v3977, %v4007
  %v4049 = vmul.f32 %v3977, %v4009
  %v4050 = vmul.f32 %v3977, %v4011
  %v4051 = vmul.f32 %v3977, %v4013
  %v4052 = vmul.f32 %v3977, %v4015
  %v4053 = vmul.f32 %v3977, %v4017
  %v4054 = vmul.f32 %v3977, %v4019
  %v4055 = vmul.f32 %v3977, %v4021
  %v4056 = vmul.f32 %v3977, %v4023
  %v4057 = vmul.f32 %v3977, %v4025
  %v4058 = vperm.slane %v3974, 0
  %v4059 = vmul.f32 %v4058, %v3826
  %v4060 = vmul.f32 %v4058, %v3828
  %v4061 = vmul.f32 %v4058, %v3830
  %v4062 = vmul.f32 %v4058, %v3832
  %v4063 = vmul.f32 %v4058, %v3834
  %v4064 = vmul.f32 %v4058, %v3836
  %v4065 = vmul.f32 %v4058, %v3838
  %v4066 = vmul.f32 %v4058, %v3840
  %v4067 = vmul.f32 %v4058, %v3842
  %v4068 = vmul.f32 %v4058, %v3844
  %v4069 = vmul.f32 %v4058, %v3846
  %v4070 = vmul.f32 %v4058, %v3848
  %v4071 = vmul.f32 %v4058, %v3850
  %v4072 = vmul.f32 %v4058, %v3852
  %v4073 = vmul.f32 %v4058, %v3854
  %v4074 = vmul.f32 %v4058, %v3856
  %4091 = vrot.lane.b32.xlu0 %v4059, 8
  %v4092 = vpop.permute.xlu0 %4091
  %4093 = vrot.lane.b32.xlu0 %v4060, 8
  %v4094 = vpop.permute.xlu0 %4093
  %4095 = vrot.lane.b32.xlu0 %v4061, 8
  %v4096 = vpop.permute.xlu0 %4095
  %4097 = vrot.lane.b32.xlu0 %v4062, 8
  %v4098 = vpop.permute.xlu0 %4097
  %4099 = vrot.lane.b32.xlu0 %v4063, 8
  %v4100 = vpop.permute.xlu0 %4099
  %4101 = vrot.lane.b32.xlu0 %v4064, 8
  %v4102 = vpop.permute.xlu0 %4101
  %4103 = vrot.lane.b32.xlu0 %v4065, 8
  %v4104 = vpop.permute.xlu0 %4103
  %4105 = vrot.lane.b32.xlu0 %v4066, 8
  %v4106 = vpop.permute.xlu0 %4105
  %4107 = vrot.lane.b32.xlu0 %v4067, 8
  %v4108 = vpop.permute.xlu0 %4107
  %4109 = vrot.lane.b32.xlu0 %v4068, 8
  %v4110 = vpop.permute.xlu0 %4109
  %4111 = vrot.lane.b32.xlu0 %v4069, 8
  %v4112 = vpop.permute.xlu0 %4111
  %4113 = vrot.lane.b32.xlu0 %v4070, 8
  %v4114 = vpop.permute.xlu0 %4113
  %4115 = vrot.lane.b32.xlu0 %v4071, 8
  %v4116 = vpop.permute.xlu0 %4115
  %4117 = vrot.lane.b32.xlu0 %v4072, 8
  %v4118 = vpop.permute.xlu0 %4117
  %4119 = vrot.lane.b32.xlu0 %v4073, 8
  %v4120 = vpop.permute.xlu0 %4119
  %4121 = vrot.lane.b32.xlu0 %v4074, 8
  %v4122 = vpop.permute.xlu0 %4121
  %v4139 = vadd.f32 %v4042, %v4092
  %v4140 = vadd.f32 %v4043, %v4094
  %v4141 = vadd.f32 %v4044, %v4096
  %v4142 = vadd.f32 %v4045, %v4098
  %v4143 = vadd.f32 %v4046, %v4100
  %v4144 = vadd.f32 %v4047, %v4102
  %v4145 = vadd.f32 %v4048, %v4104
  %v4146 = vadd.f32 %v4049, %v4106
  %v4147 = vadd.f32 %v4050, %v4108
  %v4148 = vadd.f32 %v4051, %v4110
  %v4149 = vadd.f32 %v4052, %v4112
  %v4150 = vadd.f32 %v4053, %v4114
  %v4151 = vadd.f32 %v4054, %v4116
  %v4152 = vadd.f32 %v4055, %v4118
  %v4153 = vadd.f32 %v4056, %v4120
  %v4154 = vadd.f32 %v4057, %v4122
  %v4155 = vmul.f32 %v4058, %v3667
  %v4156 = vmul.f32 %v4058, %v3668
  %v4157 = vmul.f32 %v4058, %v3669
  %v4158 = vmul.f32 %v4058, %v3670
  %v4159 = vmul.f32 %v4058, %v3671
  %v4160 = vmul.f32 %v4058, %v3672
  %v4161 = vmul.f32 %v4058, %v3673
  %v4162 = vmul.f32 %v4058, %v3674
  %v4163 = vmul.f32 %v4058, %v3675
  %v4164 = vmul.f32 %v4058, %v3676
  %v4165 = vmul.f32 %v4058, %v3677
  %v4166 = vmul.f32 %v4058, %v3678
  %v4167 = vmul.f32 %v4058, %v3679
  %v4168 = vmul.f32 %v4058, %v3680
  %v4169 = vmul.f32 %v4058, %v3681
  %v4170 = vmul.f32 %v4058, %v3682
  %v4171 = vperm.slane %v3976, 0
  %v4172 = vmul.f32 %v4171, %v3826
  %v4173 = vmul.f32 %v4171, %v3828
  %v4174 = vmul.f32 %v4171, %v3830
  %v4175 = vmul.f32 %v4171, %v3832
  %v4176 = vmul.f32 %v4171, %v3834
  %v4177 = vmul.f32 %v4171, %v3836
  %v4178 = vmul.f32 %v4171, %v3838
  %v4179 = vmul.f32 %v4171, %v3840
  %v4180 = vmul.f32 %v4171, %v3842
  %v4181 = vmul.f32 %v4171, %v3844
  %v4182 = vmul.f32 %v4171, %v3846
  %v4183 = vmul.f32 %v4171, %v3848
  %v4184 = vmul.f32 %v4171, %v3850
  %v4185 = vmul.f32 %v4171, %v3852
  %v4186 = vmul.f32 %v4171, %v3854
  %v4187 = vmul.f32 %v4171, %v3856
  %v4188 = vadd.f32 %v4155, %v4172
  %v4189 = vadd.f32 %v4156, %v4173
  %v4190 = vadd.f32 %v4157, %v4174
  %v4191 = vadd.f32 %v4158, %v4175
  %v4192 = vadd.f32 %v4159, %v4176
  %v4193 = vadd.f32 %v4160, %v4177
  %v4194 = vadd.f32 %v4161, %v4178
  %v4195 = vadd.f32 %v4162, %v4179
  %v4196 = vadd.f32 %v4163, %v4180
  %v4197 = vadd.f32 %v4164, %v4181
  %v4198 = vadd.f32 %v4165, %v4182
  %v4199 = vadd.f32 %v4166, %v4183
  %v4200 = vadd.f32 %v4167, %v4184
  %v4201 = vadd.f32 %v4168, %v4185
  %v4202 = vadd.f32 %v4169, %v4186
  %v4203 = vadd.f32 %v4170, %v4187
  %v4205 = vperm.slane %v3585, 0
  %4206 = vrot.lane.b32.xlu0 %v4205, 8
  %v4207 = vpop.permute.xlu0 %4206
  %v4209 = vmul.f32 %v4139, %v4207
  %v4210 = vmul.f32 %v4140, %v4207
  %v4211 = vmul.f32 %v4141, %v4207
  %v4212 = vmul.f32 %v4142, %v4207
  %v4213 = vmul.f32 %v4143, %v4207
  %v4214 = vmul.f32 %v4144, %v4207
  %v4215 = vmul.f32 %v4145, %v4207
  %v4216 = vmul.f32 %v4146, %v4207
  %v4217 = vmul.f32 %v4147, %v4207
  %v4218 = vmul.f32 %v4148, %v4207
  %v4219 = vmul.f32 %v4149, %v4207
  %v4220 = vmul.f32 %v4150, %v4207
  %v4221 = vmul.f32 %v4151, %v4207
  %v4222 = vmul.f32 %v4152, %v4207
  %v4223 = vmul.f32 %v4153, %v4207
  %v4224 = vmul.f32 %v4154, %v4207
  %v4226 = vperm.slane %v3586, 0
  %v4228 = vmul.f32 %v4188, %v4226
  %v4229 = vmul.f32 %v4189, %v4226
  %v4230 = vmul.f32 %v4190, %v4226
  %v4231 = vmul.f32 %v4191, %v4226
  %v4232 = vmul.f32 %v4192, %v4226
  %v4233 = vmul.f32 %v4193, %v4226
  %v4234 = vmul.f32 %v4194, %v4226
  %v4235 = vmul.f32 %v4195, %v4226
  %v4236 = vmul.f32 %v4196, %v4226
  %v4237 = vmul.f32 %v4197, %v4226
  %v4238 = vmul.f32 %v4198, %v4226
  %v4239 = vmul.f32 %v4199, %v4226
  %v4240 = vmul.f32 %v4200, %v4226
  %v4241 = vmul.f32 %v4201, %v4226
  %v4242 = vmul.f32 %v4202, %v4226
  %v4243 = vmul.f32 %v4203, %v4226
  %4260 = vrot.lane.b32.xlu0 %v4228, 8
  %v4261 = vpop.permute.xlu0 %4260
  %4262 = vrot.lane.b32.xlu0 %v4229, 8
  %v4263 = vpop.permute.xlu0 %4262
  %4264 = vrot.lane.b32.xlu0 %v4230, 8
  %v4265 = vpop.permute.xlu0 %4264
  %4266 = vrot.lane.b32.xlu0 %v4231, 8
  %v4267 = vpop.permute.xlu0 %4266
  %4268 = vrot.lane.b32.xlu0 %v4232, 8
  %v4269 = vpop.permute.xlu0 %4268
  %4270 = vrot.lane.b32.xlu0 %v4233, 8
  %v4271 = vpop.permute.xlu0 %4270
  %4272 = vrot.lane.b32.xlu0 %v4234, 8
  %v4273 = vpop.permute.xlu0 %4272
  %4274 = vrot.lane.b32.xlu0 %v4235, 8
  %v4275 = vpop.permute.xlu0 %4274
  %4276 = vrot.lane.b32.xlu0 %v4236, 8
  %v4277 = vpop.permute.xlu0 %4276
  %4278 = vrot.lane.b32.xlu0 %v4237, 8
  %v4279 = vpop.permute.xlu0 %4278
  %4280 = vrot.lane.b32.xlu0 %v4238, 8
  %v4281 = vpop.permute.xlu0 %4280
  %4282 = vrot.lane.b32.xlu0 %v4239, 8
  %v4283 = vpop.permute.xlu0 %4282
  %4284 = vrot.lane.b32.xlu0 %v4240, 8
  %v4285 = vpop.permute.xlu0 %4284
  %4286 = vrot.lane.b32.xlu0 %v4241, 8
  %v4287 = vpop.permute.xlu0 %4286
  %4288 = vrot.lane.b32.xlu0 %v4242, 8
  %v4289 = vpop.permute.xlu0 %4288
  %4290 = vrot.lane.b32.xlu0 %v4243, 8
  %v4291 = vpop.permute.xlu0 %4290
  %v4308 = vadd.f32 %v4209, %v4261
  %v4309 = vadd.f32 %v4210, %v4263
  %v4310 = vadd.f32 %v4211, %v4265
  %v4311 = vadd.f32 %v4212, %v4267
  %v4312 = vadd.f32 %v4213, %v4269
  %v4313 = vadd.f32 %v4214, %v4271
  %v4314 = vadd.f32 %v4215, %v4273
  %v4315 = vadd.f32 %v4216, %v4275
  %v4316 = vadd.f32 %v4217, %v4277
  %v4317 = vadd.f32 %v4218, %v4279
  %v4318 = vadd.f32 %v4219, %v4281
  %v4319 = vadd.f32 %v4220, %v4283
  %v4320 = vadd.f32 %v4221, %v4285
  %v4321 = vadd.f32 %v4222, %v4287
  %v4322 = vadd.f32 %v4223, %v4289
  %v4323 = vadd.f32 %v4224, %v4291
  %v4325 = vperm.slane %v3589, 0
  %4326 = vrot.lane.b32.xlu0 %v4325, 8
  %v4327 = vpop.permute.xlu0 %4326
  %v4329 = vadd.f32 %v4308, %v4327
  %v4330 = vadd.f32 %v4309, %v4327
  %v4331 = vadd.f32 %v4310, %v4327
  %v4332 = vadd.f32 %v4311, %v4327
  %v4333 = vadd.f32 %v4312, %v4327
  %v4334 = vadd.f32 %v4313, %v4327
  %v4335 = vadd.f32 %v4314, %v4327
  %v4336 = vadd.f32 %v4315, %v4327
  %v4337 = vadd.f32 %v4316, %v4327
  %v4338 = vadd.f32 %v4317, %v4327
  %v4339 = vadd.f32 %v4318, %v4327
  %v4340 = vadd.f32 %v4319, %v4327
  %v4341 = vadd.f32 %v4320, %v4327
  %v4342 = vadd.f32 %v4321, %v4327
  %v4343 = vadd.f32 %v4322, %v4327
  %v4344 = vadd.f32 %v4323, %v4327
  %v4346 = vperm.slane %v3587, 0
  %4347 = vrot.lane.b32.xlu0 %v4346, 8
  %v4348 = vpop.permute.xlu0 %4347
  %v4350 = vmul.f32 %v4139, %v4348
  %v4351 = vmul.f32 %v4140, %v4348
  %v4352 = vmul.f32 %v4141, %v4348
  %v4353 = vmul.f32 %v4142, %v4348
  %v4354 = vmul.f32 %v4143, %v4348
  %v4355 = vmul.f32 %v4144, %v4348
  %v4356 = vmul.f32 %v4145, %v4348
  %v4357 = vmul.f32 %v4146, %v4348
  %v4358 = vmul.f32 %v4147, %v4348
  %v4359 = vmul.f32 %v4148, %v4348
  %v4360 = vmul.f32 %v4149, %v4348
  %v4361 = vmul.f32 %v4150, %v4348
  %v4362 = vmul.f32 %v4151, %v4348
  %v4363 = vmul.f32 %v4152, %v4348
  %v4364 = vmul.f32 %v4153, %v4348
  %v4365 = vmul.f32 %v4154, %v4348
  %v4367 = vperm.slane %v3588, 0
  %v4369 = vmul.f32 %v4188, %v4367
  %v4370 = vmul.f32 %v4189, %v4367
  %v4371 = vmul.f32 %v4190, %v4367
  %v4372 = vmul.f32 %v4191, %v4367
  %v4373 = vmul.f32 %v4192, %v4367
  %v4374 = vmul.f32 %v4193, %v4367
  %v4375 = vmul.f32 %v4194, %v4367
  %v4376 = vmul.f32 %v4195, %v4367
  %v4377 = vmul.f32 %v4196, %v4367
  %v4378 = vmul.f32 %v4197, %v4367
  %v4379 = vmul.f32 %v4198, %v4367
  %v4380 = vmul.f32 %v4199, %v4367
  %v4381 = vmul.f32 %v4200, %v4367
  %v4382 = vmul.f32 %v4201, %v4367
  %v4383 = vmul.f32 %v4202, %v4367
  %v4384 = vmul.f32 %v4203, %v4367
  %4401 = vrot.lane.b32.xlu0 %v4369, 8
  %v4402 = vpop.permute.xlu0 %4401
  %4403 = vrot.lane.b32.xlu0 %v4370, 8
  %v4404 = vpop.permute.xlu0 %4403
  %4405 = vrot.lane.b32.xlu0 %v4371, 8
  %v4406 = vpop.permute.xlu0 %4405
  %4407 = vrot.lane.b32.xlu0 %v4372, 8
  %v4408 = vpop.permute.xlu0 %4407
  %4409 = vrot.lane.b32.xlu0 %v4373, 8
  %v4410 = vpop.permute.xlu0 %4409
  %4411 = vrot.lane.b32.xlu0 %v4374, 8
  %v4412 = vpop.permute.xlu0 %4411
  %4413 = vrot.lane.b32.xlu0 %v4375, 8
  %v4414 = vpop.permute.xlu0 %4413
  %4415 = vrot.lane.b32.xlu0 %v4376, 8
  %v4416 = vpop.permute.xlu0 %4415
  %4417 = vrot.lane.b32.xlu0 %v4377, 8
  %v4418 = vpop.permute.xlu0 %4417
  %4419 = vrot.lane.b32.xlu0 %v4378, 8
  %v4420 = vpop.permute.xlu0 %4419
  %4421 = vrot.lane.b32.xlu0 %v4379, 8
  %v4422 = vpop.permute.xlu0 %4421
  %4423 = vrot.lane.b32.xlu0 %v4380, 8
  %v4424 = vpop.permute.xlu0 %4423
  %4425 = vrot.lane.b32.xlu0 %v4381, 8
  %v4426 = vpop.permute.xlu0 %4425
  %4427 = vrot.lane.b32.xlu0 %v4382, 8
  %v4428 = vpop.permute.xlu0 %4427
  %4429 = vrot.lane.b32.xlu0 %v4383, 8
  %v4430 = vpop.permute.xlu0 %4429
  %4431 = vrot.lane.b32.xlu0 %v4384, 8
  %v4432 = vpop.permute.xlu0 %4431
  %v4449 = vadd.f32 %v4350, %v4402
  %v4450 = vadd.f32 %v4351, %v4404
  %v4451 = vadd.f32 %v4352, %v4406
  %v4452 = vadd.f32 %v4353, %v4408
  %v4453 = vadd.f32 %v4354, %v4410
  %v4454 = vadd.f32 %v4355, %v4412
  %v4455 = vadd.f32 %v4356, %v4414
  %v4456 = vadd.f32 %v4357, %v4416
  %v4457 = vadd.f32 %v4358, %v4418
  %v4458 = vadd.f32 %v4359, %v4420
  %v4459 = vadd.f32 %v4360, %v4422
  %v4460 = vadd.f32 %v4361, %v4424
  %v4461 = vadd.f32 %v4362, %v4426
  %v4462 = vadd.f32 %v4363, %v4428
  %v4463 = vadd.f32 %v4364, %v4430
  %v4464 = vadd.f32 %v4365, %v4432
  %v4466 = vperm.slane %v3590, 0
  %4467 = vrot.lane.b32.xlu0 %v4466, 8
  %v4468 = vpop.permute.xlu0 %4467
  %v4470 = vadd.f32 %v4449, %v4468
  %v4471 = vadd.f32 %v4450, %v4468
  %v4472 = vadd.f32 %v4451, %v4468
  %v4473 = vadd.f32 %v4452, %v4468
  %v4474 = vadd.f32 %v4453, %v4468
  %v4475 = vadd.f32 %v4454, %v4468
  %v4476 = vadd.f32 %v4455, %v4468
  %v4477 = vadd.f32 %v4456, %v4468
  %v4478 = vadd.f32 %v4457, %v4468
  %v4479 = vadd.f32 %v4458, %v4468
  %v4480 = vadd.f32 %v4459, %v4468
  %v4481 = vadd.f32 %v4460, %v4468
  %v4482 = vadd.f32 %v4461, %v4468
  %v4483 = vadd.f32 %v4462, %v4468
  %v4484 = vadd.f32 %v4463, %v4468
  %v4485 = vadd.f32 %v4464, %v4468
  %v4486 = vmax.f32 %v4329, 0.0
  %v4487 = vmax.f32 %v4330, 0.0
  %v4488 = vmax.f32 %v4331, 0.0
  %v4489 = vmax.f32 %v4332, 0.0
  %v4490 = vmax.f32 %v4333, 0.0
  %v4491 = vmax.f32 %v4334, 0.0
  %v4492 = vmax.f32 %v4335, 0.0
  %v4493 = vmax.f32 %v4336, 0.0
  %v4494 = vmax.f32 %v4337, 0.0
  %v4495 = vmax.f32 %v4338, 0.0
  %v4496 = vmax.f32 %v4339, 0.0
  %v4497 = vmax.f32 %v4340, 0.0
  %v4498 = vmax.f32 %v4341, 0.0
  %v4499 = vmax.f32 %v4342, 0.0
  %v4500 = vmax.f32 %v4343, 0.0
  %v4501 = vmax.f32 %v4344, 0.0
  %v4502 = vmax.f32 %v4470, 0.0
  %v4503 = vmax.f32 %v4471, 0.0
  %v4504 = vmax.f32 %v4472, 0.0
  %v4505 = vmax.f32 %v4473, 0.0
  %v4506 = vmax.f32 %v4474, 0.0
  %v4507 = vmax.f32 %v4475, 0.0
  %v4508 = vmax.f32 %v4476, 0.0
  %v4509 = vmax.f32 %v4477, 0.0
  %v4510 = vmax.f32 %v4478, 0.0
  %v4511 = vmax.f32 %v4479, 0.0
  %v4512 = vmax.f32 %v4480, 0.0
  %v4513 = vmax.f32 %v4481, 0.0
  %v4514 = vmax.f32 %v4482, 0.0
  %v4515 = vmax.f32 %v4483, 0.0
  %v4516 = vmax.f32 %v4484, 0.0
  %v4517 = vmax.f32 %v4485, 0.0
  %4534 = vrot.lane.b32.xlu0 %v4486, 120
  %v4535 = vpop.permute.xlu0 %4534
  %4536 = vrot.lane.b32.xlu0 %v4487, 120
  %v4537 = vpop.permute.xlu0 %4536
  %4538 = vrot.lane.b32.xlu0 %v4488, 120
  %v4539 = vpop.permute.xlu0 %4538
  %4540 = vrot.lane.b32.xlu0 %v4489, 120
  %v4541 = vpop.permute.xlu0 %4540
  %4542 = vrot.lane.b32.xlu0 %v4490, 120
  %v4543 = vpop.permute.xlu0 %4542
  %4544 = vrot.lane.b32.xlu0 %v4491, 120
  %v4545 = vpop.permute.xlu0 %4544
  %4546 = vrot.lane.b32.xlu0 %v4492, 120
  %v4547 = vpop.permute.xlu0 %4546
  %4548 = vrot.lane.b32.xlu0 %v4493, 120
  %v4549 = vpop.permute.xlu0 %4548
  %4550 = vrot.lane.b32.xlu0 %v4494, 120
  %v4551 = vpop.permute.xlu0 %4550
  %4552 = vrot.lane.b32.xlu0 %v4495, 120
  %v4553 = vpop.permute.xlu0 %4552
  %4554 = vrot.lane.b32.xlu0 %v4496, 120
  %v4555 = vpop.permute.xlu0 %4554
  %4556 = vrot.lane.b32.xlu0 %v4497, 120
  %v4557 = vpop.permute.xlu0 %4556
  %4558 = vrot.lane.b32.xlu0 %v4498, 120
  %v4559 = vpop.permute.xlu0 %4558
  %4560 = vrot.lane.b32.xlu0 %v4499, 120
  %v4561 = vpop.permute.xlu0 %4560
  %4562 = vrot.lane.b32.xlu0 %v4500, 120
  %v4563 = vpop.permute.xlu0 %4562
  %4564 = vrot.lane.b32.xlu0 %v4501, 120
  %v4565 = vpop.permute.xlu0 %4564
  %v4582 = vsel %vm472, %v4535, %v4502
  %v4583 = vsel %vm472, %v4537, %v4503
  %v4584 = vsel %vm472, %v4539, %v4504
  %v4585 = vsel %vm472, %v4541, %v4505
  %v4586 = vsel %vm472, %v4543, %v4506
  %v4587 = vsel %vm472, %v4545, %v4507
  %v4588 = vsel %vm472, %v4547, %v4508
  %v4589 = vsel %vm472, %v4549, %v4509
  %v4590 = vsel %vm472, %v4551, %v4510
  %v4591 = vsel %vm472, %v4553, %v4511
  %v4592 = vsel %vm472, %v4555, %v4512
  %v4593 = vsel %vm472, %v4557, %v4513
  %v4594 = vsel %vm472, %v4559, %v4514
  %v4595 = vsel %vm472, %v4561, %v4515
  %v4596 = vsel %vm472, %v4563, %v4516
  %v4597 = vsel %vm472, %v4565, %v4517
  %v4614 = vrot.slane %v4583, 7
  %vm4615 = vcmask 1041409
  %v4616 = vsel %vm4615, %v4614, %v4582
  %v4617 = vrot.slane %v4584, 6
  %vm4618 = vcmask 1042434
  %v4619 = vsel %vm4618, %v4617, %v4616
  %v4620 = vrot.slane %v4585, 5
  %vm4621 = vcmask 1043459
  %v4622 = vsel %vm4621, %v4620, %v4619
  %v4623 = vrot.slane %v4586, 4
  %vm4624 = vcmask 1044484
  %v4625 = vsel %vm4624, %v4623, %v4622
  %v4626 = vrot.slane %v4587, 3
  %vm4627 = vcmask 1045509
  %v4628 = vsel %vm4627, %v4626, %v4625
  %v4629 = vrot.slane %v4588, 2
  %vm4630 = vcmask 1046534
  %v4631 = vsel %vm4630, %v4629, %v4628
  %v4632 = vrot.slane %v4589, 1
  %vm4633 = vcmask 1047559
  %v4634 = vsel %vm4633, %v4632, %v4631
  %v4635 = vrot.slane %v4591, 7
  %v4636 = vsel %vm4615, %v4635, %v4590
  %v4637 = vrot.slane %v4592, 6
  %v4638 = vsel %vm4618, %v4637, %v4636
  %v4639 = vrot.slane %v4593, 5
  %v4640 = vsel %vm4621, %v4639, %v4638
  %v4641 = vrot.slane %v4594, 4
  %v4642 = vsel %vm4624, %v4641, %v4640
  %v4643 = vrot.slane %v4595, 3
  %v4644 = vsel %vm4627, %v4643, %v4642
  %v4645 = vrot.slane %v4596, 2
  %v4646 = vsel %vm4630, %v4645, %v4644
  %v4647 = vrot.slane %v4597, 1
  %v4648 = vsel %vm4633, %v4647, %v4646
  %v4651 = vrot.slane %v4582, 1
  %v4652 = vsel %vm4615, %v4583, %v4651
  %v4653 = vrot.slane %v4584, 7
  %v4654 = vsel %vm4618, %v4653, %v4652
  %v4655 = vrot.slane %v4585, 6
  %v4656 = vsel %vm4621, %v4655, %v4654
  %v4657 = vrot.slane %v4586, 5
  %v4658 = vsel %vm4624, %v4657, %v4656
  %v4659 = vrot.slane %v4587, 4
  %v4660 = vsel %vm4627, %v4659, %v4658
  %v4661 = vrot.slane %v4588, 3
  %v4662 = vsel %vm4630, %v4661, %v4660
  %v4663 = vrot.slane %v4589, 2
  %v4664 = vsel %vm4633, %v4663, %v4662
  %v4665 = vrot.slane %v4590, 1
  %v4666 = vsel %vm4615, %v4591, %v4665
  %v4667 = vrot.slane %v4592, 7
  %v4668 = vsel %vm4618, %v4667, %v4666
  %v4669 = vrot.slane %v4593, 6
  %v4670 = vsel %vm4621, %v4669, %v4668
  %v4671 = vrot.slane %v4594, 5
  %v4672 = vsel %vm4624, %v4671, %v4670
  %v4673 = vrot.slane %v4595, 4
  %v4674 = vsel %vm4627, %v4673, %v4672
  %v4675 = vrot.slane %v4596, 3
  %v4676 = vsel %vm4630, %v4675, %v4674
  %v4677 = vrot.slane %v4597, 2
  %v4678 = vsel %vm4633, %v4677, %v4676
  %4679 = vrot.lane.b32.xlu0 %v4664, 16
  %v4680 = vpop.permute.xlu0 %4679
  %4681 = vrot.lane.b32.xlu0 %v4678, 16
  %v4682 = vpop.permute.xlu0 %4681
  %v4685 = vrot.slane %v4582, 2
  %v4686 = vrot.slane %v4583, 1
  %v4687 = vsel %vm4615, %v4686, %v4685
  %v4688 = vsel %vm4618, %v4584, %v4687
  %v4689 = vrot.slane %v4585, 7
  %v4690 = vsel %vm4621, %v4689, %v4688
  %v4691 = vrot.slane %v4586, 6
  %v4692 = vsel %vm4624, %v4691, %v4690
  %v4693 = vrot.slane %v4587, 5
  %v4694 = vsel %vm4627, %v4693, %v4692
  %v4695 = vrot.slane %v4588, 4
  %v4696 = vsel %vm4630, %v4695, %v4694
  %v4697 = vrot.slane %v4589, 3
  %v4698 = vsel %vm4633, %v4697, %v4696
  %v4699 = vrot.slane %v4590, 2
  %v4700 = vrot.slane %v4591, 1
  %v4701 = vsel %vm4615, %v4700, %v4699
  %v4702 = vsel %vm4618, %v4592, %v4701
  %v4703 = vrot.slane %v4593, 7
  %v4704 = vsel %vm4621, %v4703, %v4702
  %v4705 = vrot.slane %v4594, 6
  %v4706 = vsel %vm4624, %v4705, %v4704
  %v4707 = vrot.slane %v4595, 5
  %v4708 = vsel %vm4627, %v4707, %v4706
  %v4709 = vrot.slane %v4596, 4
  %v4710 = vsel %vm4630, %v4709, %v4708
  %v4711 = vrot.slane %v4597, 3
  %v4712 = vsel %vm4633, %v4711, %v4710
  %4713 = vrot.lane.b32.xlu0 %v4698, 32
  %v4714 = vpop.permute.xlu0 %4713
  %4715 = vrot.lane.b32.xlu0 %v4712, 32
  %v4716 = vpop.permute.xlu0 %4715
  %v4719 = vrot.slane %v4582, 3
  %v4720 = vrot.slane %v4583, 2
  %v4721 = vsel %vm4615, %v4720, %v4719
  %v4722 = vrot.slane %v4584, 1
  %v4723 = vsel %vm4618, %v4722, %v4721
  %v4724 = vsel %vm4621, %v4585, %v4723
  %v4725 = vrot.slane %v4586, 7
  %v4726 = vsel %vm4624, %v4725, %v4724
  %v4727 = vrot.slane %v4587, 6
  %v4728 = vsel %vm4627, %v4727, %v4726
  %v4729 = vrot.slane %v4588, 5
  %v4730 = vsel %vm4630, %v4729, %v4728
  %v4731 = vrot.slane %v4589, 4
  %v4732 = vsel %vm4633, %v4731, %v4730
  %v4733 = vrot.slane %v4590, 3
  %v4734 = vrot.slane %v4591, 2
  %v4735 = vsel %vm4615, %v4734, %v4733
  %v4736 = vrot.slane %v4592, 1
  %v4737 = vsel %vm4618, %v4736, %v4735
  %v4738 = vsel %vm4621, %v4593, %v4737
  %v4739 = vrot.slane %v4594, 7
  %v4740 = vsel %vm4624, %v4739, %v4738
  %v4741 = vrot.slane %v4595, 6
  %v4742 = vsel %vm4627, %v4741, %v4740
  %v4743 = vrot.slane %v4596, 5
  %v4744 = vsel %vm4630, %v4743, %v4742
  %v4745 = vrot.slane %v4597, 4
  %v4746 = vsel %vm4633, %v4745, %v4744
  %4747 = vrot.lane.b32.xlu0 %v4732, 48
  %v4748 = vpop.permute.xlu0 %4747
  %4749 = vrot.lane.b32.xlu0 %v4746, 48
  %v4750 = vpop.permute.xlu0 %4749
  %v4753 = vrot.slane %v4582, 4
  %v4754 = vrot.slane %v4583, 3
  %v4755 = vsel %vm4615, %v4754, %v4753
  %v4756 = vrot.slane %v4584, 2
  %v4757 = vsel %vm4618, %v4756, %v4755
  %v4758 = vrot.slane %v4585, 1
  %v4759 = vsel %vm4621, %v4758, %v4757
  %v4760 = vsel %vm4624, %v4586, %v4759
  %v4761 = vrot.slane %v4587, 7
  %v4762 = vsel %vm4627, %v4761, %v4760
  %v4763 = vrot.slane %v4588, 6
  %v4764 = vsel %vm4630, %v4763, %v4762
  %v4765 = vrot.slane %v4589, 5
  %v4766 = vsel %vm4633, %v4765, %v4764
  %v4767 = vrot.slane %v4590, 4
  %v4768 = vrot.slane %v4591, 3
  %v4769 = vsel %vm4615, %v4768, %v4767
  %v4770 = vrot.slane %v4592, 2
  %v4771 = vsel %vm4618, %v4770, %v4769
  %v4772 = vrot.slane %v4593, 1
  %v4773 = vsel %vm4621, %v4772, %v4771
  %v4774 = vsel %vm4624, %v4594, %v4773
  %v4775 = vrot.slane %v4595, 7
  %v4776 = vsel %vm4627, %v4775, %v4774
  %v4777 = vrot.slane %v4596, 6
  %v4778 = vsel %vm4630, %v4777, %v4776
  %v4779 = vrot.slane %v4597, 5
  %v4780 = vsel %vm4633, %v4779, %v4778
  %4781 = vrot.lane.b32.xlu0 %v4766, 64
  %v4782 = vpop.permute.xlu0 %4781
  %4783 = vrot.lane.b32.xlu0 %v4780, 64
  %v4784 = vpop.permute.xlu0 %4783
  %v4787 = vrot.slane %v4582, 5
  %v4788 = vrot.slane %v4583, 4
  %v4789 = vsel %vm4615, %v4788, %v4787
  %v4790 = vrot.slane %v4584, 3
  %v4791 = vsel %vm4618, %v4790, %v4789
  %v4792 = vrot.slane %v4585, 2
  %v4793 = vsel %vm4621, %v4792, %v4791
  %v4794 = vrot.slane %v4586, 1
  %v4795 = vsel %vm4624, %v4794, %v4793
  %v4796 = vsel %vm4627, %v4587, %v4795
  %v4797 = vrot.slane %v4588, 7
  %v4798 = vsel %vm4630, %v4797, %v4796
  %v4799 = vrot.slane %v4589, 6
  %v4800 = vsel %vm4633, %v4799, %v4798
  %v4801 = vrot.slane %v4590, 5
  %v4802 = vrot.slane %v4591, 4
  %v4803 = vsel %vm4615, %v4802, %v4801
  %v4804 = vrot.slane %v4592, 3
  %v4805 = vsel %vm4618, %v4804, %v4803
  %v4806 = vrot.slane %v4593, 2
  %v4807 = vsel %vm4621, %v4806, %v4805
  %v4808 = vrot.slane %v4594, 1
  %v4809 = vsel %vm4624, %v4808, %v4807
  %v4810 = vsel %vm4627, %v4595, %v4809
  %v4811 = vrot.slane %v4596, 7
  %v4812 = vsel %vm4630, %v4811, %v4810
  %v4813 = vrot.slane %v4597, 6
  %v4814 = vsel %vm4633, %v4813, %v4812
  %4815 = vrot.lane.b32.xlu0 %v4800, 80
  %v4816 = vpop.permute.xlu0 %4815
  %4817 = vrot.lane.b32.xlu0 %v4814, 80
  %v4818 = vpop.permute.xlu0 %4817
  %v4821 = vrot.slane %v4582, 6
  %v4822 = vrot.slane %v4583, 5
  %v4823 = vsel %vm4615, %v4822, %v4821
  %v4824 = vrot.slane %v4584, 4
  %v4825 = vsel %vm4618, %v4824, %v4823
  %v4826 = vrot.slane %v4585, 3
  %v4827 = vsel %vm4621, %v4826, %v4825
  %v4828 = vrot.slane %v4586, 2
  %v4829 = vsel %vm4624, %v4828, %v4827
  %v4830 = vrot.slane %v4587, 1
  %v4831 = vsel %vm4627, %v4830, %v4829
  %v4832 = vsel %vm4630, %v4588, %v4831
  %v4833 = vrot.slane %v4589, 7
  %v4834 = vsel %vm4633, %v4833, %v4832
  %v4835 = vrot.slane %v4590, 6
  %v4836 = vrot.slane %v4591, 5
  %v4837 = vsel %vm4615, %v4836, %v4835
  %v4838 = vrot.slane %v4592, 4
  %v4839 = vsel %vm4618, %v4838, %v4837
  %v4840 = vrot.slane %v4593, 3
  %v4841 = vsel %vm4621, %v4840, %v4839
  %v4842 = vrot.slane %v4594, 2
  %v4843 = vsel %vm4624, %v4842, %v4841
  %v4844 = vrot.slane %v4595, 1
  %v4845 = vsel %vm4627, %v4844, %v4843
  %v4846 = vsel %vm4630, %v4596, %v4845
  %v4847 = vrot.slane %v4597, 7
  %v4848 = vsel %vm4633, %v4847, %v4846
  %4849 = vrot.lane.b32.xlu0 %v4834, 96
  %v4850 = vpop.permute.xlu0 %4849
  %4851 = vrot.lane.b32.xlu0 %v4848, 96
  %v4852 = vpop.permute.xlu0 %4851
  %v4855 = vrot.slane %v4582, 7
  %v4856 = vrot.slane %v4583, 6
  %v4857 = vsel %vm4615, %v4856, %v4855
  %v4858 = vrot.slane %v4584, 5
  %v4859 = vsel %vm4618, %v4858, %v4857
  %v4860 = vrot.slane %v4585, 4
  %v4861 = vsel %vm4621, %v4860, %v4859
  %v4862 = vrot.slane %v4586, 3
  %v4863 = vsel %vm4624, %v4862, %v4861
  %v4864 = vrot.slane %v4587, 2
  %v4865 = vsel %vm4627, %v4864, %v4863
  %v4866 = vrot.slane %v4588, 1
  %v4867 = vsel %vm4630, %v4866, %v4865
  %v4868 = vsel %vm4633, %v4589, %v4867
  %v4869 = vrot.slane %v4590, 7
  %v4870 = vrot.slane %v4591, 6
  %v4871 = vsel %vm4615, %v4870, %v4869
  %v4872 = vrot.slane %v4592, 5
  %v4873 = vsel %vm4618, %v4872, %v4871
  %v4874 = vrot.slane %v4593, 4
  %v4875 = vsel %vm4621, %v4874, %v4873
  %v4876 = vrot.slane %v4594, 3
  %v4877 = vsel %vm4624, %v4876, %v4875
  %v4878 = vrot.slane %v4595, 2
  %v4879 = vsel %vm4627, %v4878, %v4877
  %v4880 = vrot.slane %v4596, 1
  %v4881 = vsel %vm4630, %v4880, %v4879
  %v4882 = vsel %vm4633, %v4597, %v4881
  %4883 = vrot.lane.b32.xlu0 %v4868, 112
  %v4884 = vpop.permute.xlu0 %4883
  %4885 = vrot.lane.b32.xlu0 %v4882, 112
  %v4886 = vpop.permute.xlu0 %4885
  %v4889 = vsel %vm2407, %v4634, %v4680
  %v4890 = vsel %vm2407, %v4648, %v4682
  %vm4891 = vcmask 261120
  %v4892 = vsel %vm4891, %v4889, %v4714
  %v4893 = vsel %vm4891, %v4890, %v4716
  %vm4894 = vcmask 392192
  %v4895 = vsel %vm4894, %v4892, %v4748
  %v4896 = vsel %vm4894, %v4893, %v4750
  %vm4897 = vcmask 523264
  %v4898 = vsel %vm4897, %v4895, %v4782
  %v4899 = vsel %vm4897, %v4896, %v4784
  %vm4900 = vcmask 654336
  %v4901 = vsel %vm4900, %v4898, %v4816
  %v4902 = vsel %vm4900, %v4899, %v4818
  %vm4903 = vcmask 785408
  %v4904 = vsel %vm4903, %v4901, %v4850
  %v4905 = vsel %vm4903, %v4902, %v4852
  %vm4906 = vcmask 916480
  %v4907 = vsel %vm4906, %v4904, %v4884
  %v4908 = vsel %vm4906, %v4905, %v4886
  %4909 = vst [vmem:[%s9] sm:$0xff] %v4907
  %4910 = vst [vmem:[%s9 + $0x8] sm:$0xff] %v4908
  // Predicated region
  $region38: #{cplx_down_forward.1} parent=0 // pred_check
    _
  $region39: #{cplx_down_forward.1} parent=0 // pred_check_branch
    %4912 = sbr.rel (0) target = $region41
  $region40: #{cplx_down_forward.1} parent=0 // pred_region
    _
  $region41: #{cplx_down_forward.1} parent=0 // pred_fallthru
    _
  // Predicated region
  $region42: #{cplx_down_forward.1} parent=0 // pred_check
    _
  $region43: #{cplx_down_forward.1} parent=0 // pred_check_branch
    %4914 = sbr.rel (0) target = $region45
  $region44: #{cplx_down_forward.1} parent=0 // pred_region
    _
  $region45: #{cplx_down_forward.1} parent=0 // pred_fallthru
    _

</llo_original>
